<compile_context>
chip_gen: v7x
topology: tpu7x:2x2x1
jax: 0.10.0
libtpu: 0.0.40
codegen_flags: <defaults>
</compile_context>

<pallas_src>
import numpy as np

import jax
import jax.numpy as jnp
from jax.experimental import pallas as pl
from jax.experimental.pallas import tpu as pltpu

_COUT_PAD = 8  # conv2's 3 output channels padded to a full sublane group


def _selection_matrices(H, W):
    """0/1 selection matrices folding padding / tap shift / nearest-x2 upsample.

    S1[t, q, p]  : conv1 tap t — 1 iff flat input pixel q is the (in-bounds)
                   source of flat output pixel p (kernel=3, pad=1).
    S2[t, q, p2] : conv2 tap t on the x2 nearest-upsampled image — 1 iff flat
                   conv1-output pixel q is the (in-bounds) source of flat
                   (2H, 2W) output pixel p2.
    Returned in bfloat16 (0/1 are exact; upcast in-kernel is bit-identical).
    """
    HW = H * W
    H2, W2 = 2 * H, 2 * W
    taps = [(di, dj) for di in range(3) for dj in range(3)]

    S1 = np.zeros((9, HW, HW), np.float32)
    ph, pw = np.meshgrid(np.arange(H), np.arange(W), indexing="ij")
    p1 = (ph * W + pw).ravel()
    for t, (di, dj) in enumerate(taps):
        sh, sw = ph + di - 1, pw + dj - 1
        valid = ((sh >= 0) & (sh < H) & (sw >= 0) & (sw < W)).ravel()
        q = (np.clip(sh, 0, H - 1) * W + np.clip(sw, 0, W - 1)).ravel()
        S1[t, q[valid], p1[valid]] = 1.0

    S2 = np.zeros((9, HW, 4 * HW), np.float32)
    pr, pc = np.meshgrid(np.arange(H2), np.arange(W2), indexing="ij")
    p2 = (pr * W2 + pc).ravel()
    for t, (di, dj) in enumerate(taps):
        sr, sc = pr + di - 1, pc + dj - 1
        valid = ((sr >= 0) & (sr < H2) & (sc >= 0) & (sc < W2)).ravel()
        q = ((np.clip(sr, 0, H2 - 1) // 2) * W
             + (np.clip(sc, 0, W2 - 1) // 2)).ravel()
        S2[t, q[valid], p2[valid]] = 1.0

    return jnp.asarray(S1, jnp.bfloat16), jnp.asarray(S2, jnp.bfloat16)


def _ref_head_kernel(x_ref, w1_ref, b1_ref, w2_ref, b2_ref, s1_ref, s2_ref,
                     o_ref):
    Cmid = b1_ref.shape[0]          # 64
    Cout_pad = o_ref.shape[1]       # 8

    x = x_ref[0]                                                        # (Cin, HW)

    # ---- conv1: weight-first matmul, then 9 accumulating tap matmuls ------
    z1 = jnp.dot(w1_ref[...], x, preferred_element_type=jnp.float32)   # (9*Cmid, HW)
    y1 = jnp.dot(z1[0:Cmid, :], s1_ref[0].astype(jnp.float32),
                 preferred_element_type=jnp.float32)
    for t in range(1, 9):
        y1 = y1 + jnp.dot(z1[t * Cmid:(t + 1) * Cmid, :],
                          s1_ref[t].astype(jnp.float32),
                          preferred_element_type=jnp.float32)
    y1 = jnp.maximum(y1 + b1_ref[...], 0.0)                            # (Cmid, HW)

    # ---- nearest x2 upsample + conv2, fused into the tap selection --------
    z2 = jnp.dot(w2_ref[...], y1, preferred_element_type=jnp.float32)  # (9*8, HW)
    o = jnp.dot(z2[0:Cout_pad, :], s2_ref[0].astype(jnp.float32),
                preferred_element_type=jnp.float32)
    for t in range(1, 9):
        o = o + jnp.dot(z2[t * Cout_pad:(t + 1) * Cout_pad, :],
                        s2_ref[t].astype(jnp.float32),
                        preferred_element_type=jnp.float32)
    o = o + b2_ref[...]                                                # (8, 4*HW)

    # ---- numerically stable sigmoid (no inf, exp on EUP) ------------------
    e = jnp.exp(-jnp.abs(o))
    r = pl.reciprocal(1.0 + e)
    o_ref[0] = jnp.where(o >= 0.0, r, e * r)        # dense (8, 4*HW) store


@jax.jit
def ref_head_forward(feat_nchw, params):
    """Equivalent of REF_head.forward: (B, 64, H, W) -> (B, 3, 2H, 2W)."""
    B, Cin, H, W = feat_nchw.shape
    w1, b1, w2, b2 = params["w1"], params["b1"], params["w2"], params["b2"]
    Cmid = w1.shape[0]              # 64
    Cout = w2.shape[0]              # 3
    HW = H * W
    assert w1.shape[1:] == (Cin, 3, 3) and w2.shape[1:] == (Cmid, 3, 3), \
        "REF_head assumes 3x3 / pad=1 convolutions"

    # Input: NCHW with spatial flattened onto the lane axis (free reshape).
    x = feat_nchw.reshape(B, Cin, HW).astype(jnp.float32)

    # Weights in tap-major rows: row = t*C + co, column = input channel.
    w1_all = jnp.transpose(w1.astype(jnp.float32), (2, 3, 0, 1)).reshape(9 * Cmid, Cin)
    w2_t = jnp.transpose(w2.astype(jnp.float32), (2, 3, 0, 1)).reshape(9, Cout, Cmid)
    w2_all = jnp.zeros((9, _COUT_PAD, Cmid), jnp.float32).at[:, :Cout, :].set(w2_t)
    w2_all = w2_all.reshape(9 * _COUT_PAD, Cmid)
    b1c = b1.astype(jnp.float32).reshape(Cmid, 1)
    b2c = jnp.zeros((_COUT_PAD, 1), jnp.float32).at[:Cout, 0].set(b2.astype(jnp.float32))

    S1, S2 = _selection_matrices(H, W)

    macs = B * (9 * Cmid * Cin * HW + 9 * Cmid * HW * HW
                + 9 * _COUT_PAD * Cmid * HW + 9 * _COUT_PAD * HW * 4 * HW)
    bytes_accessed = (B * Cin * HW * 4 + B * _COUT_PAD * 4 * HW * 4
                      + w1_all.size * 4 + w2_all.size * 4
                      + S1.size * 2 + S2.size * 2 + (b1c.size + b2c.size) * 4)

    out_flat = pl.pallas_call(
        _ref_head_kernel,
        out_shape=jax.ShapeDtypeStruct((B, _COUT_PAD, 4 * HW), jnp.float32),
        grid=(B,),
        in_specs=[
            pl.BlockSpec((1, Cin, HW), lambda b: (b, 0, 0)),
            pl.BlockSpec((9 * Cmid, Cin), lambda b: (0, 0)),
            pl.BlockSpec((Cmid, 1), lambda b: (0, 0)),
            pl.BlockSpec((9 * _COUT_PAD, Cmid), lambda b: (0, 0)),
            pl.BlockSpec((_COUT_PAD, 1), lambda b: (0, 0)),
            pl.BlockSpec((9, HW, HW), lambda b: (0, 0, 0)),
            pl.BlockSpec((9, HW, 4 * HW), lambda b: (0, 0, 0)),
        ],
        out_specs=pl.BlockSpec((1, _COUT_PAD, 4 * HW), lambda b: (b, 0, 0)),
        compiler_params=pltpu.CompilerParams(
            dimension_semantics=("parallel",)),
        cost_estimate=pl.CostEstimate(
            flops=2 * macs,
            transcendentals=B * _COUT_PAD * 4 * HW,
            bytes_accessed=bytes_accessed),
    )(x, w1_all, b1c, w2_all, b2c, S1, S2)

    # Drop the channel padding; free reshape to NCHW (no transpose).
    return out_flat[:, :Cout, :].reshape(B, Cout, 2 * H, 2 * W)


def init_ref_head_params(key):
    """Synthetic parameters in PyTorch-native layout (OIHW weights, (C,) biases)."""
    k1, k2, k3, k4 = jax.random.split(key, 4)
    return {
        "w1": jax.random.normal(k1, (64, 64, 3, 3), jnp.float32) * 0.05,
        "b1": jax.random.normal(k2, (64,), jnp.float32) * 0.05,
        "w2": jax.random.normal(k3, (3, 64, 3, 3), jnp.float32) * 0.05,
        "b2": jax.random.normal(k4, (3,), jnp.float32) * 0.05,
    }


def _reference_forward(feat_nchw, params):
    """Pure-JAX (lax.conv, HIGHEST precision) reference for validation."""
    x = feat_nchw.astype(jnp.float32)
    w1 = params["w1"].astype(jnp.float32)   # OIHW
    w2 = params["w2"].astype(jnp.float32)
    dn1 = jax.lax.conv_dimension_numbers(x.shape, w1.shape, ("NCHW", "OIHW", "NCHW"))
    y = jax.lax.conv_general_dilated(x, w1, (1, 1), ((1, 1), (1, 1)),
                                     dimension_numbers=dn1,
                                     precision=jax.lax.Precision.HIGHEST)
    y = jnp.maximum(y + params["b1"].reshape(1, -1, 1, 1), 0.0)
    y = jnp.repeat(jnp.repeat(y, 2, axis=2), 2, axis=3)
    dn2 = jax.lax.conv_dimension_numbers(y.shape, w2.shape, ("NCHW", "OIHW", "NCHW"))
    y = jax.lax.conv_general_dilated(y, w2, (1, 1), ((1, 1), (1, 1)),
                                     dimension_numbers=dn2,
                                     precision=jax.lax.Precision.HIGHEST)
    return jax.nn.sigmoid(y + params["b2"].reshape(1, -1, 1, 1))


if __name__ == "__main__":
    key = jax.random.PRNGKey(0)
    k_param, k_in = jax.random.split(key)

    params = init_ref_head_params(k_param)
    # REF_head hardcodes 64 input channels; small spatial size.
    feat = jax.random.normal(k_in, (2, 64, 8, 8), jnp.float32)

    out = jax.block_until_ready(ref_head_forward(feat, params))
    assert out.shape == (2, 3, 16, 16), out.shape

    ref = jax.block_until_ready(_reference_forward(feat, params))
    max_err = float(jnp.max(jnp.abs(out - ref)))
    assert max_err < 2e-4, max_err

    print("KERNEL_OK")
</pallas_src>

<mosaic_0001>
module attributes {stable_mosaic.version = 11 : i64} {
  func.func @_ref_head_kernel(%arg0: i32, %arg1: memref<1x64x64xf32, #tpu.memory_space<vmem>>, %arg2: memref<576x64xf32, #tpu.memory_space<vmem>>, %arg3: memref<64x1xf32, #tpu.memory_space<vmem>>, %arg4: memref<72x64xf32, #tpu.memory_space<vmem>>, %arg5: memref<8x1xf32, #tpu.memory_space<vmem>>, %arg6: memref<9x64x64xbf16, #tpu.memory_space<vmem>>, %arg7: memref<9x64x256xbf16, #tpu.memory_space<vmem>>, %arg8: memref<1x8x256xf32, #tpu.memory_space<vmem>>) attributes {dimension_semantics = [#tpu.dimension_semantics<parallel>], iteration_bounds = array<i64: 2>, scalar_prefetch = 0 : i64, scratch_operands = 0 : i64, tpu.core_type = #tpu.core_type<tc>, window_params = [{transform_indices = @transform_0, window_bounds = array<i64: 1, 64, 64>}, {pipeline_mode = #tpu.pipeline_mode<synchronous>, transform_indices = @transform_1, window_bounds = array<i64: 576, 64>}, {pipeline_mode = #tpu.pipeline_mode<synchronous>, transform_indices = @transform_2, window_bounds = array<i64: 64, 1>}, {pipeline_mode = #tpu.pipeline_mode<synchronous>, transform_indices = @transform_3, window_bounds = array<i64: 72, 64>}, {pipeline_mode = #tpu.pipeline_mode<synchronous>, transform_indices = @transform_4, window_bounds = array<i64: 8, 1>}, {pipeline_mode = #tpu.pipeline_mode<synchronous>, transform_indices = @transform_5, window_bounds = array<i64: 9, 64, 64>}, {pipeline_mode = #tpu.pipeline_mode<synchronous>, transform_indices = @transform_6, window_bounds = array<i64: 9, 64, 256>}, {transform_indices = @transform_7, window_bounds = array<i64: 1, 8, 256>}]} {
    %c0 = arith.constant 0 : index
    %c0_0 = arith.constant 0 : index
    %c0_1 = arith.constant 0 : index
    %0 = vector.load %arg1[%c0, %c0_0, %c0_1] : memref<1x64x64xf32, #tpu.memory_space<vmem>>, vector<1x64x64xf32>
    %1 = vector.shape_cast %0 : vector<1x64x64xf32> to vector<64x64xf32>
    %c0_2 = arith.constant 0 : index
    %c0_3 = arith.constant 0 : index
    %2 = vector.load %arg2[%c0_2, %c0_3] : memref<576x64xf32, #tpu.memory_space<vmem>>, vector<576x64xf32>
    %cst = arith.constant dense<0.000000e+00> : vector<576x64xf32>
    %3 = tpu.matmul %2, %1, %cst {dimension_numbers = #tpu.dot_dimension_numbers<[1], [0], [0], [1], [0, 0, 1, 1], [], []>} : vector<576x64xf32>, vector<64x64xf32>, vector<576x64xf32> -> vector<576x64xf32>
    %4 = vector.extract_strided_slice %3 {offsets = [0, 0], sizes = [64, 64], strides = [1, 1]} : vector<576x64xf32> to vector<64x64xf32>
    %c0_4 = arith.constant 0 : index
    %c0_5 = arith.constant 0 : index
    %c0_6 = arith.constant 0 : index
    %5 = vector.load %arg6[%c0_4, %c0_5, %c0_6] : memref<9x64x64xbf16, #tpu.memory_space<vmem>>, vector<1x64x64xbf16>
    %6 = vector.shape_cast %5 : vector<1x64x64xbf16> to vector<64x64xbf16>
    %7 = arith.extf %6 : vector<64x64xbf16> to vector<64x64xf32>
    %cst_7 = arith.constant dense<0.000000e+00> : vector<64x64xf32>
    %8 = tpu.matmul %4, %7, %cst_7 {dimension_numbers = #tpu.dot_dimension_numbers<[1], [0], [0], [1], [0, 0, 1, 1], [], []>} : vector<64x64xf32>, vector<64x64xf32>, vector<64x64xf32> -> vector<64x64xf32>
    %9 = vector.extract_strided_slice %3 {offsets = [64, 0], sizes = [64, 64], strides = [1, 1]} : vector<576x64xf32> to vector<64x64xf32>
    %c1 = arith.constant 1 : index
    %c0_8 = arith.constant 0 : index
    %c0_9 = arith.constant 0 : index
    %10 = vector.load %arg6[%c1, %c0_8, %c0_9] : memref<9x64x64xbf16, #tpu.memory_space<vmem>>, vector<1x64x64xbf16>
    %11 = vector.shape_cast %10 : vector<1x64x64xbf16> to vector<64x64xbf16>
    %12 = arith.extf %11 : vector<64x64xbf16> to vector<64x64xf32>
    %cst_10 = arith.constant dense<0.000000e+00> : vector<64x64xf32>
    %13 = tpu.matmul %9, %12, %cst_10 {dimension_numbers = #tpu.dot_dimension_numbers<[1], [0], [0], [1], [0, 0, 1, 1], [], []>} : vector<64x64xf32>, vector<64x64xf32>, vector<64x64xf32> -> vector<64x64xf32>
    %14 = arith.addf %8, %13 : vector<64x64xf32>
    %15 = vector.extract_strided_slice %3 {offsets = [128, 0], sizes = [64, 64], strides = [1, 1]} : vector<576x64xf32> to vector<64x64xf32>
    %c2 = arith.constant 2 : index
    %c0_11 = arith.constant 0 : index
    %c0_12 = arith.constant 0 : index
    %16 = vector.load %arg6[%c2, %c0_11, %c0_12] : memref<9x64x64xbf16, #tpu.memory_space<vmem>>, vector<1x64x64xbf16>
    %17 = vector.shape_cast %16 : vector<1x64x64xbf16> to vector<64x64xbf16>
    %18 = arith.extf %17 : vector<64x64xbf16> to vector<64x64xf32>
    %cst_13 = arith.constant dense<0.000000e+00> : vector<64x64xf32>
    %19 = tpu.matmul %15, %18, %cst_13 {dimension_numbers = #tpu.dot_dimension_numbers<[1], [0], [0], [1], [0, 0, 1, 1], [], []>} : vector<64x64xf32>, vector<64x64xf32>, vector<64x64xf32> -> vector<64x64xf32>
    %20 = arith.addf %14, %19 : vector<64x64xf32>
    %21 = vector.extract_strided_slice %3 {offsets = [192, 0], sizes = [64, 64], strides = [1, 1]} : vector<576x64xf32> to vector<64x64xf32>
    %c3 = arith.constant 3 : index
    %c0_14 = arith.constant 0 : index
    %c0_15 = arith.constant 0 : index
    %22 = vector.load %arg6[%c3, %c0_14, %c0_15] : memref<9x64x64xbf16, #tpu.memory_space<vmem>>, vector<1x64x64xbf16>
    %23 = vector.shape_cast %22 : vector<1x64x64xbf16> to vector<64x64xbf16>
    %24 = arith.extf %23 : vector<64x64xbf16> to vector<64x64xf32>
    %cst_16 = arith.constant dense<0.000000e+00> : vector<64x64xf32>
    %25 = tpu.matmul %21, %24, %cst_16 {dimension_numbers = #tpu.dot_dimension_numbers<[1], [0], [0], [1], [0, 0, 1, 1], [], []>} : vector<64x64xf32>, vector<64x64xf32>, vector<64x64xf32> -> vector<64x64xf32>
    %26 = arith.addf %20, %25 : vector<64x64xf32>
    %27 = vector.extract_strided_slice %3 {offsets = [256, 0], sizes = [64, 64], strides = [1, 1]} : vector<576x64xf32> to vector<64x64xf32>
    %c4 = arith.constant 4 : index
    %c0_17 = arith.constant 0 : index
    %c0_18 = arith.constant 0 : index
    %28 = vector.load %arg6[%c4, %c0_17, %c0_18] : memref<9x64x64xbf16, #tpu.memory_space<vmem>>, vector<1x64x64xbf16>
    %29 = vector.shape_cast %28 : vector<1x64x64xbf16> to vector<64x64xbf16>
    %30 = arith.extf %29 : vector<64x64xbf16> to vector<64x64xf32>
    %cst_19 = arith.constant dense<0.000000e+00> : vector<64x64xf32>
    %31 = tpu.matmul %27, %30, %cst_19 {dimension_numbers = #tpu.dot_dimension_numbers<[1], [0], [0], [1], [0, 0, 1, 1], [], []>} : vector<64x64xf32>, vector<64x64xf32>, vector<64x64xf32> -> vector<64x64xf32>
    %32 = arith.addf %26, %31 : vector<64x64xf32>
    %33 = vector.extract_strided_slice %3 {offsets = [320, 0], sizes = [64, 64], strides = [1, 1]} : vector<576x64xf32> to vector<64x64xf32>
    %c5 = arith.constant 5 : index
    %c0_20 = arith.constant 0 : index
    %c0_21 = arith.constant 0 : index
    %34 = vector.load %arg6[%c5, %c0_20, %c0_21] : memref<9x64x64xbf16, #tpu.memory_space<vmem>>, vector<1x64x64xbf16>
    %35 = vector.shape_cast %34 : vector<1x64x64xbf16> to vector<64x64xbf16>
    %36 = arith.extf %35 : vector<64x64xbf16> to vector<64x64xf32>
    %cst_22 = arith.constant dense<0.000000e+00> : vector<64x64xf32>
    %37 = tpu.matmul %33, %36, %cst_22 {dimension_numbers = #tpu.dot_dimension_numbers<[1], [0], [0], [1], [0, 0, 1, 1], [], []>} : vector<64x64xf32>, vector<64x64xf32>, vector<64x64xf32> -> vector<64x64xf32>
    %38 = arith.addf %32, %37 : vector<64x64xf32>
    %39 = vector.extract_strided_slice %3 {offsets = [384, 0], sizes = [64, 64], strides = [1, 1]} : vector<576x64xf32> to vector<64x64xf32>
    %c6 = arith.constant 6 : index
    %c0_23 = arith.constant 0 : index
    %c0_24 = arith.constant 0 : index
    %40 = vector.load %arg6[%c6, %c0_23, %c0_24] : memref<9x64x64xbf16, #tpu.memory_space<vmem>>, vector<1x64x64xbf16>
    %41 = vector.shape_cast %40 : vector<1x64x64xbf16> to vector<64x64xbf16>
    %42 = arith.extf %41 : vector<64x64xbf16> to vector<64x64xf32>
    %cst_25 = arith.constant dense<0.000000e+00> : vector<64x64xf32>
    %43 = tpu.matmul %39, %42, %cst_25 {dimension_numbers = #tpu.dot_dimension_numbers<[1], [0], [0], [1], [0, 0, 1, 1], [], []>} : vector<64x64xf32>, vector<64x64xf32>, vector<64x64xf32> -> vector<64x64xf32>
    %44 = arith.addf %38, %43 : vector<64x64xf32>
    %45 = vector.extract_strided_slice %3 {offsets = [448, 0], sizes = [64, 64], strides = [1, 1]} : vector<576x64xf32> to vector<64x64xf32>
    %c7 = arith.constant 7 : index
    %c0_26 = arith.constant 0 : index
    %c0_27 = arith.constant 0 : index
    %46 = vector.load %arg6[%c7, %c0_26, %c0_27] : memref<9x64x64xbf16, #tpu.memory_space<vmem>>, vector<1x64x64xbf16>
    %47 = vector.shape_cast %46 : vector<1x64x64xbf16> to vector<64x64xbf16>
    %48 = arith.extf %47 : vector<64x64xbf16> to vector<64x64xf32>
    %cst_28 = arith.constant dense<0.000000e+00> : vector<64x64xf32>
    %49 = tpu.matmul %45, %48, %cst_28 {dimension_numbers = #tpu.dot_dimension_numbers<[1], [0], [0], [1], [0, 0, 1, 1], [], []>} : vector<64x64xf32>, vector<64x64xf32>, vector<64x64xf32> -> vector<64x64xf32>
    %50 = arith.addf %44, %49 : vector<64x64xf32>
    %51 = vector.extract_strided_slice %3 {offsets = [512, 0], sizes = [64, 64], strides = [1, 1]} : vector<576x64xf32> to vector<64x64xf32>
    %c8 = arith.constant 8 : index
    %c0_29 = arith.constant 0 : index
    %c0_30 = arith.constant 0 : index
    %52 = vector.load %arg6[%c8, %c0_29, %c0_30] : memref<9x64x64xbf16, #tpu.memory_space<vmem>>, vector<1x64x64xbf16>
    %53 = vector.shape_cast %52 : vector<1x64x64xbf16> to vector<64x64xbf16>
    %54 = arith.extf %53 : vector<64x64xbf16> to vector<64x64xf32>
    %cst_31 = arith.constant dense<0.000000e+00> : vector<64x64xf32>
    %55 = tpu.matmul %51, %54, %cst_31 {dimension_numbers = #tpu.dot_dimension_numbers<[1], [0], [0], [1], [0, 0, 1, 1], [], []>} : vector<64x64xf32>, vector<64x64xf32>, vector<64x64xf32> -> vector<64x64xf32>
    %56 = arith.addf %50, %55 : vector<64x64xf32>
    %c0_32 = arith.constant 0 : index
    %c0_33 = arith.constant 0 : index
    %57 = vector.load %arg3[%c0_32, %c0_33] : memref<64x1xf32, #tpu.memory_space<vmem>>, vector<64x1xf32>
    %58 = vector.broadcast %57 : vector<64x1xf32> to vector<64x64xf32>
    %59 = arith.addf %56, %58 : vector<64x64xf32>
    %cst_34 = arith.constant 0.000000e+00 : f32
    %60 = vector.broadcast %cst_34 : f32 to vector<64x64xf32>
    %61 = arith.maximumf %59, %60 : vector<64x64xf32>
    %c0_35 = arith.constant 0 : index
    %c0_36 = arith.constant 0 : index
    %62 = vector.load %arg4[%c0_35, %c0_36] : memref<72x64xf32, #tpu.memory_space<vmem>>, vector<72x64xf32>
    %cst_37 = arith.constant dense<0.000000e+00> : vector<72x64xf32>
    %63 = tpu.matmul %62, %61, %cst_37 {dimension_numbers = #tpu.dot_dimension_numbers<[1], [0], [0], [1], [0, 0, 1, 1], [], []>} : vector<72x64xf32>, vector<64x64xf32>, vector<72x64xf32> -> vector<72x64xf32>
    %64 = vector.extract_strided_slice %63 {offsets = [0, 0], sizes = [8, 64], strides = [1, 1]} : vector<72x64xf32> to vector<8x64xf32>
    %c0_38 = arith.constant 0 : index
    %c0_39 = arith.constant 0 : index
    %c0_40 = arith.constant 0 : index
    %65 = vector.load %arg7[%c0_38, %c0_39, %c0_40] : memref<9x64x256xbf16, #tpu.memory_space<vmem>>, vector<1x64x256xbf16>
    %66 = vector.shape_cast %65 : vector<1x64x256xbf16> to vector<64x256xbf16>
    %67 = arith.extf %66 : vector<64x256xbf16> to vector<64x256xf32>
    %cst_41 = arith.constant dense<0.000000e+00> : vector<8x256xf32>
    %68 = tpu.matmul %64, %67, %cst_41 {dimension_numbers = #tpu.dot_dimension_numbers<[1], [0], [0], [1], [0, 0, 1, 1], [], []>} : vector<8x64xf32>, vector<64x256xf32>, vector<8x256xf32> -> vector<8x256xf32>
    %69 = vector.extract_strided_slice %63 {offsets = [8, 0], sizes = [8, 64], strides = [1, 1]} : vector<72x64xf32> to vector<8x64xf32>
    %c1_42 = arith.constant 1 : index
    %c0_43 = arith.constant 0 : index
    %c0_44 = arith.constant 0 : index
    %70 = vector.load %arg7[%c1_42, %c0_43, %c0_44] : memref<9x64x256xbf16, #tpu.memory_space<vmem>>, vector<1x64x256xbf16>
    %71 = vector.shape_cast %70 : vector<1x64x256xbf16> to vector<64x256xbf16>
    %72 = arith.extf %71 : vector<64x256xbf16> to vector<64x256xf32>
    %cst_45 = arith.constant dense<0.000000e+00> : vector<8x256xf32>
    %73 = tpu.matmul %69, %72, %cst_45 {dimension_numbers = #tpu.dot_dimension_numbers<[1], [0], [0], [1], [0, 0, 1, 1], [], []>} : vector<8x64xf32>, vector<64x256xf32>, vector<8x256xf32> -> vector<8x256xf32>
    %74 = arith.addf %68, %73 : vector<8x256xf32>
    %75 = vector.extract_strided_slice %63 {offsets = [16, 0], sizes = [8, 64], strides = [1, 1]} : vector<72x64xf32> to vector<8x64xf32>
    %c2_46 = arith.constant 2 : index
    %c0_47 = arith.constant 0 : index
    %c0_48 = arith.constant 0 : index
    %76 = vector.load %arg7[%c2_46, %c0_47, %c0_48] : memref<9x64x256xbf16, #tpu.memory_space<vmem>>, vector<1x64x256xbf16>
    %77 = vector.shape_cast %76 : vector<1x64x256xbf16> to vector<64x256xbf16>
    %78 = arith.extf %77 : vector<64x256xbf16> to vector<64x256xf32>
    %cst_49 = arith.constant dense<0.000000e+00> : vector<8x256xf32>
    %79 = tpu.matmul %75, %78, %cst_49 {dimension_numbers = #tpu.dot_dimension_numbers<[1], [0], [0], [1], [0, 0, 1, 1], [], []>} : vector<8x64xf32>, vector<64x256xf32>, vector<8x256xf32> -> vector<8x256xf32>
    %80 = arith.addf %74, %79 : vector<8x256xf32>
    %81 = vector.extract_strided_slice %63 {offsets = [24, 0], sizes = [8, 64], strides = [1, 1]} : vector<72x64xf32> to vector<8x64xf32>
    %c3_50 = arith.constant 3 : index
    %c0_51 = arith.constant 0 : index
    %c0_52 = arith.constant 0 : index
    %82 = vector.load %arg7[%c3_50, %c0_51, %c0_52] : memref<9x64x256xbf16, #tpu.memory_space<vmem>>, vector<1x64x256xbf16>
    %83 = vector.shape_cast %82 : vector<1x64x256xbf16> to vector<64x256xbf16>
    %84 = arith.extf %83 : vector<64x256xbf16> to vector<64x256xf32>
    %cst_53 = arith.constant dense<0.000000e+00> : vector<8x256xf32>
    %85 = tpu.matmul %81, %84, %cst_53 {dimension_numbers = #tpu.dot_dimension_numbers<[1], [0], [0], [1], [0, 0, 1, 1], [], []>} : vector<8x64xf32>, vector<64x256xf32>, vector<8x256xf32> -> vector<8x256xf32>
    %86 = arith.addf %80, %85 : vector<8x256xf32>
    %87 = vector.extract_strided_slice %63 {offsets = [32, 0], sizes = [8, 64], strides = [1, 1]} : vector<72x64xf32> to vector<8x64xf32>
    %c4_54 = arith.constant 4 : index
    %c0_55 = arith.constant 0 : index
    %c0_56 = arith.constant 0 : index
    %88 = vector.load %arg7[%c4_54, %c0_55, %c0_56] : memref<9x64x256xbf16, #tpu.memory_space<vmem>>, vector<1x64x256xbf16>
    %89 = vector.shape_cast %88 : vector<1x64x256xbf16> to vector<64x256xbf16>
    %90 = arith.extf %89 : vector<64x256xbf16> to vector<64x256xf32>
    %cst_57 = arith.constant dense<0.000000e+00> : vector<8x256xf32>
    %91 = tpu.matmul %87, %90, %cst_57 {dimension_numbers = #tpu.dot_dimension_numbers<[1], [0], [0], [1], [0, 0, 1, 1], [], []>} : vector<8x64xf32>, vector<64x256xf32>, vector<8x256xf32> -> vector<8x256xf32>
    %92 = arith.addf %86, %91 : vector<8x256xf32>
    %93 = vector.extract_strided_slice %63 {offsets = [40, 0], sizes = [8, 64], strides = [1, 1]} : vector<72x64xf32> to vector<8x64xf32>
    %c5_58 = arith.constant 5 : index
    %c0_59 = arith.constant 0 : index
    %c0_60 = arith.constant 0 : index
    %94 = vector.load %arg7[%c5_58, %c0_59, %c0_60] : memref<9x64x256xbf16, #tpu.memory_space<vmem>>, vector<1x64x256xbf16>
    %95 = vector.shape_cast %94 : vector<1x64x256xbf16> to vector<64x256xbf16>
    %96 = arith.extf %95 : vector<64x256xbf16> to vector<64x256xf32>
    %cst_61 = arith.constant dense<0.000000e+00> : vector<8x256xf32>
    %97 = tpu.matmul %93, %96, %cst_61 {dimension_numbers = #tpu.dot_dimension_numbers<[1], [0], [0], [1], [0, 0, 1, 1], [], []>} : vector<8x64xf32>, vector<64x256xf32>, vector<8x256xf32> -> vector<8x256xf32>
    %98 = arith.addf %92, %97 : vector<8x256xf32>
    %99 = vector.extract_strided_slice %63 {offsets = [48, 0], sizes = [8, 64], strides = [1, 1]} : vector<72x64xf32> to vector<8x64xf32>
    %c6_62 = arith.constant 6 : index
    %c0_63 = arith.constant 0 : index
    %c0_64 = arith.constant 0 : index
    %100 = vector.load %arg7[%c6_62, %c0_63, %c0_64] : memref<9x64x256xbf16, #tpu.memory_space<vmem>>, vector<1x64x256xbf16>
    %101 = vector.shape_cast %100 : vector<1x64x256xbf16> to vector<64x256xbf16>
    %102 = arith.extf %101 : vector<64x256xbf16> to vector<64x256xf32>
    %cst_65 = arith.constant dense<0.000000e+00> : vector<8x256xf32>
    %103 = tpu.matmul %99, %102, %cst_65 {dimension_numbers = #tpu.dot_dimension_numbers<[1], [0], [0], [1], [0, 0, 1, 1], [], []>} : vector<8x64xf32>, vector<64x256xf32>, vector<8x256xf32> -> vector<8x256xf32>
    %104 = arith.addf %98, %103 : vector<8x256xf32>
    %105 = vector.extract_strided_slice %63 {offsets = [56, 0], sizes = [8, 64], strides = [1, 1]} : vector<72x64xf32> to vector<8x64xf32>
    %c7_66 = arith.constant 7 : index
    %c0_67 = arith.constant 0 : index
    %c0_68 = arith.constant 0 : index
    %106 = vector.load %arg7[%c7_66, %c0_67, %c0_68] : memref<9x64x256xbf16, #tpu.memory_space<vmem>>, vector<1x64x256xbf16>
    %107 = vector.shape_cast %106 : vector<1x64x256xbf16> to vector<64x256xbf16>
    %108 = arith.extf %107 : vector<64x256xbf16> to vector<64x256xf32>
    %cst_69 = arith.constant dense<0.000000e+00> : vector<8x256xf32>
    %109 = tpu.matmul %105, %108, %cst_69 {dimension_numbers = #tpu.dot_dimension_numbers<[1], [0], [0], [1], [0, 0, 1, 1], [], []>} : vector<8x64xf32>, vector<64x256xf32>, vector<8x256xf32> -> vector<8x256xf32>
    %110 = arith.addf %104, %109 : vector<8x256xf32>
    %111 = vector.extract_strided_slice %63 {offsets = [64, 0], sizes = [8, 64], strides = [1, 1]} : vector<72x64xf32> to vector<8x64xf32>
    %c8_70 = arith.constant 8 : index
    %c0_71 = arith.constant 0 : index
    %c0_72 = arith.constant 0 : index
    %112 = vector.load %arg7[%c8_70, %c0_71, %c0_72] : memref<9x64x256xbf16, #tpu.memory_space<vmem>>, vector<1x64x256xbf16>
    %113 = vector.shape_cast %112 : vector<1x64x256xbf16> to vector<64x256xbf16>
    %114 = arith.extf %113 : vector<64x256xbf16> to vector<64x256xf32>
    %cst_73 = arith.constant dense<0.000000e+00> : vector<8x256xf32>
    %115 = tpu.matmul %111, %114, %cst_73 {dimension_numbers = #tpu.dot_dimension_numbers<[1], [0], [0], [1], [0, 0, 1, 1], [], []>} : vector<8x64xf32>, vector<64x256xf32>, vector<8x256xf32> -> vector<8x256xf32>
    %116 = arith.addf %110, %115 : vector<8x256xf32>
    %c0_74 = arith.constant 0 : index
    %c0_75 = arith.constant 0 : index
    %117 = vector.load %arg5[%c0_74, %c0_75] : memref<8x1xf32, #tpu.memory_space<vmem>>, vector<8x1xf32>
    %118 = vector.broadcast %117 : vector<8x1xf32> to vector<8x256xf32>
    %119 = arith.addf %116, %118 : vector<8x256xf32>
    %120 = math.absf %119 : vector<8x256xf32>
    %cst_76 = arith.constant 0.000000e+00 : f32
    %121 = vector.broadcast %cst_76 : f32 to vector<8x256xf32>
    %122 = arith.subf %121, %120 : vector<8x256xf32>
    %123 = math.exp %122 : vector<8x256xf32>
    %cst_77 = arith.constant 1.000000e+00 : f32
    %124 = vector.broadcast %cst_77 : f32 to vector<8x256xf32>
    %125 = arith.addf %124, %123 : vector<8x256xf32>
    %126 = tpu.reciprocal %125 : vector<8x256xf32> -> vector<8x256xf32>
    %cst_78 = arith.constant 0.000000e+00 : f32
    %127 = vector.broadcast %cst_78 : f32 to vector<8x256xf32>
    %128 = arith.cmpf oge, %119, %127 : vector<8x256xf32>
    %129 = arith.mulf %123, %126 : vector<8x256xf32>
    %130 = arith.select %128, %126, %129 : vector<8x256xi1>, vector<8x256xf32>
    %c0_79 = arith.constant 0 : index
    %c0_80 = arith.constant 0 : index
    %c0_81 = arith.constant 0 : index
    %131 = vector.load %arg8[%c0_79, %c0_80, %c0_81] : memref<1x8x256xf32, #tpu.memory_space<vmem>>, vector<1x8x256xf32>
    %132 = vector.shape_cast %131 : vector<1x8x256xf32> to vector<8x256xf32>
    %133 = vector.shape_cast %130 : vector<8x256xf32> to vector<1x8x256xf32>
    tpu.vector_store %arg8[%c0_79, %c0_80, %c0_81], %133 {strides = array<i32>} : memref<1x8x256xf32, #tpu.memory_space<vmem>>, vector<1x8x256xf32>,
    return
  }
  func.func @transform_0(%arg0: i32) -> (i32, i32, i32) {
    %c0_i32 = arith.constant 0 : i32
    %c0_i32_0 = arith.constant 0 : i32
    %c0_i32_1 = arith.constant 0 : i32
    return %arg0, %c0_i32, %c0_i32_0 : i32, i32, i32
  }
  func.func @transform_1(%arg0: i32) -> (i32, i32) {
    %c0_i32 = arith.constant 0 : i32
    %c0_i32_0 = arith.constant 0 : i32
    %c0_i32_1 = arith.constant 0 : i32
    return %c0_i32, %c0_i32_0 : i32, i32
  }
  func.func @transform_2(%arg0: i32) -> (i32, i32) {
    %c0_i32 = arith.constant 0 : i32
    %c0_i32_0 = arith.constant 0 : i32
    %c0_i32_1 = arith.constant 0 : i32
    return %c0_i32, %c0_i32_0 : i32, i32
  }
  func.func @transform_3(%arg0: i32) -> (i32, i32) {
    %c0_i32 = arith.constant 0 : i32
    %c0_i32_0 = arith.constant 0 : i32
    %c0_i32_1 = arith.constant 0 : i32
    return %c0_i32, %c0_i32_0 : i32, i32
  }
  func.func @transform_4(%arg0: i32) -> (i32, i32) {
    %c0_i32 = arith.constant 0 : i32
    %c0_i32_0 = arith.constant 0 : i32
    %c0_i32_1 = arith.constant 0 : i32
    return %c0_i32, %c0_i32_0 : i32, i32
  }
  func.func @transform_5(%arg0: i32) -> (i32, i32, i32) {
    %c0_i32 = arith.constant 0 : i32
    %c0_i32_0 = arith.constant 0 : i32
    %c0_i32_1 = arith.constant 0 : i32
    %c0_i32_2 = arith.constant 0 : i32
    return %c0_i32, %c0_i32_0, %c0_i32_1 : i32, i32, i32
  }
  func.func @transform_6(%arg0: i32) -> (i32, i32, i32) {
    %c0_i32 = arith.constant 0 : i32
    %c0_i32_0 = arith.constant 0 : i32
    %c0_i32_1 = arith.constant 0 : i32
    %c0_i32_2 = arith.constant 0 : i32
    return %c0_i32, %c0_i32_0, %c0_i32_1 : i32, i32, i32
  }
  func.func @transform_7(%arg0: i32) -> (i32, i32, i32) {
    %c0_i32 = arith.constant 0 : i32
    %c0_i32_0 = arith.constant 0 : i32
    %c0_i32_1 = arith.constant 0 : i32
    return %arg0, %c0_i32, %c0_i32_0 : i32, i32, i32
  }
}

</mosaic_0001>

<llo_original>
// kernel: ref_head_forward.1
$region0: #{ref_head_forward.1}
  #allocation0 [shape = 'u32[]', space=smem, size = 0x4, offset = 0x4, fixed_abs, tag = 'smem constant byte address 0x4 - core index']
  #allocation1 [shape = 'u32[144,128]{1,0:T(1,128)}', space=vmem, size = 0x12000, scoped, tag = 'internal scratch']
  %s0 = inlined_call_operand.vmem [shape: f32[2,64,64], index: 0, kind: input, shape index: {}]
  %s1 = inlined_call_operand.vmem [shape: f32[576,64], index: 1, kind: input, shape index: {}]
  %s2 = inlined_call_operand.vmem [shape: f32[64,1], index: 2, kind: input, shape index: {}]
  %s3 = inlined_call_operand.vmem [shape: f32[72,64], index: 3, kind: input, shape index: {}]
  %s4 = inlined_call_operand.vmem [shape: f32[8,1], index: 4, kind: input, shape index: {}]
  %s5 = inlined_call_operand.vmem [shape: bf16[9,64,64], index: 5, kind: input, shape index: {}]
  %s6 = inlined_call_operand.vmem [shape: bf16[9,64,256], index: 6, kind: input, shape index: {}]
  %s7 = inlined_call_operand.vmem [shape: f32[2,8,256], index: 7, kind: output, shape index: {}]
  %s8 = sld [smem:[#allocation0]]
  $region61: #{ref_head_forward.1} parent=0
    _
  %s10 = ssub.s32 1, %s8
  %s11 = scalar_select 0, %s10, %s8
  loop: start=0, step=1, limit=4
  $region2: #{ref_head_forward.1} parent=0 // loop_pre_header
    _
  $region3: #{ref_head_forward.1} parent=0 // loop_header
    %s13 = sphi 0, %s17
    %p14 = scmp.ge.s32.totalorder %s13, 4
    %s23 = sphi 0, %s25
    %s26 = sphi 0, %s23
    %s27 = sphi 0, %s26
    %s43 = sphi 0, %s27
    %s47 = sphi 0, %s47
    %s49 = sphi 0, %s47
    %s50 = sphi 0, %s49
    %s64 = sphi 0, %s50
    %s68 = sphi 0, %s68
    %s70 = sphi 0, %s68
    %s71 = sphi 0, %s70
    %s85 = sphi 0, %s71
    %s89 = sphi 0, %s89
    %s91 = sphi 0, %s89
    %s92 = sphi 0, %s91
    %s106 = sphi 0, %s92
    %s110 = sphi 0, %s110
    %s112 = sphi 0, %s110
    %s113 = sphi 0, %s112
    %s127 = sphi 0, %s113
    %s131 = sphi 0, %s131
    %s133 = sphi 0, %s131
    %s134 = sphi 0, %s133
    %s148 = sphi 0, %s134
    %s152 = sphi 0, %s152
    %s154 = sphi 0, %s152
    %s155 = sphi 0, %s154
    %s169 = sphi 0, %s155
    %s175 = sphi 0, %s177
    %s178 = sphi 0, %s175
    %s179 = sphi 0, %s178
    %s195 = sphi 0, %s179
  $region4: #{ref_head_forward.1} parent=0 // loop_header_branch
    %16 = sbr.rel (%p14) target = $region8
  $region5: #{ref_head_forward.1} parent=0 // loop_body
    %s18 = ssub.s32 %s13, 1
    %s19 = ssub.s32 %s13, 2
    %s20 = sadd.s32 %s13, 1
    %s21 = ssub.s32 %s13, %s20
    %p22 = scmp.eq.s32.totalorder %s21, 0
    %s24 = sadd.s32 %s23, 1
    %s25 = scalar_select %p22, %s23, %s24
    %p28 = pneg %p22
    %p29 = scmp.eq.s32.totalorder %s13, 1
    %p30 = por %p28, %p29
    %p31 = scmp.ne.s32.totalorder %s23, %s26
    %p32 = scmp.eq.s32.totalorder %s13, 0
    %p33 = por %p31, %p32
    %p34 = scmp.ne.s32.totalorder %s23, %s26
    %p35 = scmp.eq.s32.totalorder %s18, 1
    %p36 = por %p34, %p35
    %p37 = scmp.ne.s32.totalorder %s26, %s27
    %p38 = scmp.eq.s32.totalorder %s18, 0
    %p39 = por %p37, %p38
    %p40 = scmp.ne.s32.totalorder %s26, %s27
    %p41 = scmp.eq.s32.totalorder %s19, 1
    %p42 = por %p40, %p41
    %p44 = scmp.ne.s32.totalorder %s27, %s43
    %p45 = scmp.eq.s32.totalorder %s19, 0
    %p46 = por %p44, %p45
    %s48 = sadd.s32 %s47, 1
    %p51 = scmp.eq.s32.totalorder %s13, 1
    %p52 = scmp.ne.s32.totalorder %s47, %s49
    %p53 = scmp.eq.s32.totalorder %s13, 0
    %p54 = por %p52, %p53
    %p55 = scmp.ne.s32.totalorder %s47, %s49
    %p56 = scmp.eq.s32.totalorder %s18, 1
    %p57 = por %p55, %p56
    %p58 = scmp.ne.s32.totalorder %s49, %s50
    %p59 = scmp.eq.s32.totalorder %s18, 0
    %p60 = por %p58, %p59
    %p61 = scmp.ne.s32.totalorder %s49, %s50
    %p62 = scmp.eq.s32.totalorder %s19, 1
    %p63 = por %p61, %p62
    %p65 = scmp.ne.s32.totalorder %s50, %s64
    %p66 = scmp.eq.s32.totalorder %s19, 0
    %p67 = por %p65, %p66
    %s69 = sadd.s32 %s68, 1
    %p72 = scmp.eq.s32.totalorder %s13, 1
    %p73 = scmp.ne.s32.totalorder %s68, %s70
    %p74 = scmp.eq.s32.totalorder %s13, 0
    %p75 = por %p73, %p74
    %p76 = scmp.ne.s32.totalorder %s68, %s70
    %p77 = scmp.eq.s32.totalorder %s18, 1
    %p78 = por %p76, %p77
    %p79 = scmp.ne.s32.totalorder %s70, %s71
    %p80 = scmp.eq.s32.totalorder %s18, 0
    %p81 = por %p79, %p80
    %p82 = scmp.ne.s32.totalorder %s70, %s71
    %p83 = scmp.eq.s32.totalorder %s19, 1
    %p84 = por %p82, %p83
    %p86 = scmp.ne.s32.totalorder %s71, %s85
    %p87 = scmp.eq.s32.totalorder %s19, 0
    %p88 = por %p86, %p87
    %s90 = sadd.s32 %s89, 1
    %p93 = scmp.eq.s32.totalorder %s13, 1
    %p94 = scmp.ne.s32.totalorder %s89, %s91
    %p95 = scmp.eq.s32.totalorder %s13, 0
    %p96 = por %p94, %p95
    %p97 = scmp.ne.s32.totalorder %s89, %s91
    %p98 = scmp.eq.s32.totalorder %s18, 1
    %p99 = por %p97, %p98
    %p100 = scmp.ne.s32.totalorder %s91, %s92
    %p101 = scmp.eq.s32.totalorder %s18, 0
    %p102 = por %p100, %p101
    %p103 = scmp.ne.s32.totalorder %s91, %s92
    %p104 = scmp.eq.s32.totalorder %s19, 1
    %p105 = por %p103, %p104
    %p107 = scmp.ne.s32.totalorder %s92, %s106
    %p108 = scmp.eq.s32.totalorder %s19, 0
    %p109 = por %p107, %p108
    %s111 = sadd.s32 %s110, 1
    %p114 = scmp.eq.s32.totalorder %s13, 1
    %p115 = scmp.ne.s32.totalorder %s110, %s112
    %p116 = scmp.eq.s32.totalorder %s13, 0
    %p117 = por %p115, %p116
    %p118 = scmp.ne.s32.totalorder %s110, %s112
    %p119 = scmp.eq.s32.totalorder %s18, 1
    %p120 = por %p118, %p119
    %p121 = scmp.ne.s32.totalorder %s112, %s113
    %p122 = scmp.eq.s32.totalorder %s18, 0
    %p123 = por %p121, %p122
    %p124 = scmp.ne.s32.totalorder %s112, %s113
    %p125 = scmp.eq.s32.totalorder %s19, 1
    %p126 = por %p124, %p125
    %p128 = scmp.ne.s32.totalorder %s113, %s127
    %p129 = scmp.eq.s32.totalorder %s19, 0
    %p130 = por %p128, %p129
    %s132 = sadd.s32 %s131, 1
    %p135 = scmp.eq.s32.totalorder %s13, 1
    %p136 = scmp.ne.s32.totalorder %s131, %s133
    %p137 = scmp.eq.s32.totalorder %s13, 0
    %p138 = por %p136, %p137
    %p139 = scmp.ne.s32.totalorder %s131, %s133
    %p140 = scmp.eq.s32.totalorder %s18, 1
    %p141 = por %p139, %p140
    %p142 = scmp.ne.s32.totalorder %s133, %s134
    %p143 = scmp.eq.s32.totalorder %s18, 0
    %p144 = por %p142, %p143
    %p145 = scmp.ne.s32.totalorder %s133, %s134
    %p146 = scmp.eq.s32.totalorder %s19, 1
    %p147 = por %p145, %p146
    %p149 = scmp.ne.s32.totalorder %s134, %s148
    %p150 = scmp.eq.s32.totalorder %s19, 0
    %p151 = por %p149, %p150
    %s153 = sadd.s32 %s152, 1
    %p156 = scmp.eq.s32.totalorder %s13, 1
    %p157 = scmp.ne.s32.totalorder %s152, %s154
    %p158 = scmp.eq.s32.totalorder %s13, 0
    %p159 = por %p157, %p158
    %p160 = scmp.ne.s32.totalorder %s152, %s154
    %p161 = scmp.eq.s32.totalorder %s18, 1
    %p162 = por %p160, %p161
    %p163 = scmp.ne.s32.totalorder %s154, %s155
    %p164 = scmp.eq.s32.totalorder %s18, 0
    %p165 = por %p163, %p164
    %p166 = scmp.ne.s32.totalorder %s154, %s155
    %p167 = scmp.eq.s32.totalorder %s19, 1
    %p168 = por %p166, %p167
    %p170 = scmp.ne.s32.totalorder %s155, %s169
    %p171 = scmp.eq.s32.totalorder %s19, 0
    %p172 = por %p170, %p171
    %s173 = ssub.s32 %s13, %s20
    %p174 = scmp.eq.s32.totalorder %s173, 0
    %s176 = sadd.s32 %s175, 1
    %s177 = scalar_select %p174, %s175, %s176
    %p180 = pneg %p174
    %p181 = scmp.eq.s32.totalorder %s13, 1
    %p182 = por %p180, %p181
    %p183 = scmp.ne.s32.totalorder %s175, %s178
    %p184 = scmp.eq.s32.totalorder %s13, 0
    %p185 = por %p183, %p184
    %p186 = scmp.ne.s32.totalorder %s175, %s178
    %p187 = scmp.eq.s32.totalorder %s18, 1
    %p188 = por %p186, %p187
    %p189 = scmp.ne.s32.totalorder %s178, %s179
    %p190 = scmp.eq.s32.totalorder %s18, 0
    %p191 = por %p189, %p190
    %p192 = scmp.ne.s32.totalorder %s178, %s179
    %p193 = scmp.eq.s32.totalorder %s19, 1
    %p194 = por %p192, %p193
    %p196 = scmp.ne.s32.totalorder %s179, %s195
    %p197 = scmp.eq.s32.totalorder %s19, 0
    %p198 = por %p196, %p197
    %p199 = scmp.le.s32.totalorder 1, %s13
    %p200 = scmp.lt.s32.totalorder %s13, 3
    %p201 = pnand %p199, %p200
    %p202 = pneg %p201
    // Predicated region
    $region9: #{ref_head_forward.1} parent=5 // pred_check
      _
    $region10: #{ref_head_forward.1} parent=5 // pred_check_branch
      %204 = sbr.rel (%p201) target = $region12
    $region11: #{ref_head_forward.1} parent=5 // pred_region
      %s205 = ssub.s32 %s13, 1
      // Predicated region
      $region13: #{ref_head_forward.1} parent=11 // pred_check
        %p206 = pneg %p60
      $region14: #{ref_head_forward.1} parent=11 // pred_check_branch
        %208 = sbr.rel (%p206) target = $region16
      $region15: #{ref_head_forward.1} parent=11 // pred_region
        _
      $region16: #{ref_head_forward.1} parent=11 // pred_fallthru
        _
      // Predicated region
      $region17: #{ref_head_forward.1} parent=11 // pred_check
        %p209 = pneg %p81
      $region18: #{ref_head_forward.1} parent=11 // pred_check_branch
        %211 = sbr.rel (%p209) target = $region20
      $region19: #{ref_head_forward.1} parent=11 // pred_region
        _
      $region20: #{ref_head_forward.1} parent=11 // pred_fallthru
        _
      // Predicated region
      $region21: #{ref_head_forward.1} parent=11 // pred_check
        %p212 = pneg %p102
      $region22: #{ref_head_forward.1} parent=11 // pred_check_branch
        %214 = sbr.rel (%p212) target = $region24
      $region23: #{ref_head_forward.1} parent=11 // pred_region
        _
      $region24: #{ref_head_forward.1} parent=11 // pred_fallthru
        _
      // Predicated region
      $region25: #{ref_head_forward.1} parent=11 // pred_check
        %p215 = pneg %p123
      $region26: #{ref_head_forward.1} parent=11 // pred_check_branch
        %217 = sbr.rel (%p215) target = $region28
      $region27: #{ref_head_forward.1} parent=11 // pred_region
        _
      $region28: #{ref_head_forward.1} parent=11 // pred_fallthru
        _
      // Predicated region
      $region29: #{ref_head_forward.1} parent=11 // pred_check
        %p218 = pneg %p144
      $region30: #{ref_head_forward.1} parent=11 // pred_check_branch
        %220 = sbr.rel (%p218) target = $region32
      $region31: #{ref_head_forward.1} parent=11 // pred_region
        _
      $region32: #{ref_head_forward.1} parent=11 // pred_fallthru
        _
      // Predicated region
      $region33: #{ref_head_forward.1} parent=11 // pred_check
        %p221 = pneg %p165
      $region34: #{ref_head_forward.1} parent=11 // pred_check_branch
        %223 = sbr.rel (%p221) target = $region36
      $region35: #{ref_head_forward.1} parent=11 // pred_region
        _
      $region36: #{ref_head_forward.1} parent=11 // pred_fallthru
        _
    $region12: #{ref_head_forward.1} parent=5 // pred_fallthru
      _
    %p224 = scmp.lt.s32.totalorder %s13, 2
    // Predicated region
    $region37: #{ref_head_forward.1} parent=5 // pred_check
      %p225 = pneg %p224
    $region38: #{ref_head_forward.1} parent=5 // pred_check_branch
      %227 = sbr.rel (%p225) target = $region40
    $region39: #{ref_head_forward.1} parent=5 // pred_region
      // Predicated region
      $region41: #{ref_head_forward.1} parent=39 // pred_check
        %p228 = pneg %p33
      $region42: #{ref_head_forward.1} parent=39 // pred_check_branch
        %230 = sbr.rel (%p228) target = $region44
      $region43: #{ref_head_forward.1} parent=39 // pred_region
        %p231 = scmp.lt.s32.totalorder %s13, 1
        %s232 = scalar_select %p231, %s13, 1
        %s233 = smul.addr %s232, 8
        %s234 = smul.addr %s233, 8
        %s235 = scalar_lea.vmem %s0, %s234
      $region44: #{ref_head_forward.1} parent=39 // pred_fallthru
        _
    $region40: #{ref_head_forward.1} parent=5 // pred_fallthru
      _
    %p236 = scmp.le.s32.totalorder 1, %s13
    %p237 = scmp.lt.s32.totalorder %s13, 3
    %p238 = pnand %p236, %p237
    %p239 = pneg %p238
    // Predicated region
    $region45: #{ref_head_forward.1} parent=5 // pred_check
      _
    $region46: #{ref_head_forward.1} parent=5 // pred_check_branch
      %241 = sbr.rel (%p238) target = $region48
    $region47: #{ref_head_forward.1} parent=5 // pred_region
      %s242 = ssub.s32 %s13, 1
      %p243 = scmp.lt.s32.totalorder %s18, 1
      %s244 = scalar_select %p243, %s18, 1
      %s245 = smul.addr %s244, 8
      %s246 = smul.addr %s245, 8
      %s247 = scalar_lea.vmem %s0, %s246
      %p248 = pneg %p39
      %p249 = pneg %p36
      %p250 = pneg %p60
      %p251 = pneg %p57
      %p252 = pneg %p81
      %p253 = pneg %p78
      %p254 = pneg %p102
      %p255 = pneg %p99
      %p256 = pneg %p123
      %p257 = pneg %p120
      %p258 = pneg %p144
      %p259 = pneg %p141
      %p260 = pneg %p165
      %p261 = pneg %p162
      %p262 = pneg %p191
      %p263 = pneg %p188
      %p264 = scmp.lt.s32.totalorder %s18, 1
      %s265 = scalar_select %p264, %s18, 1
      %s266 = smul.addr %s265, 2
      %s267 = smul.addr %s266, 8
      %s268 = scalar_lea.vmem %s7, %s267
      %p269 = scmp.lt.s32.totalorder %s18, 1
      %s270 = scalar_select %p269, %s18, 1
      %s271 = smul.addr %s270, 8
      %s272 = smul.addr %s271, 8
      %s273 = scalar_lea.vmem %s0, %s272
      %p274 = scmp.lt.s32.totalorder %s18, 1
      %s275 = scalar_select %p274, %s18, 1
      %s276 = smul.addr %s275, 2
      %s277 = smul.addr %s276, 8
      %s278 = scalar_lea.vmem %s7, %s277
      %v279 = vld [vmem:[%s273] sm:$0xff]
      %v280 = vld [vmem:[%s273 + $0x8] sm:$0xff]
      %v281 = vld [vmem:[%s273 + $0x10] sm:$0xff]
      %v282 = vld [vmem:[%s273 + $0x18] sm:$0xff]
      %v283 = vld [vmem:[%s273 + $0x20] sm:$0xff]
      %v284 = vld [vmem:[%s273 + $0x28] sm:$0xff]
      %v285 = vld [vmem:[%s273 + $0x30] sm:$0xff]
      %v286 = vld [vmem:[%s273 + $0x38] sm:$0xff]
      %v287 = vld [vmem:[%s1] sm:$0xff]
      %v288 = vld [vmem:[%s1 + $0x8] sm:$0xff]
      %v289 = vld [vmem:[%s1 + $0x10] sm:$0xff]
      %v290 = vld [vmem:[%s1 + $0x18] sm:$0xff]
      %v291 = vld [vmem:[%s1 + $0x20] sm:$0xff]
      %v292 = vld [vmem:[%s1 + $0x28] sm:$0xff]
      %v293 = vld [vmem:[%s1 + $0x30] sm:$0xff]
      %v294 = vld [vmem:[%s1 + $0x38] sm:$0xff]
      %v295 = vld [vmem:[%s1 + $0x40] sm:$0xff]
      %v296 = vld [vmem:[%s1 + $0x48] sm:$0xff]
      %v297 = vld [vmem:[%s1 + $0x50] sm:$0xff]
      %v298 = vld [vmem:[%s1 + $0x58] sm:$0xff]
      %v299 = vld [vmem:[%s1 + $0x60] sm:$0xff]
      %v300 = vld [vmem:[%s1 + $0x68] sm:$0xff]
      %v301 = vld [vmem:[%s1 + $0x70] sm:$0xff]
      %v302 = vld [vmem:[%s1 + $0x78] sm:$0xff]
      %v303 = vld [vmem:[%s1 + $0x80] sm:$0xff]
      %v304 = vld [vmem:[%s1 + $0x88] sm:$0xff]
      %v305 = vld [vmem:[%s1 + $0x90] sm:$0xff]
      %v306 = vld [vmem:[%s1 + $0x98] sm:$0xff]
      %v307 = vld [vmem:[%s1 + $0xa0] sm:$0xff]
      %v308 = vld [vmem:[%s1 + $0xa8] sm:$0xff]
      %v309 = vld [vmem:[%s1 + $0xb0] sm:$0xff]
      %v310 = vld [vmem:[%s1 + $0xb8] sm:$0xff]
      %v311 = vld [vmem:[%s1 + $0xc0] sm:$0xff]
      %v312 = vld [vmem:[%s1 + $0xc8] sm:$0xff]
      %v313 = vld [vmem:[%s1 + $0xd0] sm:$0xff]
      %v314 = vld [vmem:[%s1 + $0xd8] sm:$0xff]
      %v315 = vld [vmem:[%s1 + $0xe0] sm:$0xff]
      %v316 = vld [vmem:[%s1 + $0xe8] sm:$0xff]
      %v317 = vld [vmem:[%s1 + $0xf0] sm:$0xff]
      %v318 = vld [vmem:[%s1 + $0xf8] sm:$0xff]
      %v319 = vld [vmem:[%s1 + $0x100] sm:$0xff]
      %v320 = vld [vmem:[%s1 + $0x108] sm:$0xff]
      %v321 = vld [vmem:[%s1 + $0x110] sm:$0xff]
      %v322 = vld [vmem:[%s1 + $0x118] sm:$0xff]
      %v323 = vld [vmem:[%s1 + $0x120] sm:$0xff]
      %v324 = vld [vmem:[%s1 + $0x128] sm:$0xff]
      %v325 = vld [vmem:[%s1 + $0x130] sm:$0xff]
      %v326 = vld [vmem:[%s1 + $0x138] sm:$0xff]
      %v327 = vld [vmem:[%s1 + $0x140] sm:$0xff]
      %v328 = vld [vmem:[%s1 + $0x148] sm:$0xff]
      %v329 = vld [vmem:[%s1 + $0x150] sm:$0xff]
      %v330 = vld [vmem:[%s1 + $0x158] sm:$0xff]
      %v331 = vld [vmem:[%s1 + $0x160] sm:$0xff]
      %v332 = vld [vmem:[%s1 + $0x168] sm:$0xff]
      %v333 = vld [vmem:[%s1 + $0x170] sm:$0xff]
      %v334 = vld [vmem:[%s1 + $0x178] sm:$0xff]
      %v335 = vld [vmem:[%s1 + $0x180] sm:$0xff]
      %v336 = vld [vmem:[%s1 + $0x188] sm:$0xff]
      %v337 = vld [vmem:[%s1 + $0x190] sm:$0xff]
      %v338 = vld [vmem:[%s1 + $0x198] sm:$0xff]
      %v339 = vld [vmem:[%s1 + $0x1a0] sm:$0xff]
      %v340 = vld [vmem:[%s1 + $0x1a8] sm:$0xff]
      %v341 = vld [vmem:[%s1 + $0x1b0] sm:$0xff]
      %v342 = vld [vmem:[%s1 + $0x1b8] sm:$0xff]
      %v343 = vld [vmem:[%s1 + $0x1c0] sm:$0xff]
      %v344 = vld [vmem:[%s1 + $0x1c8] sm:$0xff]
      %v345 = vld [vmem:[%s1 + $0x1d0] sm:$0xff]
      %v346 = vld [vmem:[%s1 + $0x1d8] sm:$0xff]
      %v347 = vld [vmem:[%s1 + $0x1e0] sm:$0xff]
      %v348 = vld [vmem:[%s1 + $0x1e8] sm:$0xff]
      %v349 = vld [vmem:[%s1 + $0x1f0] sm:$0xff]
      %v350 = vld [vmem:[%s1 + $0x1f8] sm:$0xff]
      %v351 = vld [vmem:[%s1 + $0x200] sm:$0xff]
      %v352 = vld [vmem:[%s1 + $0x208] sm:$0xff]
      %v353 = vld [vmem:[%s1 + $0x210] sm:$0xff]
      %v354 = vld [vmem:[%s1 + $0x218] sm:$0xff]
      %v355 = vld [vmem:[%s1 + $0x220] sm:$0xff]
      %v356 = vld [vmem:[%s1 + $0x228] sm:$0xff]
      %v357 = vld [vmem:[%s1 + $0x230] sm:$0xff]
      %v358 = vld [vmem:[%s1 + $0x238] sm:$0xff]
      %vm359 = vcmask 523264
      %v361 = vsel %vm359, %v287, 0
      %v364 = vsel %vm359, %v288, 0
      %v367 = vsel %vm359, %v289, 0
      %v370 = vsel %vm359, %v290, 0
      %v373 = vsel %vm359, %v291, 0
      %v376 = vsel %vm359, %v292, 0
      %v379 = vsel %vm359, %v293, 0
      %v382 = vsel %vm359, %v294, 0
      %v385 = vsel %vm359, %v295, 0
      %v388 = vsel %vm359, %v296, 0
      %v391 = vsel %vm359, %v297, 0
      %v394 = vsel %vm359, %v298, 0
      %v397 = vsel %vm359, %v299, 0
      %v400 = vsel %vm359, %v300, 0
      %v403 = vsel %vm359, %v301, 0
      %v406 = vsel %vm359, %v302, 0
      %v409 = vsel %vm359, %v303, 0
      %v412 = vsel %vm359, %v304, 0
      %v415 = vsel %vm359, %v305, 0
      %v418 = vsel %vm359, %v306, 0
      %v421 = vsel %vm359, %v307, 0
      %v424 = vsel %vm359, %v308, 0
      %v427 = vsel %vm359, %v309, 0
      %v430 = vsel %vm359, %v310, 0
      %v433 = vsel %vm359, %v311, 0
      %v436 = vsel %vm359, %v312, 0
      %v439 = vsel %vm359, %v313, 0
      %v442 = vsel %vm359, %v314, 0
      %v445 = vsel %vm359, %v315, 0
      %v448 = vsel %vm359, %v316, 0
      %v451 = vsel %vm359, %v317, 0
      %v454 = vsel %vm359, %v318, 0
      %v457 = vsel %vm359, %v319, 0
      %v460 = vsel %vm359, %v320, 0
      %v463 = vsel %vm359, %v321, 0
      %v466 = vsel %vm359, %v322, 0
      %v469 = vsel %vm359, %v323, 0
      %v472 = vsel %vm359, %v324, 0
      %v475 = vsel %vm359, %v325, 0
      %v478 = vsel %vm359, %v326, 0
      %v481 = vsel %vm359, %v327, 0
      %v484 = vsel %vm359, %v328, 0
      %v487 = vsel %vm359, %v329, 0
      %v490 = vsel %vm359, %v330, 0
      %v493 = vsel %vm359, %v331, 0
      %v496 = vsel %vm359, %v332, 0
      %v499 = vsel %vm359, %v333, 0
      %v502 = vsel %vm359, %v334, 0
      %v505 = vsel %vm359, %v335, 0
      %v508 = vsel %vm359, %v336, 0
      %v511 = vsel %vm359, %v337, 0
      %v514 = vsel %vm359, %v338, 0
      %v517 = vsel %vm359, %v339, 0
      %v520 = vsel %vm359, %v340, 0
      %v523 = vsel %vm359, %v341, 0
      %v526 = vsel %vm359, %v342, 0
      %v529 = vsel %vm359, %v343, 0
      %v532 = vsel %vm359, %v344, 0
      %v535 = vsel %vm359, %v345, 0
      %v538 = vsel %vm359, %v346, 0
      %v541 = vsel %vm359, %v347, 0
      %v544 = vsel %vm359, %v348, 0
      %v547 = vsel %vm359, %v349, 0
      %v550 = vsel %vm359, %v350, 0
      %v553 = vsel %vm359, %v351, 0
      %v556 = vsel %vm359, %v352, 0
      %v559 = vsel %vm359, %v353, 0
      %v562 = vsel %vm359, %v354, 0
      %v565 = vsel %vm359, %v355, 0
      %v568 = vsel %vm359, %v356, 0
      %v571 = vsel %vm359, %v357, 0
      %v574 = vsel %vm359, %v358, 0
      %576 = vmatprep.subr.mxu0 0.0
      %577 = vmatpush1.msra.mxu0 %v279
      %578 = vmatprep.subr.mxu0 0.0
      %579 = vmatpush1.msra.mxu0 %v280
      %580 = vmatprep.subr.mxu0 0.0
      %581 = vmatpush1.msra.mxu0 %v281
      %582 = vmatprep.subr.mxu0 0.0
      %583 = vmatpush1.msra.mxu0 %v282
      %584 = vmatprep.subr.mxu0 0.0
      %585 = vmatpush1.msra.mxu0 %v283
      %586 = vmatprep.subr.mxu0 0.0
      %587 = vmatpush1.msra.mxu0 %v284
      %588 = vmatprep.subr.mxu0 0.0
      %589 = vmatpush1.msra.mxu0 %v285
      %590 = vmatprep.subr.mxu0 0.0
      %591 = vmatpush1.msra.mxu0 %v286
      %592 = vmatprep.subr.mxu0 0.0
      %593 = vmatpush1.msra.mxu0 0.0
      %594 = vmatprep.subr.mxu0 0.0
      %595 = vmatpush1.msra.mxu0 0.0
      %596 = vmatprep.subr.mxu0 0.0
      %597 = vmatpush1.msra.mxu0 0.0
      %598 = vmatprep.subr.mxu0 0.0
      %599 = vmatpush1.msra.mxu0 0.0
      %600 = vmatprep.subr.mxu0 0.0
      %601 = vmatpush1.msra.mxu0 0.0
      %602 = vmatprep.subr.mxu0 0.0
      %603 = vmatpush1.msra.mxu0 0.0
      %604 = vmatprep.subr.mxu0 0.0
      %605 = vmatpush1.msra.mxu0 0.0
      %606 = vmatprep.subr.mxu0 0.0
      %607 = vmatpush1.msra.mxu0 0.0
      %608 = vmatprep.subr.mxu0 0.0
      %609 = vmatpush1.msra.mxu0 0.0
      %610 = vmatprep.subr.mxu0 0.0
      %611 = vmatpush1.msra.mxu0 0.0
      %612 = vmatprep.subr.mxu0 0.0
      %613 = vmatpush1.msra.mxu0 0.0
      %614 = vmatprep.subr.mxu0 0.0
      %615 = vmatpush1.msra.mxu0 0.0
      %616 = vmatprep.subr.mxu0 0.0
      %617 = vmatpush1.msra.mxu0 0.0
      %618 = vmatprep.subr.mxu0 0.0
      %619 = vmatpush1.msra.mxu0 0.0
      %620 = vmatprep.subr.mxu0 0.0
      %621 = vmatpush1.msra.mxu0 0.0
      %622 = vmatprep.subr.mxu0 0.0
      %623 = vmatpush1.msra.mxu0 0.0
      %624 = vmatprep.subr.mxu0 0.0
      %625 = vmatpush1.msra.mxu0 0.0
      %626 = vmatprep.subr.mxu0 0.0
      %627 = vmatpush1.msra.mxu0 0.0
      %628 = vmatprep.subr.mxu0 0.0
      %629 = vmatpush1.msra.mxu0 0.0
      %630 = vmatprep.subr.mxu0 0.0
      %631 = vmatpush1.msra.mxu0 0.0
      %632 = vmatprep.subr.mxu0 0.0
      %633 = vmatpush1.msra.mxu0 0.0
      %634 = vmatprep.subr.mxu0 0.0
      %635 = vmatpush1.msra.mxu0 0.0
      %636 = vmatprep.subr.mxu0 0.0
      %637 = vmatpush1.msra.mxu0 0.0
      %638 = vmatprep.subr.mxu0 0.0
      %639 = vmatpush1.msra.mxu0 0.0
      %640 = vmatprep.mubr.f32.mxu0 0.0
      %641 = vmatmul.mubr.f32.gmra.mrb[0].mxu0 %v361
      %v642 = vpop.f32.mrb[0].mxu0
      %v643 = vadd.f32 0.0, %v642
      %v644 = vpop.f32.mrb[0].mxu0
      %645 = vmatprep.mubr.f32.mxu0 0.0
      %646 = vmatmul.mubr.f32.gmra.mrb[0].mxu0 %v364
      %v647 = vpop.f32.mrb[0].mxu0
      %v648 = vadd.f32 0.0, %v647
      %v649 = vpop.f32.mrb[0].mxu0
      %650 = vmatprep.mubr.f32.mxu0 0.0
      %651 = vmatmul.mubr.f32.gmra.mrb[0].mxu0 %v367
      %v652 = vpop.f32.mrb[0].mxu0
      %v653 = vadd.f32 0.0, %v652
      %v654 = vpop.f32.mrb[0].mxu0
      %655 = vmatprep.mubr.f32.mxu0 0.0
      %656 = vmatmul.mubr.f32.gmra.mrb[0].mxu0 %v370
      %v657 = vpop.f32.mrb[0].mxu0
      %v658 = vadd.f32 0.0, %v657
      %v659 = vpop.f32.mrb[0].mxu0
      %660 = vmatprep.mubr.f32.mxu0 0.0
      %661 = vmatmul.mubr.f32.gmra.mrb[0].mxu0 %v373
      %v662 = vpop.f32.mrb[0].mxu0
      %v663 = vadd.f32 0.0, %v662
      %v664 = vpop.f32.mrb[0].mxu0
      %665 = vmatprep.mubr.f32.mxu0 0.0
      %666 = vmatmul.mubr.f32.gmra.mrb[0].mxu0 %v376
      %v667 = vpop.f32.mrb[0].mxu0
      %v668 = vadd.f32 0.0, %v667
      %v669 = vpop.f32.mrb[0].mxu0
      %670 = vmatprep.mubr.f32.mxu0 0.0
      %671 = vmatmul.mubr.f32.gmra.mrb[0].mxu0 %v379
      %v672 = vpop.f32.mrb[0].mxu0
      %v673 = vadd.f32 0.0, %v672
      %v674 = vpop.f32.mrb[0].mxu0
      %675 = vmatprep.mubr.f32.mxu0 0.0
      %676 = vmatmul.mubr.f32.gmra.mrb[0].mxu0 %v382
      %v677 = vpop.f32.mrb[0].mxu0
      %v678 = vadd.f32 0.0, %v677
      %v679 = vpop.f32.mrb[0].mxu0
      %680 = vmatprep.mubr.f32.mxu0 0.0
      %681 = vmatmul.mubr.f32.gmra.mrb[0].mxu0 %v385
      %v682 = vpop.f32.mrb[0].mxu0
      %v683 = vadd.f32 0.0, %v682
      %v684 = vpop.f32.mrb[0].mxu0
      %685 = vmatprep.mubr.f32.mxu0 0.0
      %686 = vmatmul.mubr.f32.gmra.mrb[0].mxu0 %v388
      %v687 = vpop.f32.mrb[0].mxu0
      %v688 = vadd.f32 0.0, %v687
      %v689 = vpop.f32.mrb[0].mxu0
      %690 = vmatprep.mubr.f32.mxu0 0.0
      %691 = vmatmul.mubr.f32.gmra.mrb[0].mxu0 %v391
      %v692 = vpop.f32.mrb[0].mxu0
      %v693 = vadd.f32 0.0, %v692
      %v694 = vpop.f32.mrb[0].mxu0
      %695 = vmatprep.mubr.f32.mxu0 0.0
      %696 = vmatmul.mubr.f32.gmra.mrb[0].mxu0 %v394
      %v697 = vpop.f32.mrb[0].mxu0
      %v698 = vadd.f32 0.0, %v697
      %v699 = vpop.f32.mrb[0].mxu0
      %700 = vmatprep.mubr.f32.mxu0 0.0
      %701 = vmatmul.mubr.f32.gmra.mrb[0].mxu0 %v397
      %v702 = vpop.f32.mrb[0].mxu0
      %v703 = vadd.f32 0.0, %v702
      %v704 = vpop.f32.mrb[0].mxu0
      %705 = vmatprep.mubr.f32.mxu0 0.0
      %706 = vmatmul.mubr.f32.gmra.mrb[0].mxu0 %v400
      %v707 = vpop.f32.mrb[0].mxu0
      %v708 = vadd.f32 0.0, %v707
      %v709 = vpop.f32.mrb[0].mxu0
      %710 = vmatprep.mubr.f32.mxu0 0.0
      %711 = vmatmul.mubr.f32.gmra.mrb[0].mxu0 %v403
      %v712 = vpop.f32.mrb[0].mxu0
      %v713 = vadd.f32 0.0, %v712
      %v714 = vpop.f32.mrb[0].mxu0
      %715 = vmatprep.mubr.f32.mxu0 0.0
      %716 = vmatmul.mubr.f32.gmra.mrb[0].mxu0 %v406
      %v717 = vpop.f32.mrb[0].mxu0
      %v718 = vadd.f32 0.0, %v717
      %v719 = vpop.f32.mrb[0].mxu0
      %720 = vmatprep.mubr.f32.mxu0 0.0
      %721 = vmatmul.mubr.f32.gmra.mrb[0].mxu0 %v409
      %v722 = vpop.f32.mrb[0].mxu0
      %v723 = vadd.f32 0.0, %v722
      %v724 = vpop.f32.mrb[0].mxu0
      %725 = vmatprep.mubr.f32.mxu0 0.0
      %726 = vmatmul.mubr.f32.gmra.mrb[0].mxu0 %v412
      %v727 = vpop.f32.mrb[0].mxu0
      %v728 = vadd.f32 0.0, %v727
      %v729 = vpop.f32.mrb[0].mxu0
      %730 = vmatprep.mubr.f32.mxu0 0.0
      %731 = vmatmul.mubr.f32.gmra.mrb[0].mxu0 %v415
      %v732 = vpop.f32.mrb[0].mxu0
      %v733 = vadd.f32 0.0, %v732
      %v734 = vpop.f32.mrb[0].mxu0
      %735 = vmatprep.mubr.f32.mxu0 0.0
      %736 = vmatmul.mubr.f32.gmra.mrb[0].mxu0 %v418
      %v737 = vpop.f32.mrb[0].mxu0
      %v738 = vadd.f32 0.0, %v737
      %v739 = vpop.f32.mrb[0].mxu0
      %740 = vmatprep.mubr.f32.mxu0 0.0
      %741 = vmatmul.mubr.f32.gmra.mrb[0].mxu0 %v421
      %v742 = vpop.f32.mrb[0].mxu0
      %v743 = vadd.f32 0.0, %v742
      %v744 = vpop.f32.mrb[0].mxu0
      %745 = vmatprep.mubr.f32.mxu0 0.0
      %746 = vmatmul.mubr.f32.gmra.mrb[0].mxu0 %v424
      %v747 = vpop.f32.mrb[0].mxu0
      %v748 = vadd.f32 0.0, %v747
      %v749 = vpop.f32.mrb[0].mxu0
      %750 = vmatprep.mubr.f32.mxu0 0.0
      %751 = vmatmul.mubr.f32.gmra.mrb[0].mxu0 %v427
      %v752 = vpop.f32.mrb[0].mxu0
      %v753 = vadd.f32 0.0, %v752
      %v754 = vpop.f32.mrb[0].mxu0
      %755 = vmatprep.mubr.f32.mxu0 0.0
      %756 = vmatmul.mubr.f32.gmra.mrb[0].mxu0 %v430
      %v757 = vpop.f32.mrb[0].mxu0
      %v758 = vadd.f32 0.0, %v757
      %v759 = vpop.f32.mrb[0].mxu0
      %760 = vmatprep.mubr.f32.mxu0 0.0
      %761 = vmatmul.mubr.f32.gmra.mrb[0].mxu0 %v433
      %v762 = vpop.f32.mrb[0].mxu0
      %v763 = vadd.f32 0.0, %v762
      %v764 = vpop.f32.mrb[0].mxu0
      %765 = vmatprep.mubr.f32.mxu0 0.0
      %766 = vmatmul.mubr.f32.gmra.mrb[0].mxu0 %v436
      %v767 = vpop.f32.mrb[0].mxu0
      %v768 = vadd.f32 0.0, %v767
      %v769 = vpop.f32.mrb[0].mxu0
      %770 = vmatprep.mubr.f32.mxu0 0.0
      %771 = vmatmul.mubr.f32.gmra.mrb[0].mxu0 %v439
      %v772 = vpop.f32.mrb[0].mxu0
      %v773 = vadd.f32 0.0, %v772
      %v774 = vpop.f32.mrb[0].mxu0
      %775 = vmatprep.mubr.f32.mxu0 0.0
      %776 = vmatmul.mubr.f32.gmra.mrb[0].mxu0 %v442
      %v777 = vpop.f32.mrb[0].mxu0
      %v778 = vadd.f32 0.0, %v777
      %v779 = vpop.f32.mrb[0].mxu0
      %780 = vmatprep.mubr.f32.mxu0 0.0
      %781 = vmatmul.mubr.f32.gmra.mrb[0].mxu0 %v445
      %v782 = vpop.f32.mrb[0].mxu0
      %v783 = vadd.f32 0.0, %v782
      %v784 = vpop.f32.mrb[0].mxu0
      %785 = vmatprep.mubr.f32.mxu0 0.0
      %786 = vmatmul.mubr.f32.gmra.mrb[0].mxu0 %v448
      %v787 = vpop.f32.mrb[0].mxu0
      %v788 = vadd.f32 0.0, %v787
      %v789 = vpop.f32.mrb[0].mxu0
      %790 = vmatprep.mubr.f32.mxu0 0.0
      %791 = vmatmul.mubr.f32.gmra.mrb[0].mxu0 %v451
      %v792 = vpop.f32.mrb[0].mxu0
      %v793 = vadd.f32 0.0, %v792
      %v794 = vpop.f32.mrb[0].mxu0
      %795 = vmatprep.mubr.f32.mxu0 0.0
      %796 = vmatmul.mubr.f32.gmra.mrb[0].mxu0 %v454
      %v797 = vpop.f32.mrb[0].mxu0
      %v798 = vadd.f32 0.0, %v797
      %v799 = vpop.f32.mrb[0].mxu0
      %800 = vmatprep.mubr.f32.mxu0 0.0
      %801 = vmatmul.mubr.f32.gmra.mrb[0].mxu0 %v457
      %v802 = vpop.f32.mrb[0].mxu0
      %v803 = vadd.f32 0.0, %v802
      %v804 = vpop.f32.mrb[0].mxu0
      %805 = vmatprep.mubr.f32.mxu0 0.0
      %806 = vmatmul.mubr.f32.gmra.mrb[0].mxu0 %v460
      %v807 = vpop.f32.mrb[0].mxu0
      %v808 = vadd.f32 0.0, %v807
      %v809 = vpop.f32.mrb[0].mxu0
      %810 = vmatprep.mubr.f32.mxu0 0.0
      %811 = vmatmul.mubr.f32.gmra.mrb[0].mxu0 %v463
      %v812 = vpop.f32.mrb[0].mxu0
      %v813 = vadd.f32 0.0, %v812
      %v814 = vpop.f32.mrb[0].mxu0
      %815 = vmatprep.mubr.f32.mxu0 0.0
      %816 = vmatmul.mubr.f32.gmra.mrb[0].mxu0 %v466
      %v817 = vpop.f32.mrb[0].mxu0
      %v818 = vadd.f32 0.0, %v817
      %v819 = vpop.f32.mrb[0].mxu0
      %820 = vmatprep.mubr.f32.mxu0 0.0
      %821 = vmatmul.mubr.f32.gmra.mrb[0].mxu0 %v469
      %v822 = vpop.f32.mrb[0].mxu0
      %v823 = vadd.f32 0.0, %v822
      %v824 = vpop.f32.mrb[0].mxu0
      %825 = vmatprep.mubr.f32.mxu0 0.0
      %826 = vmatmul.mubr.f32.gmra.mrb[0].mxu0 %v472
      %v827 = vpop.f32.mrb[0].mxu0
      %v828 = vadd.f32 0.0, %v827
      %v829 = vpop.f32.mrb[0].mxu0
      %830 = vmatprep.mubr.f32.mxu0 0.0
      %831 = vmatmul.mubr.f32.gmra.mrb[0].mxu0 %v475
      %v832 = vpop.f32.mrb[0].mxu0
      %v833 = vadd.f32 0.0, %v832
      %v834 = vpop.f32.mrb[0].mxu0
      %835 = vmatprep.mubr.f32.mxu0 0.0
      %836 = vmatmul.mubr.f32.gmra.mrb[0].mxu0 %v478
      %v837 = vpop.f32.mrb[0].mxu0
      %v838 = vadd.f32 0.0, %v837
      %v839 = vpop.f32.mrb[0].mxu0
      %840 = vmatprep.mubr.f32.mxu0 0.0
      %841 = vmatmul.mubr.f32.gmra.mrb[0].mxu0 %v481
      %v842 = vpop.f32.mrb[0].mxu0
      %v843 = vadd.f32 0.0, %v842
      %v844 = vpop.f32.mrb[0].mxu0
      %845 = vmatprep.mubr.f32.mxu0 0.0
      %846 = vmatmul.mubr.f32.gmra.mrb[0].mxu0 %v484
      %v847 = vpop.f32.mrb[0].mxu0
      %v848 = vadd.f32 0.0, %v847
      %v849 = vpop.f32.mrb[0].mxu0
      %850 = vmatprep.mubr.f32.mxu0 0.0
      %851 = vmatmul.mubr.f32.gmra.mrb[0].mxu0 %v487
      %v852 = vpop.f32.mrb[0].mxu0
      %v853 = vadd.f32 0.0, %v852
      %v854 = vpop.f32.mrb[0].mxu0
      %855 = vmatprep.mubr.f32.mxu0 0.0
      %856 = vmatmul.mubr.f32.gmra.mrb[0].mxu0 %v490
      %v857 = vpop.f32.mrb[0].mxu0
      %v858 = vadd.f32 0.0, %v857
      %v859 = vpop.f32.mrb[0].mxu0
      %860 = vmatprep.mubr.f32.mxu0 0.0
      %861 = vmatmul.mubr.f32.gmra.mrb[0].mxu0 %v493
      %v862 = vpop.f32.mrb[0].mxu0
      %v863 = vadd.f32 0.0, %v862
      %v864 = vpop.f32.mrb[0].mxu0
      %865 = vmatprep.mubr.f32.mxu0 0.0
      %866 = vmatmul.mubr.f32.gmra.mrb[0].mxu0 %v496
      %v867 = vpop.f32.mrb[0].mxu0
      %v868 = vadd.f32 0.0, %v867
      %v869 = vpop.f32.mrb[0].mxu0
      %870 = vmatprep.mubr.f32.mxu0 0.0
      %871 = vmatmul.mubr.f32.gmra.mrb[0].mxu0 %v499
      %v872 = vpop.f32.mrb[0].mxu0
      %v873 = vadd.f32 0.0, %v872
      %v874 = vpop.f32.mrb[0].mxu0
      %875 = vmatprep.mubr.f32.mxu0 0.0
      %876 = vmatmul.mubr.f32.gmra.mrb[0].mxu0 %v502
      %v877 = vpop.f32.mrb[0].mxu0
      %v878 = vadd.f32 0.0, %v877
      %v879 = vpop.f32.mrb[0].mxu0
      %880 = vmatprep.mubr.f32.mxu0 0.0
      %881 = vmatmul.mubr.f32.gmra.mrb[0].mxu0 %v505
      %v882 = vpop.f32.mrb[0].mxu0
      %v883 = vadd.f32 0.0, %v882
      %v884 = vpop.f32.mrb[0].mxu0
      %885 = vmatprep.mubr.f32.mxu0 0.0
      %886 = vmatmul.mubr.f32.gmra.mrb[0].mxu0 %v508
      %v887 = vpop.f32.mrb[0].mxu0
      %v888 = vadd.f32 0.0, %v887
      %v889 = vpop.f32.mrb[0].mxu0
      %890 = vmatprep.mubr.f32.mxu0 0.0
      %891 = vmatmul.mubr.f32.gmra.mrb[0].mxu0 %v511
      %v892 = vpop.f32.mrb[0].mxu0
      %v893 = vadd.f32 0.0, %v892
      %v894 = vpop.f32.mrb[0].mxu0
      %895 = vmatprep.mubr.f32.mxu0 0.0
      %896 = vmatmul.mubr.f32.gmra.mrb[0].mxu0 %v514
      %v897 = vpop.f32.mrb[0].mxu0
      %v898 = vadd.f32 0.0, %v897
      %v899 = vpop.f32.mrb[0].mxu0
      %900 = vmatprep.mubr.f32.mxu0 0.0
      %901 = vmatmul.mubr.f32.gmra.mrb[0].mxu0 %v517
      %v902 = vpop.f32.mrb[0].mxu0
      %v903 = vadd.f32 0.0, %v902
      %v904 = vpop.f32.mrb[0].mxu0
      %905 = vmatprep.mubr.f32.mxu0 0.0
      %906 = vmatmul.mubr.f32.gmra.mrb[0].mxu0 %v520
      %v907 = vpop.f32.mrb[0].mxu0
      %v908 = vadd.f32 0.0, %v907
      %v909 = vpop.f32.mrb[0].mxu0
      %910 = vmatprep.mubr.f32.mxu0 0.0
      %911 = vmatmul.mubr.f32.gmra.mrb[0].mxu0 %v523
      %v912 = vpop.f32.mrb[0].mxu0
      %v913 = vadd.f32 0.0, %v912
      %v914 = vpop.f32.mrb[0].mxu0
      %915 = vmatprep.mubr.f32.mxu0 0.0
      %916 = vmatmul.mubr.f32.gmra.mrb[0].mxu0 %v526
      %v917 = vpop.f32.mrb[0].mxu0
      %v918 = vadd.f32 0.0, %v917
      %v919 = vpop.f32.mrb[0].mxu0
      %920 = vmatprep.mubr.f32.mxu0 0.0
      %921 = vmatmul.mubr.f32.gmra.mrb[0].mxu0 %v529
      %v922 = vpop.f32.mrb[0].mxu0
      %v923 = vadd.f32 0.0, %v922
      %v924 = vpop.f32.mrb[0].mxu0
      %925 = vmatprep.mubr.f32.mxu0 0.0
      %926 = vmatmul.mubr.f32.gmra.mrb[0].mxu0 %v532
      %v927 = vpop.f32.mrb[0].mxu0
      %v928 = vadd.f32 0.0, %v927
      %v929 = vpop.f32.mrb[0].mxu0
      %930 = vmatprep.mubr.f32.mxu0 0.0
      %931 = vmatmul.mubr.f32.gmra.mrb[0].mxu0 %v535
      %v932 = vpop.f32.mrb[0].mxu0
      %v933 = vadd.f32 0.0, %v932
      %v934 = vpop.f32.mrb[0].mxu0
      %935 = vmatprep.mubr.f32.mxu0 0.0
      %936 = vmatmul.mubr.f32.gmra.mrb[0].mxu0 %v538
      %v937 = vpop.f32.mrb[0].mxu0
      %v938 = vadd.f32 0.0, %v937
      %v939 = vpop.f32.mrb[0].mxu0
      %940 = vmatprep.mubr.f32.mxu0 0.0
      %941 = vmatmul.mubr.f32.gmra.mrb[0].mxu0 %v541
      %v942 = vpop.f32.mrb[0].mxu0
      %v943 = vadd.f32 0.0, %v942
      %v944 = vpop.f32.mrb[0].mxu0
      %945 = vmatprep.mubr.f32.mxu0 0.0
      %946 = vmatmul.mubr.f32.gmra.mrb[0].mxu0 %v544
      %v947 = vpop.f32.mrb[0].mxu0
      %v948 = vadd.f32 0.0, %v947
      %v949 = vpop.f32.mrb[0].mxu0
      %950 = vmatprep.mubr.f32.mxu0 0.0
      %951 = vmatmul.mubr.f32.gmra.mrb[0].mxu0 %v547
      %v952 = vpop.f32.mrb[0].mxu0
      %v953 = vadd.f32 0.0, %v952
      %v954 = vpop.f32.mrb[0].mxu0
      %955 = vmatprep.mubr.f32.mxu0 0.0
      %956 = vmatmul.mubr.f32.gmra.mrb[0].mxu0 %v550
      %v957 = vpop.f32.mrb[0].mxu0
      %v958 = vadd.f32 0.0, %v957
      %v959 = vpop.f32.mrb[0].mxu0
      %960 = vmatprep.mubr.f32.mxu0 0.0
      %961 = vmatmul.mubr.f32.gmra.mrb[0].mxu0 %v553
      %v962 = vpop.f32.mrb[0].mxu0
      %v963 = vadd.f32 0.0, %v962
      %v964 = vpop.f32.mrb[0].mxu0
      %965 = vmatprep.mubr.f32.mxu0 0.0
      %966 = vmatmul.mubr.f32.gmra.mrb[0].mxu0 %v556
      %v967 = vpop.f32.mrb[0].mxu0
      %v968 = vadd.f32 0.0, %v967
      %v969 = vpop.f32.mrb[0].mxu0
      %970 = vmatprep.mubr.f32.mxu0 0.0
      %971 = vmatmul.mubr.f32.gmra.mrb[0].mxu0 %v559
      %v972 = vpop.f32.mrb[0].mxu0
      %v973 = vadd.f32 0.0, %v972
      %v974 = vpop.f32.mrb[0].mxu0
      %975 = vmatprep.mubr.f32.mxu0 0.0
      %976 = vmatmul.mubr.f32.gmra.mrb[0].mxu0 %v562
      %v977 = vpop.f32.mrb[0].mxu0
      %v978 = vadd.f32 0.0, %v977
      %v979 = vpop.f32.mrb[0].mxu0
      %980 = vmatprep.mubr.f32.mxu0 0.0
      %981 = vmatmul.mubr.f32.gmra.mrb[0].mxu0 %v565
      %v982 = vpop.f32.mrb[0].mxu0
      %v983 = vadd.f32 0.0, %v982
      %v984 = vpop.f32.mrb[0].mxu0
      %985 = vmatprep.mubr.f32.mxu0 0.0
      %986 = vmatmul.mubr.f32.gmra.mrb[0].mxu0 %v568
      %v987 = vpop.f32.mrb[0].mxu0
      %v988 = vadd.f32 0.0, %v987
      %v989 = vpop.f32.mrb[0].mxu0
      %990 = vmatprep.mubr.f32.mxu0 0.0
      %991 = vmatmul.mubr.f32.gmra.mrb[0].mxu0 %v571
      %v992 = vpop.f32.mrb[0].mxu0
      %v993 = vadd.f32 0.0, %v992
      %v994 = vpop.f32.mrb[0].mxu0
      %995 = vmatprep.mubr.f32.mxu0 0.0
      %996 = vmatmul.mubr.f32.gmra.mrb[0].mxu0 %v574
      %v997 = vpop.f32.mrb[0].mxu0
      %v998 = vadd.f32 0.0, %v997
      %v999 = vpop.f32.mrb[0].mxu0
      %1000 = vdwg.mxu0
      %v1001 = vld [vmem:[%s5] sm:$0xf]
      %v1002 = vld [vmem:[%s5 + $0x4] sm:$0xf]
      %v1003 = vld [vmem:[%s5 + $0x8] sm:$0xf]
      %v1004 = vld [vmem:[%s5 + $0xc] sm:$0xf]
      %v1005 = vld [vmem:[%s5 + $0x10] sm:$0xf]
      %v1006 = vld [vmem:[%s5 + $0x14] sm:$0xf]
      %v1007 = vld [vmem:[%s5 + $0x18] sm:$0xf]
      %v1008 = vld [vmem:[%s5 + $0x1c] sm:$0xf]
      %v1009 = vunpack.c.l.bf16 %v1001
      %v1010 = vunpack.c.l.bf16 %v1002
      %v1011 = vunpack.c.l.bf16 %v1003
      %v1012 = vunpack.c.l.bf16 %v1004
      %v1013 = vunpack.c.l.bf16 %v1005
      %v1014 = vunpack.c.l.bf16 %v1006
      %v1015 = vunpack.c.l.bf16 %v1007
      %v1016 = vunpack.c.l.bf16 %v1008
      %s1017 = scalar_lea.vmem %s5, 32
      %v1018 = vld [vmem:[%s1017] sm:$0xf]
      %v1019 = vld [vmem:[%s1017 + $0x4] sm:$0xf]
      %v1020 = vld [vmem:[%s1017 + $0x8] sm:$0xf]
      %v1021 = vld [vmem:[%s1017 + $0xc] sm:$0xf]
      %v1022 = vld [vmem:[%s1017 + $0x10] sm:$0xf]
      %v1023 = vld [vmem:[%s1017 + $0x14] sm:$0xf]
      %v1024 = vld [vmem:[%s1017 + $0x18] sm:$0xf]
      %v1025 = vld [vmem:[%s1017 + $0x1c] sm:$0xf]
      %v1026 = vunpack.c.l.bf16 %v1018
      %v1027 = vunpack.c.l.bf16 %v1019
      %v1028 = vunpack.c.l.bf16 %v1020
      %v1029 = vunpack.c.l.bf16 %v1021
      %v1030 = vunpack.c.l.bf16 %v1022
      %v1031 = vunpack.c.l.bf16 %v1023
      %v1032 = vunpack.c.l.bf16 %v1024
      %v1033 = vunpack.c.l.bf16 %v1025
      %v1035 = vsel %vm359, %v683, 0
      %v1038 = vsel %vm359, %v688, 0
      %v1041 = vsel %vm359, %v693, 0
      %v1044 = vsel %vm359, %v698, 0
      %v1047 = vsel %vm359, %v703, 0
      %v1050 = vsel %vm359, %v708, 0
      %v1053 = vsel %vm359, %v713, 0
      %v1056 = vsel %vm359, %v718, 0
      %1058 = vmatprep.subr.mxu0 0.0
      %1059 = vmatpush1.msra.mxu0 %v1026
      %1060 = vmatprep.subr.mxu0 0.0
      %1061 = vmatpush1.msra.mxu0 %v1027
      %1062 = vmatprep.subr.mxu0 0.0
      %1063 = vmatpush1.msra.mxu0 %v1028
      %1064 = vmatprep.subr.mxu0 0.0
      %1065 = vmatpush1.msra.mxu0 %v1029
      %1066 = vmatprep.subr.mxu0 0.0
      %1067 = vmatpush1.msra.mxu0 %v1030
      %1068 = vmatprep.subr.mxu0 0.0
      %1069 = vmatpush1.msra.mxu0 %v1031
      %1070 = vmatprep.subr.mxu0 0.0
      %1071 = vmatpush1.msra.mxu0 %v1032
      %1072 = vmatprep.subr.mxu0 0.0
      %1073 = vmatpush1.msra.mxu0 %v1033
      %1074 = vmatprep.subr.mxu0 0.0
      %1075 = vmatpush1.msra.mxu0 0.0
      %1076 = vmatprep.subr.mxu0 0.0
      %1077 = vmatpush1.msra.mxu0 0.0
      %1078 = vmatprep.subr.mxu0 0.0
      %1079 = vmatpush1.msra.mxu0 0.0
      %1080 = vmatprep.subr.mxu0 0.0
      %1081 = vmatpush1.msra.mxu0 0.0
      %1082 = vmatprep.subr.mxu0 0.0
      %1083 = vmatpush1.msra.mxu0 0.0
      %1084 = vmatprep.subr.mxu0 0.0
      %1085 = vmatpush1.msra.mxu0 0.0
      %1086 = vmatprep.subr.mxu0 0.0
      %1087 = vmatpush1.msra.mxu0 0.0
      %1088 = vmatprep.subr.mxu0 0.0
      %1089 = vmatpush1.msra.mxu0 0.0
      %1090 = vmatprep.subr.mxu0 0.0
      %1091 = vmatpush1.msra.mxu0 0.0
      %1092 = vmatprep.subr.mxu0 0.0
      %1093 = vmatpush1.msra.mxu0 0.0
      %1094 = vmatprep.subr.mxu0 0.0
      %1095 = vmatpush1.msra.mxu0 0.0
      %1096 = vmatprep.subr.mxu0 0.0
      %1097 = vmatpush1.msra.mxu0 0.0
      %1098 = vmatprep.subr.mxu0 0.0
      %1099 = vmatpush1.msra.mxu0 0.0
      %1100 = vmatprep.subr.mxu0 0.0
      %1101 = vmatpush1.msra.mxu0 0.0
      %1102 = vmatprep.subr.mxu0 0.0
      %1103 = vmatpush1.msra.mxu0 0.0
      %1104 = vmatprep.subr.mxu0 0.0
      %1105 = vmatpush1.msra.mxu0 0.0
      %1106 = vmatprep.subr.mxu0 0.0
      %1107 = vmatpush1.msra.mxu0 0.0
      %1108 = vmatprep.subr.mxu0 0.0
      %1109 = vmatpush1.msra.mxu0 0.0
      %1110 = vmatprep.subr.mxu0 0.0
      %1111 = vmatpush1.msra.mxu0 0.0
      %1112 = vmatprep.subr.mxu0 0.0
      %1113 = vmatpush1.msra.mxu0 0.0
      %1114 = vmatprep.subr.mxu0 0.0
      %1115 = vmatpush1.msra.mxu0 0.0
      %1116 = vmatprep.subr.mxu0 0.0
      %1117 = vmatpush1.msra.mxu0 0.0
      %1118 = vmatprep.subr.mxu0 0.0
      %1119 = vmatpush1.msra.mxu0 0.0
      %1120 = vmatprep.subr.mxu0 0.0
      %1121 = vmatpush1.msra.mxu0 0.0
      %1122 = vmatprep.mubr.f32.mxu0 0.0
      %1123 = vmatmul.mubr.f32.gmra.mrb[0].mxu0 %v1035
      %v1124 = vpop.f32.mrb[0].mxu0
      %v1125 = vadd.f32 0.0, %v1124
      %v1126 = vpop.f32.mrb[0].mxu0
      %1127 = vmatprep.mubr.f32.mxu0 0.0
      %1128 = vmatmul.mubr.f32.gmra.mrb[0].mxu0 %v1038
      %v1129 = vpop.f32.mrb[0].mxu0
      %v1130 = vadd.f32 0.0, %v1129
      %v1131 = vpop.f32.mrb[0].mxu0
      %1132 = vmatprep.mubr.f32.mxu0 0.0
      %1133 = vmatmul.mubr.f32.gmra.mrb[0].mxu0 %v1041
      %v1134 = vpop.f32.mrb[0].mxu0
      %v1135 = vadd.f32 0.0, %v1134
      %v1136 = vpop.f32.mrb[0].mxu0
      %1137 = vmatprep.mubr.f32.mxu0 0.0
      %1138 = vmatmul.mubr.f32.gmra.mrb[0].mxu0 %v1044
      %v1139 = vpop.f32.mrb[0].mxu0
      %v1140 = vadd.f32 0.0, %v1139
      %v1141 = vpop.f32.mrb[0].mxu0
      %1142 = vmatprep.mubr.f32.mxu0 0.0
      %1143 = vmatmul.mubr.f32.gmra.mrb[0].mxu0 %v1047
      %v1144 = vpop.f32.mrb[0].mxu0
      %v1145 = vadd.f32 0.0, %v1144
      %v1146 = vpop.f32.mrb[0].mxu0
      %1147 = vmatprep.mubr.f32.mxu0 0.0
      %1148 = vmatmul.mubr.f32.gmra.mrb[0].mxu0 %v1050
      %v1149 = vpop.f32.mrb[0].mxu0
      %v1150 = vadd.f32 0.0, %v1149
      %v1151 = vpop.f32.mrb[0].mxu0
      %1152 = vmatprep.mubr.f32.mxu0 0.0
      %1153 = vmatmul.mubr.f32.gmra.mrb[0].mxu0 %v1053
      %v1154 = vpop.f32.mrb[0].mxu0
      %v1155 = vadd.f32 0.0, %v1154
      %v1156 = vpop.f32.mrb[0].mxu0
      %1157 = vmatprep.mubr.f32.mxu0 0.0
      %1158 = vmatmul.mubr.f32.gmra.mrb[0].mxu0 %v1056
      %v1159 = vpop.f32.mrb[0].mxu0
      %v1160 = vadd.f32 0.0, %v1159
      %v1161 = vpop.f32.mrb[0].mxu0
      %1162 = vdwg.mxu0
      %v1164 = vsel %vm359, %v643, 0
      %v1167 = vsel %vm359, %v648, 0
      %v1170 = vsel %vm359, %v653, 0
      %v1173 = vsel %vm359, %v658, 0
      %v1176 = vsel %vm359, %v663, 0
      %v1179 = vsel %vm359, %v668, 0
      %v1182 = vsel %vm359, %v673, 0
      %v1185 = vsel %vm359, %v678, 0
      %1187 = vmatprep.subr.mxu0 0.0
      %1188 = vmatpush1.msra.mxu0 %v1009
      %1189 = vmatprep.subr.mxu0 0.0
      %1190 = vmatpush1.msra.mxu0 %v1010
      %1191 = vmatprep.subr.mxu0 0.0
      %1192 = vmatpush1.msra.mxu0 %v1011
      %1193 = vmatprep.subr.mxu0 0.0
      %1194 = vmatpush1.msra.mxu0 %v1012
      %1195 = vmatprep.subr.mxu0 0.0
      %1196 = vmatpush1.msra.mxu0 %v1013
      %1197 = vmatprep.subr.mxu0 0.0
      %1198 = vmatpush1.msra.mxu0 %v1014
      %1199 = vmatprep.subr.mxu0 0.0
      %1200 = vmatpush1.msra.mxu0 %v1015
      %1201 = vmatprep.subr.mxu0 0.0
      %1202 = vmatpush1.msra.mxu0 %v1016
      %1203 = vmatprep.subr.mxu0 0.0
      %1204 = vmatpush1.msra.mxu0 0.0
      %1205 = vmatprep.subr.mxu0 0.0
      %1206 = vmatpush1.msra.mxu0 0.0
      %1207 = vmatprep.subr.mxu0 0.0
      %1208 = vmatpush1.msra.mxu0 0.0
      %1209 = vmatprep.subr.mxu0 0.0
      %1210 = vmatpush1.msra.mxu0 0.0
      %1211 = vmatprep.subr.mxu0 0.0
      %1212 = vmatpush1.msra.mxu0 0.0
      %1213 = vmatprep.subr.mxu0 0.0
      %1214 = vmatpush1.msra.mxu0 0.0
      %1215 = vmatprep.subr.mxu0 0.0
      %1216 = vmatpush1.msra.mxu0 0.0
      %1217 = vmatprep.subr.mxu0 0.0
      %1218 = vmatpush1.msra.mxu0 0.0
      %1219 = vmatprep.subr.mxu0 0.0
      %1220 = vmatpush1.msra.mxu0 0.0
      %1221 = vmatprep.subr.mxu0 0.0
      %1222 = vmatpush1.msra.mxu0 0.0
      %1223 = vmatprep.subr.mxu0 0.0
      %1224 = vmatpush1.msra.mxu0 0.0
      %1225 = vmatprep.subr.mxu0 0.0
      %1226 = vmatpush1.msra.mxu0 0.0
      %1227 = vmatprep.subr.mxu0 0.0
      %1228 = vmatpush1.msra.mxu0 0.0
      %1229 = vmatprep.subr.mxu0 0.0
      %1230 = vmatpush1.msra.mxu0 0.0
      %1231 = vmatprep.subr.mxu0 0.0
      %1232 = vmatpush1.msra.mxu0 0.0
      %1233 = vmatprep.subr.mxu0 0.0
      %1234 = vmatpush1.msra.mxu0 0.0
      %1235 = vmatprep.subr.mxu0 0.0
      %1236 = vmatpush1.msra.mxu0 0.0
      %1237 = vmatprep.subr.mxu0 0.0
      %1238 = vmatpush1.msra.mxu0 0.0
      %1239 = vmatprep.subr.mxu0 0.0
      %1240 = vmatpush1.msra.mxu0 0.0
      %1241 = vmatprep.subr.mxu0 0.0
      %1242 = vmatpush1.msra.mxu0 0.0
      %1243 = vmatprep.subr.mxu0 0.0
      %1244 = vmatpush1.msra.mxu0 0.0
      %1245 = vmatprep.subr.mxu0 0.0
      %1246 = vmatpush1.msra.mxu0 0.0
      %1247 = vmatprep.subr.mxu0 0.0
      %1248 = vmatpush1.msra.mxu0 0.0
      %1249 = vmatprep.subr.mxu0 0.0
      %1250 = vmatpush1.msra.mxu0 0.0
      %1251 = vmatprep.mubr.f32.mxu0 0.0
      %1252 = vmatmul.mubr.f32.gmra.mrb[0].mxu0 %v1164
      %v1253 = vpop.f32.mrb[0].mxu0
      %v1254 = vadd.f32 %v1125, %v1253
      %v1255 = vpop.f32.mrb[0].mxu0
      %1256 = vmatprep.mubr.f32.mxu0 0.0
      %1257 = vmatmul.mubr.f32.gmra.mrb[0].mxu0 %v1167
      %v1258 = vpop.f32.mrb[0].mxu0
      %v1259 = vadd.f32 %v1130, %v1258
      %v1260 = vpop.f32.mrb[0].mxu0
      %1261 = vmatprep.mubr.f32.mxu0 0.0
      %1262 = vmatmul.mubr.f32.gmra.mrb[0].mxu0 %v1170
      %v1263 = vpop.f32.mrb[0].mxu0
      %v1264 = vadd.f32 %v1135, %v1263
      %v1265 = vpop.f32.mrb[0].mxu0
      %1266 = vmatprep.mubr.f32.mxu0 0.0
      %1267 = vmatmul.mubr.f32.gmra.mrb[0].mxu0 %v1173
      %v1268 = vpop.f32.mrb[0].mxu0
      %v1269 = vadd.f32 %v1140, %v1268
      %v1270 = vpop.f32.mrb[0].mxu0
      %1271 = vmatprep.mubr.f32.mxu0 0.0
      %1272 = vmatmul.mubr.f32.gmra.mrb[0].mxu0 %v1176
      %v1273 = vpop.f32.mrb[0].mxu0
      %v1274 = vadd.f32 %v1145, %v1273
      %v1275 = vpop.f32.mrb[0].mxu0
      %1276 = vmatprep.mubr.f32.mxu0 0.0
      %1277 = vmatmul.mubr.f32.gmra.mrb[0].mxu0 %v1179
      %v1278 = vpop.f32.mrb[0].mxu0
      %v1279 = vadd.f32 %v1150, %v1278
      %v1280 = vpop.f32.mrb[0].mxu0
      %1281 = vmatprep.mubr.f32.mxu0 0.0
      %1282 = vmatmul.mubr.f32.gmra.mrb[0].mxu0 %v1182
      %v1283 = vpop.f32.mrb[0].mxu0
      %v1284 = vadd.f32 %v1155, %v1283
      %v1285 = vpop.f32.mrb[0].mxu0
      %1286 = vmatprep.mubr.f32.mxu0 0.0
      %1287 = vmatmul.mubr.f32.gmra.mrb[0].mxu0 %v1185
      %v1288 = vpop.f32.mrb[0].mxu0
      %v1289 = vadd.f32 %v1160, %v1288
      %v1290 = vpop.f32.mrb[0].mxu0
      %1291 = vdwg.mxu0
      %s1292 = scalar_lea.vmem %s5, 64
      %v1293 = vld [vmem:[%s1292] sm:$0xf]
      %v1294 = vld [vmem:[%s1292 + $0x4] sm:$0xf]
      %v1295 = vld [vmem:[%s1292 + $0x8] sm:$0xf]
      %v1296 = vld [vmem:[%s1292 + $0xc] sm:$0xf]
      %v1297 = vld [vmem:[%s1292 + $0x10] sm:$0xf]
      %v1298 = vld [vmem:[%s1292 + $0x14] sm:$0xf]
      %v1299 = vld [vmem:[%s1292 + $0x18] sm:$0xf]
      %v1300 = vld [vmem:[%s1292 + $0x1c] sm:$0xf]
      %v1301 = vunpack.c.l.bf16 %v1293
      %v1302 = vunpack.c.l.bf16 %v1294
      %v1303 = vunpack.c.l.bf16 %v1295
      %v1304 = vunpack.c.l.bf16 %v1296
      %v1305 = vunpack.c.l.bf16 %v1297
      %v1306 = vunpack.c.l.bf16 %v1298
      %v1307 = vunpack.c.l.bf16 %v1299
      %v1308 = vunpack.c.l.bf16 %v1300
      %v1310 = vsel %vm359, %v723, 0
      %v1313 = vsel %vm359, %v728, 0
      %v1316 = vsel %vm359, %v733, 0
      %v1319 = vsel %vm359, %v738, 0
      %v1322 = vsel %vm359, %v743, 0
      %v1325 = vsel %vm359, %v748, 0
      %v1328 = vsel %vm359, %v753, 0
      %v1331 = vsel %vm359, %v758, 0
      %1333 = vmatprep.subr.mxu0 0.0
      %1334 = vmatpush1.msra.mxu0 %v1301
      %1335 = vmatprep.subr.mxu0 0.0
      %1336 = vmatpush1.msra.mxu0 %v1302
      %1337 = vmatprep.subr.mxu0 0.0
      %1338 = vmatpush1.msra.mxu0 %v1303
      %1339 = vmatprep.subr.mxu0 0.0
      %1340 = vmatpush1.msra.mxu0 %v1304
      %1341 = vmatprep.subr.mxu0 0.0
      %1342 = vmatpush1.msra.mxu0 %v1305
      %1343 = vmatprep.subr.mxu0 0.0
      %1344 = vmatpush1.msra.mxu0 %v1306
      %1345 = vmatprep.subr.mxu0 0.0
      %1346 = vmatpush1.msra.mxu0 %v1307
      %1347 = vmatprep.subr.mxu0 0.0
      %1348 = vmatpush1.msra.mxu0 %v1308
      %1349 = vmatprep.subr.mxu0 0.0
      %1350 = vmatpush1.msra.mxu0 0.0
      %1351 = vmatprep.subr.mxu0 0.0
      %1352 = vmatpush1.msra.mxu0 0.0
      %1353 = vmatprep.subr.mxu0 0.0
      %1354 = vmatpush1.msra.mxu0 0.0
      %1355 = vmatprep.subr.mxu0 0.0
      %1356 = vmatpush1.msra.mxu0 0.0
      %1357 = vmatprep.subr.mxu0 0.0
      %1358 = vmatpush1.msra.mxu0 0.0
      %1359 = vmatprep.subr.mxu0 0.0
      %1360 = vmatpush1.msra.mxu0 0.0
      %1361 = vmatprep.subr.mxu0 0.0
      %1362 = vmatpush1.msra.mxu0 0.0
      %1363 = vmatprep.subr.mxu0 0.0
      %1364 = vmatpush1.msra.mxu0 0.0
      %1365 = vmatprep.subr.mxu0 0.0
      %1366 = vmatpush1.msra.mxu0 0.0
      %1367 = vmatprep.subr.mxu0 0.0
      %1368 = vmatpush1.msra.mxu0 0.0
      %1369 = vmatprep.subr.mxu0 0.0
      %1370 = vmatpush1.msra.mxu0 0.0
      %1371 = vmatprep.subr.mxu0 0.0
      %1372 = vmatpush1.msra.mxu0 0.0
      %1373 = vmatprep.subr.mxu0 0.0
      %1374 = vmatpush1.msra.mxu0 0.0
      %1375 = vmatprep.subr.mxu0 0.0
      %1376 = vmatpush1.msra.mxu0 0.0
      %1377 = vmatprep.subr.mxu0 0.0
      %1378 = vmatpush1.msra.mxu0 0.0
      %1379 = vmatprep.subr.mxu0 0.0
      %1380 = vmatpush1.msra.mxu0 0.0
      %1381 = vmatprep.subr.mxu0 0.0
      %1382 = vmatpush1.msra.mxu0 0.0
      %1383 = vmatprep.subr.mxu0 0.0
      %1384 = vmatpush1.msra.mxu0 0.0
      %1385 = vmatprep.subr.mxu0 0.0
      %1386 = vmatpush1.msra.mxu0 0.0
      %1387 = vmatprep.subr.mxu0 0.0
      %1388 = vmatpush1.msra.mxu0 0.0
      %1389 = vmatprep.subr.mxu0 0.0
      %1390 = vmatpush1.msra.mxu0 0.0
      %1391 = vmatprep.subr.mxu0 0.0
      %1392 = vmatpush1.msra.mxu0 0.0
      %1393 = vmatprep.subr.mxu0 0.0
      %1394 = vmatpush1.msra.mxu0 0.0
      %1395 = vmatprep.subr.mxu0 0.0
      %1396 = vmatpush1.msra.mxu0 0.0
      %1397 = vmatprep.mubr.f32.mxu0 0.0
      %1398 = vmatmul.mubr.f32.gmra.mrb[0].mxu0 %v1310
      %v1399 = vpop.f32.mrb[0].mxu0
      %v1400 = vadd.f32 0.0, %v1399
      %v1401 = vpop.f32.mrb[0].mxu0
      %1402 = vmatprep.mubr.f32.mxu0 0.0
      %1403 = vmatmul.mubr.f32.gmra.mrb[0].mxu0 %v1313
      %v1404 = vpop.f32.mrb[0].mxu0
      %v1405 = vadd.f32 0.0, %v1404
      %v1406 = vpop.f32.mrb[0].mxu0
      %1407 = vmatprep.mubr.f32.mxu0 0.0
      %1408 = vmatmul.mubr.f32.gmra.mrb[0].mxu0 %v1316
      %v1409 = vpop.f32.mrb[0].mxu0
      %v1410 = vadd.f32 0.0, %v1409
      %v1411 = vpop.f32.mrb[0].mxu0
      %1412 = vmatprep.mubr.f32.mxu0 0.0
      %1413 = vmatmul.mubr.f32.gmra.mrb[0].mxu0 %v1319
      %v1414 = vpop.f32.mrb[0].mxu0
      %v1415 = vadd.f32 0.0, %v1414
      %v1416 = vpop.f32.mrb[0].mxu0
      %1417 = vmatprep.mubr.f32.mxu0 0.0
      %1418 = vmatmul.mubr.f32.gmra.mrb[0].mxu0 %v1322
      %v1419 = vpop.f32.mrb[0].mxu0
      %v1420 = vadd.f32 0.0, %v1419
      %v1421 = vpop.f32.mrb[0].mxu0
      %1422 = vmatprep.mubr.f32.mxu0 0.0
      %1423 = vmatmul.mubr.f32.gmra.mrb[0].mxu0 %v1325
      %v1424 = vpop.f32.mrb[0].mxu0
      %v1425 = vadd.f32 0.0, %v1424
      %v1426 = vpop.f32.mrb[0].mxu0
      %1427 = vmatprep.mubr.f32.mxu0 0.0
      %1428 = vmatmul.mubr.f32.gmra.mrb[0].mxu0 %v1328
      %v1429 = vpop.f32.mrb[0].mxu0
      %v1430 = vadd.f32 0.0, %v1429
      %v1431 = vpop.f32.mrb[0].mxu0
      %1432 = vmatprep.mubr.f32.mxu0 0.0
      %1433 = vmatmul.mubr.f32.gmra.mrb[0].mxu0 %v1331
      %v1434 = vpop.f32.mrb[0].mxu0
      %v1435 = vadd.f32 0.0, %v1434
      %v1436 = vpop.f32.mrb[0].mxu0
      %1437 = vdwg.mxu0
      %v1438 = vadd.f32 %v1254, %v1400
      %v1439 = vadd.f32 %v1259, %v1405
      %v1440 = vadd.f32 %v1264, %v1410
      %v1441 = vadd.f32 %v1269, %v1415
      %v1442 = vadd.f32 %v1274, %v1420
      %v1443 = vadd.f32 %v1279, %v1425
      %v1444 = vadd.f32 %v1284, %v1430
      %v1445 = vadd.f32 %v1289, %v1435
      %s1446 = scalar_lea.vmem %s5, 96
      %v1447 = vld [vmem:[%s1446] sm:$0xf]
      %v1448 = vld [vmem:[%s1446 + $0x4] sm:$0xf]
      %v1449 = vld [vmem:[%s1446 + $0x8] sm:$0xf]
      %v1450 = vld [vmem:[%s1446 + $0xc] sm:$0xf]
      %v1451 = vld [vmem:[%s1446 + $0x10] sm:$0xf]
      %v1452 = vld [vmem:[%s1446 + $0x14] sm:$0xf]
      %v1453 = vld [vmem:[%s1446 + $0x18] sm:$0xf]
      %v1454 = vld [vmem:[%s1446 + $0x1c] sm:$0xf]
      %v1455 = vunpack.c.l.bf16 %v1447
      %v1456 = vunpack.c.l.bf16 %v1448
      %v1457 = vunpack.c.l.bf16 %v1449
      %v1458 = vunpack.c.l.bf16 %v1450
      %v1459 = vunpack.c.l.bf16 %v1451
      %v1460 = vunpack.c.l.bf16 %v1452
      %v1461 = vunpack.c.l.bf16 %v1453
      %v1462 = vunpack.c.l.bf16 %v1454
      %v1464 = vsel %vm359, %v763, 0
      %v1467 = vsel %vm359, %v768, 0
      %v1470 = vsel %vm359, %v773, 0
      %v1473 = vsel %vm359, %v778, 0
      %v1476 = vsel %vm359, %v783, 0
      %v1479 = vsel %vm359, %v788, 0
      %v1482 = vsel %vm359, %v793, 0
      %v1485 = vsel %vm359, %v798, 0
      %1487 = vmatprep.subr.mxu0 0.0
      %1488 = vmatpush1.msra.mxu0 %v1455
      %1489 = vmatprep.subr.mxu0 0.0
      %1490 = vmatpush1.msra.mxu0 %v1456
      %1491 = vmatprep.subr.mxu0 0.0
      %1492 = vmatpush1.msra.mxu0 %v1457
      %1493 = vmatprep.subr.mxu0 0.0
      %1494 = vmatpush1.msra.mxu0 %v1458
      %1495 = vmatprep.subr.mxu0 0.0
      %1496 = vmatpush1.msra.mxu0 %v1459
      %1497 = vmatprep.subr.mxu0 0.0
      %1498 = vmatpush1.msra.mxu0 %v1460
      %1499 = vmatprep.subr.mxu0 0.0
      %1500 = vmatpush1.msra.mxu0 %v1461
      %1501 = vmatprep.subr.mxu0 0.0
      %1502 = vmatpush1.msra.mxu0 %v1462
      %1503 = vmatprep.subr.mxu0 0.0
      %1504 = vmatpush1.msra.mxu0 0.0
      %1505 = vmatprep.subr.mxu0 0.0
      %1506 = vmatpush1.msra.mxu0 0.0
      %1507 = vmatprep.subr.mxu0 0.0
      %1508 = vmatpush1.msra.mxu0 0.0
      %1509 = vmatprep.subr.mxu0 0.0
      %1510 = vmatpush1.msra.mxu0 0.0
      %1511 = vmatprep.subr.mxu0 0.0
      %1512 = vmatpush1.msra.mxu0 0.0
      %1513 = vmatprep.subr.mxu0 0.0
      %1514 = vmatpush1.msra.mxu0 0.0
      %1515 = vmatprep.subr.mxu0 0.0
      %1516 = vmatpush1.msra.mxu0 0.0
      %1517 = vmatprep.subr.mxu0 0.0
      %1518 = vmatpush1.msra.mxu0 0.0
      %1519 = vmatprep.subr.mxu0 0.0
      %1520 = vmatpush1.msra.mxu0 0.0
      %1521 = vmatprep.subr.mxu0 0.0
      %1522 = vmatpush1.msra.mxu0 0.0
      %1523 = vmatprep.subr.mxu0 0.0
      %1524 = vmatpush1.msra.mxu0 0.0
      %1525 = vmatprep.subr.mxu0 0.0
      %1526 = vmatpush1.msra.mxu0 0.0
      %1527 = vmatprep.subr.mxu0 0.0
      %1528 = vmatpush1.msra.mxu0 0.0
      %1529 = vmatprep.subr.mxu0 0.0
      %1530 = vmatpush1.msra.mxu0 0.0
      %1531 = vmatprep.subr.mxu0 0.0
      %1532 = vmatpush1.msra.mxu0 0.0
      %1533 = vmatprep.subr.mxu0 0.0
      %1534 = vmatpush1.msra.mxu0 0.0
      %1535 = vmatprep.subr.mxu0 0.0
      %1536 = vmatpush1.msra.mxu0 0.0
      %1537 = vmatprep.subr.mxu0 0.0
      %1538 = vmatpush1.msra.mxu0 0.0
      %1539 = vmatprep.subr.mxu0 0.0
      %1540 = vmatpush1.msra.mxu0 0.0
      %1541 = vmatprep.subr.mxu0 0.0
      %1542 = vmatpush1.msra.mxu0 0.0
      %1543 = vmatprep.subr.mxu0 0.0
      %1544 = vmatpush1.msra.mxu0 0.0
      %1545 = vmatprep.subr.mxu0 0.0
      %1546 = vmatpush1.msra.mxu0 0.0
      %1547 = vmatprep.subr.mxu0 0.0
      %1548 = vmatpush1.msra.mxu0 0.0
      %1549 = vmatprep.subr.mxu0 0.0
      %1550 = vmatpush1.msra.mxu0 0.0
      %1551 = vmatprep.mubr.f32.mxu0 0.0
      %1552 = vmatmul.mubr.f32.gmra.mrb[0].mxu0 %v1464
      %v1553 = vpop.f32.mrb[0].mxu0
      %v1554 = vadd.f32 0.0, %v1553
      %v1555 = vpop.f32.mrb[0].mxu0
      %1556 = vmatprep.mubr.f32.mxu0 0.0
      %1557 = vmatmul.mubr.f32.gmra.mrb[0].mxu0 %v1467
      %v1558 = vpop.f32.mrb[0].mxu0
      %v1559 = vadd.f32 0.0, %v1558
      %v1560 = vpop.f32.mrb[0].mxu0
      %1561 = vmatprep.mubr.f32.mxu0 0.0
      %1562 = vmatmul.mubr.f32.gmra.mrb[0].mxu0 %v1470
      %v1563 = vpop.f32.mrb[0].mxu0
      %v1564 = vadd.f32 0.0, %v1563
      %v1565 = vpop.f32.mrb[0].mxu0
      %1566 = vmatprep.mubr.f32.mxu0 0.0
      %1567 = vmatmul.mubr.f32.gmra.mrb[0].mxu0 %v1473
      %v1568 = vpop.f32.mrb[0].mxu0
      %v1569 = vadd.f32 0.0, %v1568
      %v1570 = vpop.f32.mrb[0].mxu0
      %1571 = vmatprep.mubr.f32.mxu0 0.0
      %1572 = vmatmul.mubr.f32.gmra.mrb[0].mxu0 %v1476
      %v1573 = vpop.f32.mrb[0].mxu0
      %v1574 = vadd.f32 0.0, %v1573
      %v1575 = vpop.f32.mrb[0].mxu0
      %1576 = vmatprep.mubr.f32.mxu0 0.0
      %1577 = vmatmul.mubr.f32.gmra.mrb[0].mxu0 %v1479
      %v1578 = vpop.f32.mrb[0].mxu0
      %v1579 = vadd.f32 0.0, %v1578
      %v1580 = vpop.f32.mrb[0].mxu0
      %1581 = vmatprep.mubr.f32.mxu0 0.0
      %1582 = vmatmul.mubr.f32.gmra.mrb[0].mxu0 %v1482
      %v1583 = vpop.f32.mrb[0].mxu0
      %v1584 = vadd.f32 0.0, %v1583
      %v1585 = vpop.f32.mrb[0].mxu0
      %1586 = vmatprep.mubr.f32.mxu0 0.0
      %1587 = vmatmul.mubr.f32.gmra.mrb[0].mxu0 %v1485
      %v1588 = vpop.f32.mrb[0].mxu0
      %v1589 = vadd.f32 0.0, %v1588
      %v1590 = vpop.f32.mrb[0].mxu0
      %1591 = vdwg.mxu0
      %v1592 = vadd.f32 %v1438, %v1554
      %v1593 = vadd.f32 %v1439, %v1559
      %v1594 = vadd.f32 %v1440, %v1564
      %v1595 = vadd.f32 %v1441, %v1569
      %v1596 = vadd.f32 %v1442, %v1574
      %v1597 = vadd.f32 %v1443, %v1579
      %v1598 = vadd.f32 %v1444, %v1584
      %v1599 = vadd.f32 %v1445, %v1589
      %s1600 = scalar_lea.vmem %s5, 128
      %v1601 = vld [vmem:[%s1600] sm:$0xf]
      %v1602 = vld [vmem:[%s1600 + $0x4] sm:$0xf]
      %v1603 = vld [vmem:[%s1600 + $0x8] sm:$0xf]
      %v1604 = vld [vmem:[%s1600 + $0xc] sm:$0xf]
      %v1605 = vld [vmem:[%s1600 + $0x10] sm:$0xf]
      %v1606 = vld [vmem:[%s1600 + $0x14] sm:$0xf]
      %v1607 = vld [vmem:[%s1600 + $0x18] sm:$0xf]
      %v1608 = vld [vmem:[%s1600 + $0x1c] sm:$0xf]
      %v1609 = vunpack.c.l.bf16 %v1601
      %v1610 = vunpack.c.l.bf16 %v1602
      %v1611 = vunpack.c.l.bf16 %v1603
      %v1612 = vunpack.c.l.bf16 %v1604
      %v1613 = vunpack.c.l.bf16 %v1605
      %v1614 = vunpack.c.l.bf16 %v1606
      %v1615 = vunpack.c.l.bf16 %v1607
      %v1616 = vunpack.c.l.bf16 %v1608
      %v1618 = vsel %vm359, %v803, 0
      %v1621 = vsel %vm359, %v808, 0
      %v1624 = vsel %vm359, %v813, 0
      %v1627 = vsel %vm359, %v818, 0
      %v1630 = vsel %vm359, %v823, 0
      %v1633 = vsel %vm359, %v828, 0
      %v1636 = vsel %vm359, %v833, 0
      %v1639 = vsel %vm359, %v838, 0
      %1641 = vmatprep.subr.mxu0 0.0
      %1642 = vmatpush1.msra.mxu0 %v1609
      %1643 = vmatprep.subr.mxu0 0.0
      %1644 = vmatpush1.msra.mxu0 %v1610
      %1645 = vmatprep.subr.mxu0 0.0
      %1646 = vmatpush1.msra.mxu0 %v1611
      %1647 = vmatprep.subr.mxu0 0.0
      %1648 = vmatpush1.msra.mxu0 %v1612
      %1649 = vmatprep.subr.mxu0 0.0
      %1650 = vmatpush1.msra.mxu0 %v1613
      %1651 = vmatprep.subr.mxu0 0.0
      %1652 = vmatpush1.msra.mxu0 %v1614
      %1653 = vmatprep.subr.mxu0 0.0
      %1654 = vmatpush1.msra.mxu0 %v1615
      %1655 = vmatprep.subr.mxu0 0.0
      %1656 = vmatpush1.msra.mxu0 %v1616
      %1657 = vmatprep.subr.mxu0 0.0
      %1658 = vmatpush1.msra.mxu0 0.0
      %1659 = vmatprep.subr.mxu0 0.0
      %1660 = vmatpush1.msra.mxu0 0.0
      %1661 = vmatprep.subr.mxu0 0.0
      %1662 = vmatpush1.msra.mxu0 0.0
      %1663 = vmatprep.subr.mxu0 0.0
      %1664 = vmatpush1.msra.mxu0 0.0
      %1665 = vmatprep.subr.mxu0 0.0
      %1666 = vmatpush1.msra.mxu0 0.0
      %1667 = vmatprep.subr.mxu0 0.0
      %1668 = vmatpush1.msra.mxu0 0.0
      %1669 = vmatprep.subr.mxu0 0.0
      %1670 = vmatpush1.msra.mxu0 0.0
      %1671 = vmatprep.subr.mxu0 0.0
      %1672 = vmatpush1.msra.mxu0 0.0
      %1673 = vmatprep.subr.mxu0 0.0
      %1674 = vmatpush1.msra.mxu0 0.0
      %1675 = vmatprep.subr.mxu0 0.0
      %1676 = vmatpush1.msra.mxu0 0.0
      %1677 = vmatprep.subr.mxu0 0.0
      %1678 = vmatpush1.msra.mxu0 0.0
      %1679 = vmatprep.subr.mxu0 0.0
      %1680 = vmatpush1.msra.mxu0 0.0
      %1681 = vmatprep.subr.mxu0 0.0
      %1682 = vmatpush1.msra.mxu0 0.0
      %1683 = vmatprep.subr.mxu0 0.0
      %1684 = vmatpush1.msra.mxu0 0.0
      %1685 = vmatprep.subr.mxu0 0.0
      %1686 = vmatpush1.msra.mxu0 0.0
      %1687 = vmatprep.subr.mxu0 0.0
      %1688 = vmatpush1.msra.mxu0 0.0
      %1689 = vmatprep.subr.mxu0 0.0
      %1690 = vmatpush1.msra.mxu0 0.0
      %1691 = vmatprep.subr.mxu0 0.0
      %1692 = vmatpush1.msra.mxu0 0.0
      %1693 = vmatprep.subr.mxu0 0.0
      %1694 = vmatpush1.msra.mxu0 0.0
      %1695 = vmatprep.subr.mxu0 0.0
      %1696 = vmatpush1.msra.mxu0 0.0
      %1697 = vmatprep.subr.mxu0 0.0
      %1698 = vmatpush1.msra.mxu0 0.0
      %1699 = vmatprep.subr.mxu0 0.0
      %1700 = vmatpush1.msra.mxu0 0.0
      %1701 = vmatprep.subr.mxu0 0.0
      %1702 = vmatpush1.msra.mxu0 0.0
      %1703 = vmatprep.subr.mxu0 0.0
      %1704 = vmatpush1.msra.mxu0 0.0
      %1705 = vmatprep.mubr.f32.mxu0 0.0
      %1706 = vmatmul.mubr.f32.gmra.mrb[0].mxu0 %v1618
      %v1707 = vpop.f32.mrb[0].mxu0
      %v1708 = vadd.f32 0.0, %v1707
      %v1709 = vpop.f32.mrb[0].mxu0
      %1710 = vmatprep.mubr.f32.mxu0 0.0
      %1711 = vmatmul.mubr.f32.gmra.mrb[0].mxu0 %v1621
      %v1712 = vpop.f32.mrb[0].mxu0
      %v1713 = vadd.f32 0.0, %v1712
      %v1714 = vpop.f32.mrb[0].mxu0
      %1715 = vmatprep.mubr.f32.mxu0 0.0
      %1716 = vmatmul.mubr.f32.gmra.mrb[0].mxu0 %v1624
      %v1717 = vpop.f32.mrb[0].mxu0
      %v1718 = vadd.f32 0.0, %v1717
      %v1719 = vpop.f32.mrb[0].mxu0
      %1720 = vmatprep.mubr.f32.mxu0 0.0
      %1721 = vmatmul.mubr.f32.gmra.mrb[0].mxu0 %v1627
      %v1722 = vpop.f32.mrb[0].mxu0
      %v1723 = vadd.f32 0.0, %v1722
      %v1724 = vpop.f32.mrb[0].mxu0
      %1725 = vmatprep.mubr.f32.mxu0 0.0
      %1726 = vmatmul.mubr.f32.gmra.mrb[0].mxu0 %v1630
      %v1727 = vpop.f32.mrb[0].mxu0
      %v1728 = vadd.f32 0.0, %v1727
      %v1729 = vpop.f32.mrb[0].mxu0
      %1730 = vmatprep.mubr.f32.mxu0 0.0
      %1731 = vmatmul.mubr.f32.gmra.mrb[0].mxu0 %v1633
      %v1732 = vpop.f32.mrb[0].mxu0
      %v1733 = vadd.f32 0.0, %v1732
      %v1734 = vpop.f32.mrb[0].mxu0
      %1735 = vmatprep.mubr.f32.mxu0 0.0
      %1736 = vmatmul.mubr.f32.gmra.mrb[0].mxu0 %v1636
      %v1737 = vpop.f32.mrb[0].mxu0
      %v1738 = vadd.f32 0.0, %v1737
      %v1739 = vpop.f32.mrb[0].mxu0
      %1740 = vmatprep.mubr.f32.mxu0 0.0
      %1741 = vmatmul.mubr.f32.gmra.mrb[0].mxu0 %v1639
      %v1742 = vpop.f32.mrb[0].mxu0
      %v1743 = vadd.f32 0.0, %v1742
      %v1744 = vpop.f32.mrb[0].mxu0
      %1745 = vdwg.mxu0
      %v1746 = vadd.f32 %v1592, %v1708
      %v1747 = vadd.f32 %v1593, %v1713
      %v1748 = vadd.f32 %v1594, %v1718
      %v1749 = vadd.f32 %v1595, %v1723
      %v1750 = vadd.f32 %v1596, %v1728
      %v1751 = vadd.f32 %v1597, %v1733
      %v1752 = vadd.f32 %v1598, %v1738
      %v1753 = vadd.f32 %v1599, %v1743
      %s1754 = scalar_lea.vmem %s5, 160
      %v1755 = vld [vmem:[%s1754] sm:$0xf]
      %v1756 = vld [vmem:[%s1754 + $0x4] sm:$0xf]
      %v1757 = vld [vmem:[%s1754 + $0x8] sm:$0xf]
      %v1758 = vld [vmem:[%s1754 + $0xc] sm:$0xf]
      %v1759 = vld [vmem:[%s1754 + $0x10] sm:$0xf]
      %v1760 = vld [vmem:[%s1754 + $0x14] sm:$0xf]
      %v1761 = vld [vmem:[%s1754 + $0x18] sm:$0xf]
      %v1762 = vld [vmem:[%s1754 + $0x1c] sm:$0xf]
      %v1763 = vunpack.c.l.bf16 %v1755
      %v1764 = vunpack.c.l.bf16 %v1756
      %v1765 = vunpack.c.l.bf16 %v1757
      %v1766 = vunpack.c.l.bf16 %v1758
      %v1767 = vunpack.c.l.bf16 %v1759
      %v1768 = vunpack.c.l.bf16 %v1760
      %v1769 = vunpack.c.l.bf16 %v1761
      %v1770 = vunpack.c.l.bf16 %v1762
      %v1772 = vsel %vm359, %v843, 0
      %v1775 = vsel %vm359, %v848, 0
      %v1778 = vsel %vm359, %v853, 0
      %v1781 = vsel %vm359, %v858, 0
      %v1784 = vsel %vm359, %v863, 0
      %v1787 = vsel %vm359, %v868, 0
      %v1790 = vsel %vm359, %v873, 0
      %v1793 = vsel %vm359, %v878, 0
      %1795 = vmatprep.subr.mxu0 0.0
      %1796 = vmatpush1.msra.mxu0 %v1763
      %1797 = vmatprep.subr.mxu0 0.0
      %1798 = vmatpush1.msra.mxu0 %v1764
      %1799 = vmatprep.subr.mxu0 0.0
      %1800 = vmatpush1.msra.mxu0 %v1765
      %1801 = vmatprep.subr.mxu0 0.0
      %1802 = vmatpush1.msra.mxu0 %v1766
      %1803 = vmatprep.subr.mxu0 0.0
      %1804 = vmatpush1.msra.mxu0 %v1767
      %1805 = vmatprep.subr.mxu0 0.0
      %1806 = vmatpush1.msra.mxu0 %v1768
      %1807 = vmatprep.subr.mxu0 0.0
      %1808 = vmatpush1.msra.mxu0 %v1769
      %1809 = vmatprep.subr.mxu0 0.0
      %1810 = vmatpush1.msra.mxu0 %v1770
      %1811 = vmatprep.subr.mxu0 0.0
      %1812 = vmatpush1.msra.mxu0 0.0
      %1813 = vmatprep.subr.mxu0 0.0
      %1814 = vmatpush1.msra.mxu0 0.0
      %1815 = vmatprep.subr.mxu0 0.0
      %1816 = vmatpush1.msra.mxu0 0.0
      %1817 = vmatprep.subr.mxu0 0.0
      %1818 = vmatpush1.msra.mxu0 0.0
      %1819 = vmatprep.subr.mxu0 0.0
      %1820 = vmatpush1.msra.mxu0 0.0
      %1821 = vmatprep.subr.mxu0 0.0
      %1822 = vmatpush1.msra.mxu0 0.0
      %1823 = vmatprep.subr.mxu0 0.0
      %1824 = vmatpush1.msra.mxu0 0.0
      %1825 = vmatprep.subr.mxu0 0.0
      %1826 = vmatpush1.msra.mxu0 0.0
      %1827 = vmatprep.subr.mxu0 0.0
      %1828 = vmatpush1.msra.mxu0 0.0
      %1829 = vmatprep.subr.mxu0 0.0
      %1830 = vmatpush1.msra.mxu0 0.0
      %1831 = vmatprep.subr.mxu0 0.0
      %1832 = vmatpush1.msra.mxu0 0.0
      %1833 = vmatprep.subr.mxu0 0.0
      %1834 = vmatpush1.msra.mxu0 0.0
      %1835 = vmatprep.subr.mxu0 0.0
      %1836 = vmatpush1.msra.mxu0 0.0
      %1837 = vmatprep.subr.mxu0 0.0
      %1838 = vmatpush1.msra.mxu0 0.0
      %1839 = vmatprep.subr.mxu0 0.0
      %1840 = vmatpush1.msra.mxu0 0.0
      %1841 = vmatprep.subr.mxu0 0.0
      %1842 = vmatpush1.msra.mxu0 0.0
      %1843 = vmatprep.subr.mxu0 0.0
      %1844 = vmatpush1.msra.mxu0 0.0
      %1845 = vmatprep.subr.mxu0 0.0
      %1846 = vmatpush1.msra.mxu0 0.0
      %1847 = vmatprep.subr.mxu0 0.0
      %1848 = vmatpush1.msra.mxu0 0.0
      %1849 = vmatprep.subr.mxu0 0.0
      %1850 = vmatpush1.msra.mxu0 0.0
      %1851 = vmatprep.subr.mxu0 0.0
      %1852 = vmatpush1.msra.mxu0 0.0
      %1853 = vmatprep.subr.mxu0 0.0
      %1854 = vmatpush1.msra.mxu0 0.0
      %1855 = vmatprep.subr.mxu0 0.0
      %1856 = vmatpush1.msra.mxu0 0.0
      %1857 = vmatprep.subr.mxu0 0.0
      %1858 = vmatpush1.msra.mxu0 0.0
      %1859 = vmatprep.mubr.f32.mxu0 0.0
      %1860 = vmatmul.mubr.f32.gmra.mrb[0].mxu0 %v1772
      %v1861 = vpop.f32.mrb[0].mxu0
      %v1862 = vadd.f32 0.0, %v1861
      %v1863 = vpop.f32.mrb[0].mxu0
      %1864 = vmatprep.mubr.f32.mxu0 0.0
      %1865 = vmatmul.mubr.f32.gmra.mrb[0].mxu0 %v1775
      %v1866 = vpop.f32.mrb[0].mxu0
      %v1867 = vadd.f32 0.0, %v1866
      %v1868 = vpop.f32.mrb[0].mxu0
      %1869 = vmatprep.mubr.f32.mxu0 0.0
      %1870 = vmatmul.mubr.f32.gmra.mrb[0].mxu0 %v1778
      %v1871 = vpop.f32.mrb[0].mxu0
      %v1872 = vadd.f32 0.0, %v1871
      %v1873 = vpop.f32.mrb[0].mxu0
      %1874 = vmatprep.mubr.f32.mxu0 0.0
      %1875 = vmatmul.mubr.f32.gmra.mrb[0].mxu0 %v1781
      %v1876 = vpop.f32.mrb[0].mxu0
      %v1877 = vadd.f32 0.0, %v1876
      %v1878 = vpop.f32.mrb[0].mxu0
      %1879 = vmatprep.mubr.f32.mxu0 0.0
      %1880 = vmatmul.mubr.f32.gmra.mrb[0].mxu0 %v1784
      %v1881 = vpop.f32.mrb[0].mxu0
      %v1882 = vadd.f32 0.0, %v1881
      %v1883 = vpop.f32.mrb[0].mxu0
      %1884 = vmatprep.mubr.f32.mxu0 0.0
      %1885 = vmatmul.mubr.f32.gmra.mrb[0].mxu0 %v1787
      %v1886 = vpop.f32.mrb[0].mxu0
      %v1887 = vadd.f32 0.0, %v1886
      %v1888 = vpop.f32.mrb[0].mxu0
      %1889 = vmatprep.mubr.f32.mxu0 0.0
      %1890 = vmatmul.mubr.f32.gmra.mrb[0].mxu0 %v1790
      %v1891 = vpop.f32.mrb[0].mxu0
      %v1892 = vadd.f32 0.0, %v1891
      %v1893 = vpop.f32.mrb[0].mxu0
      %1894 = vmatprep.mubr.f32.mxu0 0.0
      %1895 = vmatmul.mubr.f32.gmra.mrb[0].mxu0 %v1793
      %v1896 = vpop.f32.mrb[0].mxu0
      %v1897 = vadd.f32 0.0, %v1896
      %v1898 = vpop.f32.mrb[0].mxu0
      %1899 = vdwg.mxu0
      %v1900 = vadd.f32 %v1746, %v1862
      %v1901 = vadd.f32 %v1747, %v1867
      %v1902 = vadd.f32 %v1748, %v1872
      %v1903 = vadd.f32 %v1749, %v1877
      %v1904 = vadd.f32 %v1750, %v1882
      %v1905 = vadd.f32 %v1751, %v1887
      %v1906 = vadd.f32 %v1752, %v1892
      %v1907 = vadd.f32 %v1753, %v1897
      %s1908 = scalar_lea.vmem %s5, 192
      %v1909 = vld [vmem:[%s1908] sm:$0xf]
      %v1910 = vld [vmem:[%s1908 + $0x4] sm:$0xf]
      %v1911 = vld [vmem:[%s1908 + $0x8] sm:$0xf]
      %v1912 = vld [vmem:[%s1908 + $0xc] sm:$0xf]
      %v1913 = vld [vmem:[%s1908 + $0x10] sm:$0xf]
      %v1914 = vld [vmem:[%s1908 + $0x14] sm:$0xf]
      %v1915 = vld [vmem:[%s1908 + $0x18] sm:$0xf]
      %v1916 = vld [vmem:[%s1908 + $0x1c] sm:$0xf]
      %v1917 = vunpack.c.l.bf16 %v1909
      %v1918 = vunpack.c.l.bf16 %v1910
      %v1919 = vunpack.c.l.bf16 %v1911
      %v1920 = vunpack.c.l.bf16 %v1912
      %v1921 = vunpack.c.l.bf16 %v1913
      %v1922 = vunpack.c.l.bf16 %v1914
      %v1923 = vunpack.c.l.bf16 %v1915
      %v1924 = vunpack.c.l.bf16 %v1916
      %v1926 = vsel %vm359, %v883, 0
      %v1929 = vsel %vm359, %v888, 0
      %v1932 = vsel %vm359, %v893, 0
      %v1935 = vsel %vm359, %v898, 0
      %v1938 = vsel %vm359, %v903, 0
      %v1941 = vsel %vm359, %v908, 0
      %v1944 = vsel %vm359, %v913, 0
      %v1947 = vsel %vm359, %v918, 0
      %1949 = vmatprep.subr.mxu0 0.0
      %1950 = vmatpush1.msra.mxu0 %v1917
      %1951 = vmatprep.subr.mxu0 0.0
      %1952 = vmatpush1.msra.mxu0 %v1918
      %1953 = vmatprep.subr.mxu0 0.0
      %1954 = vmatpush1.msra.mxu0 %v1919
      %1955 = vmatprep.subr.mxu0 0.0
      %1956 = vmatpush1.msra.mxu0 %v1920
      %1957 = vmatprep.subr.mxu0 0.0
      %1958 = vmatpush1.msra.mxu0 %v1921
      %1959 = vmatprep.subr.mxu0 0.0
      %1960 = vmatpush1.msra.mxu0 %v1922
      %1961 = vmatprep.subr.mxu0 0.0
      %1962 = vmatpush1.msra.mxu0 %v1923
      %1963 = vmatprep.subr.mxu0 0.0
      %1964 = vmatpush1.msra.mxu0 %v1924
      %1965 = vmatprep.subr.mxu0 0.0
      %1966 = vmatpush1.msra.mxu0 0.0
      %1967 = vmatprep.subr.mxu0 0.0
      %1968 = vmatpush1.msra.mxu0 0.0
      %1969 = vmatprep.subr.mxu0 0.0
      %1970 = vmatpush1.msra.mxu0 0.0
      %1971 = vmatprep.subr.mxu0 0.0
      %1972 = vmatpush1.msra.mxu0 0.0
      %1973 = vmatprep.subr.mxu0 0.0
      %1974 = vmatpush1.msra.mxu0 0.0
      %1975 = vmatprep.subr.mxu0 0.0
      %1976 = vmatpush1.msra.mxu0 0.0
      %1977 = vmatprep.subr.mxu0 0.0
      %1978 = vmatpush1.msra.mxu0 0.0
      %1979 = vmatprep.subr.mxu0 0.0
      %1980 = vmatpush1.msra.mxu0 0.0
      %1981 = vmatprep.subr.mxu0 0.0
      %1982 = vmatpush1.msra.mxu0 0.0
      %1983 = vmatprep.subr.mxu0 0.0
      %1984 = vmatpush1.msra.mxu0 0.0
      %1985 = vmatprep.subr.mxu0 0.0
      %1986 = vmatpush1.msra.mxu0 0.0
      %1987 = vmatprep.subr.mxu0 0.0
      %1988 = vmatpush1.msra.mxu0 0.0
      %1989 = vmatprep.subr.mxu0 0.0
      %1990 = vmatpush1.msra.mxu0 0.0
      %1991 = vmatprep.subr.mxu0 0.0
      %1992 = vmatpush1.msra.mxu0 0.0
      %1993 = vmatprep.subr.mxu0 0.0
      %1994 = vmatpush1.msra.mxu0 0.0
      %1995 = vmatprep.subr.mxu0 0.0
      %1996 = vmatpush1.msra.mxu0 0.0
      %1997 = vmatprep.subr.mxu0 0.0
      %1998 = vmatpush1.msra.mxu0 0.0
      %1999 = vmatprep.subr.mxu0 0.0
      %2000 = vmatpush1.msra.mxu0 0.0
      %2001 = vmatprep.subr.mxu0 0.0
      %2002 = vmatpush1.msra.mxu0 0.0
      %2003 = vmatprep.subr.mxu0 0.0
      %2004 = vmatpush1.msra.mxu0 0.0
      %2005 = vmatprep.subr.mxu0 0.0
      %2006 = vmatpush1.msra.mxu0 0.0
      %2007 = vmatprep.subr.mxu0 0.0
      %2008 = vmatpush1.msra.mxu0 0.0
      %2009 = vmatprep.subr.mxu0 0.0
      %2010 = vmatpush1.msra.mxu0 0.0
      %2011 = vmatprep.subr.mxu0 0.0
      %2012 = vmatpush1.msra.mxu0 0.0
      %2013 = vmatprep.mubr.f32.mxu0 0.0
      %2014 = vmatmul.mubr.f32.gmra.mrb[0].mxu0 %v1926
      %v2015 = vpop.f32.mrb[0].mxu0
      %v2016 = vadd.f32 0.0, %v2015
      %v2017 = vpop.f32.mrb[0].mxu0
      %2018 = vmatprep.mubr.f32.mxu0 0.0
      %2019 = vmatmul.mubr.f32.gmra.mrb[0].mxu0 %v1929
      %v2020 = vpop.f32.mrb[0].mxu0
      %v2021 = vadd.f32 0.0, %v2020
      %v2022 = vpop.f32.mrb[0].mxu0
      %2023 = vmatprep.mubr.f32.mxu0 0.0
      %2024 = vmatmul.mubr.f32.gmra.mrb[0].mxu0 %v1932
      %v2025 = vpop.f32.mrb[0].mxu0
      %v2026 = vadd.f32 0.0, %v2025
      %v2027 = vpop.f32.mrb[0].mxu0
      %2028 = vmatprep.mubr.f32.mxu0 0.0
      %2029 = vmatmul.mubr.f32.gmra.mrb[0].mxu0 %v1935
      %v2030 = vpop.f32.mrb[0].mxu0
      %v2031 = vadd.f32 0.0, %v2030
      %v2032 = vpop.f32.mrb[0].mxu0
      %2033 = vmatprep.mubr.f32.mxu0 0.0
      %2034 = vmatmul.mubr.f32.gmra.mrb[0].mxu0 %v1938
      %v2035 = vpop.f32.mrb[0].mxu0
      %v2036 = vadd.f32 0.0, %v2035
      %v2037 = vpop.f32.mrb[0].mxu0
      %2038 = vmatprep.mubr.f32.mxu0 0.0
      %2039 = vmatmul.mubr.f32.gmra.mrb[0].mxu0 %v1941
      %v2040 = vpop.f32.mrb[0].mxu0
      %v2041 = vadd.f32 0.0, %v2040
      %v2042 = vpop.f32.mrb[0].mxu0
      %2043 = vmatprep.mubr.f32.mxu0 0.0
      %2044 = vmatmul.mubr.f32.gmra.mrb[0].mxu0 %v1944
      %v2045 = vpop.f32.mrb[0].mxu0
      %v2046 = vadd.f32 0.0, %v2045
      %v2047 = vpop.f32.mrb[0].mxu0
      %2048 = vmatprep.mubr.f32.mxu0 0.0
      %2049 = vmatmul.mubr.f32.gmra.mrb[0].mxu0 %v1947
      %v2050 = vpop.f32.mrb[0].mxu0
      %v2051 = vadd.f32 0.0, %v2050
      %v2052 = vpop.f32.mrb[0].mxu0
      %2053 = vdwg.mxu0
      %v2054 = vadd.f32 %v1900, %v2016
      %v2055 = vadd.f32 %v1901, %v2021
      %v2056 = vadd.f32 %v1902, %v2026
      %v2057 = vadd.f32 %v1903, %v2031
      %v2058 = vadd.f32 %v1904, %v2036
      %v2059 = vadd.f32 %v1905, %v2041
      %v2060 = vadd.f32 %v1906, %v2046
      %v2061 = vadd.f32 %v1907, %v2051
      %s2062 = scalar_lea.vmem %s5, 224
      %v2063 = vld [vmem:[%s2062] sm:$0xf]
      %v2064 = vld [vmem:[%s2062 + $0x4] sm:$0xf]
      %v2065 = vld [vmem:[%s2062 + $0x8] sm:$0xf]
      %v2066 = vld [vmem:[%s2062 + $0xc] sm:$0xf]
      %v2067 = vld [vmem:[%s2062 + $0x10] sm:$0xf]
      %v2068 = vld [vmem:[%s2062 + $0x14] sm:$0xf]
      %v2069 = vld [vmem:[%s2062 + $0x18] sm:$0xf]
      %v2070 = vld [vmem:[%s2062 + $0x1c] sm:$0xf]
      %v2071 = vunpack.c.l.bf16 %v2063
      %v2072 = vunpack.c.l.bf16 %v2064
      %v2073 = vunpack.c.l.bf16 %v2065
      %v2074 = vunpack.c.l.bf16 %v2066
      %v2075 = vunpack.c.l.bf16 %v2067
      %v2076 = vunpack.c.l.bf16 %v2068
      %v2077 = vunpack.c.l.bf16 %v2069
      %v2078 = vunpack.c.l.bf16 %v2070
      %v2080 = vsel %vm359, %v923, 0
      %v2083 = vsel %vm359, %v928, 0
      %v2086 = vsel %vm359, %v933, 0
      %v2089 = vsel %vm359, %v938, 0
      %v2092 = vsel %vm359, %v943, 0
      %v2095 = vsel %vm359, %v948, 0
      %v2098 = vsel %vm359, %v953, 0
      %v2101 = vsel %vm359, %v958, 0
      %2103 = vmatprep.subr.mxu0 0.0
      %2104 = vmatpush1.msra.mxu0 %v2071
      %2105 = vmatprep.subr.mxu0 0.0
      %2106 = vmatpush1.msra.mxu0 %v2072
      %2107 = vmatprep.subr.mxu0 0.0
      %2108 = vmatpush1.msra.mxu0 %v2073
      %2109 = vmatprep.subr.mxu0 0.0
      %2110 = vmatpush1.msra.mxu0 %v2074
      %2111 = vmatprep.subr.mxu0 0.0
      %2112 = vmatpush1.msra.mxu0 %v2075
      %2113 = vmatprep.subr.mxu0 0.0
      %2114 = vmatpush1.msra.mxu0 %v2076
      %2115 = vmatprep.subr.mxu0 0.0
      %2116 = vmatpush1.msra.mxu0 %v2077
      %2117 = vmatprep.subr.mxu0 0.0
      %2118 = vmatpush1.msra.mxu0 %v2078
      %2119 = vmatprep.subr.mxu0 0.0
      %2120 = vmatpush1.msra.mxu0 0.0
      %2121 = vmatprep.subr.mxu0 0.0
      %2122 = vmatpush1.msra.mxu0 0.0
      %2123 = vmatprep.subr.mxu0 0.0
      %2124 = vmatpush1.msra.mxu0 0.0
      %2125 = vmatprep.subr.mxu0 0.0
      %2126 = vmatpush1.msra.mxu0 0.0
      %2127 = vmatprep.subr.mxu0 0.0
      %2128 = vmatpush1.msra.mxu0 0.0
      %2129 = vmatprep.subr.mxu0 0.0
      %2130 = vmatpush1.msra.mxu0 0.0
      %2131 = vmatprep.subr.mxu0 0.0
      %2132 = vmatpush1.msra.mxu0 0.0
      %2133 = vmatprep.subr.mxu0 0.0
      %2134 = vmatpush1.msra.mxu0 0.0
      %2135 = vmatprep.subr.mxu0 0.0
      %2136 = vmatpush1.msra.mxu0 0.0
      %2137 = vmatprep.subr.mxu0 0.0
      %2138 = vmatpush1.msra.mxu0 0.0
      %2139 = vmatprep.subr.mxu0 0.0
      %2140 = vmatpush1.msra.mxu0 0.0
      %2141 = vmatprep.subr.mxu0 0.0
      %2142 = vmatpush1.msra.mxu0 0.0
      %2143 = vmatprep.subr.mxu0 0.0
      %2144 = vmatpush1.msra.mxu0 0.0
      %2145 = vmatprep.subr.mxu0 0.0
      %2146 = vmatpush1.msra.mxu0 0.0
      %2147 = vmatprep.subr.mxu0 0.0
      %2148 = vmatpush1.msra.mxu0 0.0
      %2149 = vmatprep.subr.mxu0 0.0
      %2150 = vmatpush1.msra.mxu0 0.0
      %2151 = vmatprep.subr.mxu0 0.0
      %2152 = vmatpush1.msra.mxu0 0.0
      %2153 = vmatprep.subr.mxu0 0.0
      %2154 = vmatpush1.msra.mxu0 0.0
      %2155 = vmatprep.subr.mxu0 0.0
      %2156 = vmatpush1.msra.mxu0 0.0
      %2157 = vmatprep.subr.mxu0 0.0
      %2158 = vmatpush1.msra.mxu0 0.0
      %2159 = vmatprep.subr.mxu0 0.0
      %2160 = vmatpush1.msra.mxu0 0.0
      %2161 = vmatprep.subr.mxu0 0.0
      %2162 = vmatpush1.msra.mxu0 0.0
      %2163 = vmatprep.subr.mxu0 0.0
      %2164 = vmatpush1.msra.mxu0 0.0
      %2165 = vmatprep.subr.mxu0 0.0
      %2166 = vmatpush1.msra.mxu0 0.0
      %2167 = vmatprep.mubr.f32.mxu0 0.0
      %2168 = vmatmul.mubr.f32.gmra.mrb[0].mxu0 %v2080
      %v2169 = vpop.f32.mrb[0].mxu0
      %v2170 = vadd.f32 0.0, %v2169
      %v2171 = vpop.f32.mrb[0].mxu0
      %2172 = vmatprep.mubr.f32.mxu0 0.0
      %2173 = vmatmul.mubr.f32.gmra.mrb[0].mxu0 %v2083
      %v2174 = vpop.f32.mrb[0].mxu0
      %v2175 = vadd.f32 0.0, %v2174
      %v2176 = vpop.f32.mrb[0].mxu0
      %2177 = vmatprep.mubr.f32.mxu0 0.0
      %2178 = vmatmul.mubr.f32.gmra.mrb[0].mxu0 %v2086
      %v2179 = vpop.f32.mrb[0].mxu0
      %v2180 = vadd.f32 0.0, %v2179
      %v2181 = vpop.f32.mrb[0].mxu0
      %2182 = vmatprep.mubr.f32.mxu0 0.0
      %2183 = vmatmul.mubr.f32.gmra.mrb[0].mxu0 %v2089
      %v2184 = vpop.f32.mrb[0].mxu0
      %v2185 = vadd.f32 0.0, %v2184
      %v2186 = vpop.f32.mrb[0].mxu0
      %2187 = vmatprep.mubr.f32.mxu0 0.0
      %2188 = vmatmul.mubr.f32.gmra.mrb[0].mxu0 %v2092
      %v2189 = vpop.f32.mrb[0].mxu0
      %v2190 = vadd.f32 0.0, %v2189
      %v2191 = vpop.f32.mrb[0].mxu0
      %2192 = vmatprep.mubr.f32.mxu0 0.0
      %2193 = vmatmul.mubr.f32.gmra.mrb[0].mxu0 %v2095
      %v2194 = vpop.f32.mrb[0].mxu0
      %v2195 = vadd.f32 0.0, %v2194
      %v2196 = vpop.f32.mrb[0].mxu0
      %2197 = vmatprep.mubr.f32.mxu0 0.0
      %2198 = vmatmul.mubr.f32.gmra.mrb[0].mxu0 %v2098
      %v2199 = vpop.f32.mrb[0].mxu0
      %v2200 = vadd.f32 0.0, %v2199
      %v2201 = vpop.f32.mrb[0].mxu0
      %2202 = vmatprep.mubr.f32.mxu0 0.0
      %2203 = vmatmul.mubr.f32.gmra.mrb[0].mxu0 %v2101
      %v2204 = vpop.f32.mrb[0].mxu0
      %v2205 = vadd.f32 0.0, %v2204
      %v2206 = vpop.f32.mrb[0].mxu0
      %2207 = vdwg.mxu0
      %v2208 = vadd.f32 %v2054, %v2170
      %v2209 = vadd.f32 %v2055, %v2175
      %v2210 = vadd.f32 %v2056, %v2180
      %v2211 = vadd.f32 %v2057, %v2185
      %v2212 = vadd.f32 %v2058, %v2190
      %v2213 = vadd.f32 %v2059, %v2195
      %v2214 = vadd.f32 %v2060, %v2200
      %v2215 = vadd.f32 %v2061, %v2205
      %s2216 = scalar_lea.vmem %s5, 256
      %v2217 = vld [vmem:[%s2216] sm:$0xf]
      %v2218 = vld [vmem:[%s2216 + $0x4] sm:$0xf]
      %v2219 = vld [vmem:[%s2216 + $0x8] sm:$0xf]
      %v2220 = vld [vmem:[%s2216 + $0xc] sm:$0xf]
      %v2221 = vld [vmem:[%s2216 + $0x10] sm:$0xf]
      %v2222 = vld [vmem:[%s2216 + $0x14] sm:$0xf]
      %v2223 = vld [vmem:[%s2216 + $0x18] sm:$0xf]
      %v2224 = vld [vmem:[%s2216 + $0x1c] sm:$0xf]
      %v2225 = vunpack.c.l.bf16 %v2217
      %v2226 = vunpack.c.l.bf16 %v2218
      %v2227 = vunpack.c.l.bf16 %v2219
      %v2228 = vunpack.c.l.bf16 %v2220
      %v2229 = vunpack.c.l.bf16 %v2221
      %v2230 = vunpack.c.l.bf16 %v2222
      %v2231 = vunpack.c.l.bf16 %v2223
      %v2232 = vunpack.c.l.bf16 %v2224
      %v2234 = vsel %vm359, %v963, 0
      %v2237 = vsel %vm359, %v968, 0
      %v2240 = vsel %vm359, %v973, 0
      %v2243 = vsel %vm359, %v978, 0
      %v2246 = vsel %vm359, %v983, 0
      %v2249 = vsel %vm359, %v988, 0
      %v2252 = vsel %vm359, %v993, 0
      %v2255 = vsel %vm359, %v998, 0
      %2257 = vmatprep.subr.mxu0 0.0
      %2258 = vmatpush1.msra.mxu0 %v2225
      %2259 = vmatprep.subr.mxu0 0.0
      %2260 = vmatpush1.msra.mxu0 %v2226
      %2261 = vmatprep.subr.mxu0 0.0
      %2262 = vmatpush1.msra.mxu0 %v2227
      %2263 = vmatprep.subr.mxu0 0.0
      %2264 = vmatpush1.msra.mxu0 %v2228
      %2265 = vmatprep.subr.mxu0 0.0
      %2266 = vmatpush1.msra.mxu0 %v2229
      %2267 = vmatprep.subr.mxu0 0.0
      %2268 = vmatpush1.msra.mxu0 %v2230
      %2269 = vmatprep.subr.mxu0 0.0
      %2270 = vmatpush1.msra.mxu0 %v2231
      %2271 = vmatprep.subr.mxu0 0.0
      %2272 = vmatpush1.msra.mxu0 %v2232
      %2273 = vmatprep.subr.mxu0 0.0
      %2274 = vmatpush1.msra.mxu0 0.0
      %2275 = vmatprep.subr.mxu0 0.0
      %2276 = vmatpush1.msra.mxu0 0.0
      %2277 = vmatprep.subr.mxu0 0.0
      %2278 = vmatpush1.msra.mxu0 0.0
      %2279 = vmatprep.subr.mxu0 0.0
      %2280 = vmatpush1.msra.mxu0 0.0
      %2281 = vmatprep.subr.mxu0 0.0
      %2282 = vmatpush1.msra.mxu0 0.0
      %2283 = vmatprep.subr.mxu0 0.0
      %2284 = vmatpush1.msra.mxu0 0.0
      %2285 = vmatprep.subr.mxu0 0.0
      %2286 = vmatpush1.msra.mxu0 0.0
      %2287 = vmatprep.subr.mxu0 0.0
      %2288 = vmatpush1.msra.mxu0 0.0
      %2289 = vmatprep.subr.mxu0 0.0
      %2290 = vmatpush1.msra.mxu0 0.0
      %2291 = vmatprep.subr.mxu0 0.0
      %2292 = vmatpush1.msra.mxu0 0.0
      %2293 = vmatprep.subr.mxu0 0.0
      %2294 = vmatpush1.msra.mxu0 0.0
      %2295 = vmatprep.subr.mxu0 0.0
      %2296 = vmatpush1.msra.mxu0 0.0
      %2297 = vmatprep.subr.mxu0 0.0
      %2298 = vmatpush1.msra.mxu0 0.0
      %2299 = vmatprep.subr.mxu0 0.0
      %2300 = vmatpush1.msra.mxu0 0.0
      %2301 = vmatprep.subr.mxu0 0.0
      %2302 = vmatpush1.msra.mxu0 0.0
      %2303 = vmatprep.subr.mxu0 0.0
      %2304 = vmatpush1.msra.mxu0 0.0
      %2305 = vmatprep.subr.mxu0 0.0
      %2306 = vmatpush1.msra.mxu0 0.0
      %2307 = vmatprep.subr.mxu0 0.0
      %2308 = vmatpush1.msra.mxu0 0.0
      %2309 = vmatprep.subr.mxu0 0.0
      %2310 = vmatpush1.msra.mxu0 0.0
      %2311 = vmatprep.subr.mxu0 0.0
      %2312 = vmatpush1.msra.mxu0 0.0
      %2313 = vmatprep.subr.mxu0 0.0
      %2314 = vmatpush1.msra.mxu0 0.0
      %2315 = vmatprep.subr.mxu0 0.0
      %2316 = vmatpush1.msra.mxu0 0.0
      %2317 = vmatprep.subr.mxu0 0.0
      %2318 = vmatpush1.msra.mxu0 0.0
      %2319 = vmatprep.subr.mxu0 0.0
      %2320 = vmatpush1.msra.mxu0 0.0
      %2321 = vmatprep.mubr.f32.mxu0 0.0
      %2322 = vmatmul.mubr.f32.gmra.mrb[0].mxu0 %v2234
      %v2323 = vpop.f32.mrb[0].mxu0
      %v2324 = vadd.f32 0.0, %v2323
      %v2325 = vpop.f32.mrb[0].mxu0
      %2326 = vmatprep.mubr.f32.mxu0 0.0
      %2327 = vmatmul.mubr.f32.gmra.mrb[0].mxu0 %v2237
      %v2328 = vpop.f32.mrb[0].mxu0
      %v2329 = vadd.f32 0.0, %v2328
      %v2330 = vpop.f32.mrb[0].mxu0
      %2331 = vmatprep.mubr.f32.mxu0 0.0
      %2332 = vmatmul.mubr.f32.gmra.mrb[0].mxu0 %v2240
      %v2333 = vpop.f32.mrb[0].mxu0
      %v2334 = vadd.f32 0.0, %v2333
      %v2335 = vpop.f32.mrb[0].mxu0
      %2336 = vmatprep.mubr.f32.mxu0 0.0
      %2337 = vmatmul.mubr.f32.gmra.mrb[0].mxu0 %v2243
      %v2338 = vpop.f32.mrb[0].mxu0
      %v2339 = vadd.f32 0.0, %v2338
      %v2340 = vpop.f32.mrb[0].mxu0
      %2341 = vmatprep.mubr.f32.mxu0 0.0
      %2342 = vmatmul.mubr.f32.gmra.mrb[0].mxu0 %v2246
      %v2343 = vpop.f32.mrb[0].mxu0
      %v2344 = vadd.f32 0.0, %v2343
      %v2345 = vpop.f32.mrb[0].mxu0
      %2346 = vmatprep.mubr.f32.mxu0 0.0
      %2347 = vmatmul.mubr.f32.gmra.mrb[0].mxu0 %v2249
      %v2348 = vpop.f32.mrb[0].mxu0
      %v2349 = vadd.f32 0.0, %v2348
      %v2350 = vpop.f32.mrb[0].mxu0
      %2351 = vmatprep.mubr.f32.mxu0 0.0
      %2352 = vmatmul.mubr.f32.gmra.mrb[0].mxu0 %v2252
      %v2353 = vpop.f32.mrb[0].mxu0
      %v2354 = vadd.f32 0.0, %v2353
      %v2355 = vpop.f32.mrb[0].mxu0
      %2356 = vmatprep.mubr.f32.mxu0 0.0
      %2357 = vmatmul.mubr.f32.gmra.mrb[0].mxu0 %v2255
      %v2358 = vpop.f32.mrb[0].mxu0
      %v2359 = vadd.f32 0.0, %v2358
      %v2360 = vpop.f32.mrb[0].mxu0
      %2361 = vdwg.mxu0
      %v2362 = vadd.f32 %v2208, %v2324
      %v2363 = vadd.f32 %v2209, %v2329
      %v2364 = vadd.f32 %v2210, %v2334
      %v2365 = vadd.f32 %v2211, %v2339
      %v2366 = vadd.f32 %v2212, %v2344
      %v2367 = vadd.f32 %v2213, %v2349
      %v2368 = vadd.f32 %v2214, %v2354
      %v2369 = vadd.f32 %v2215, %v2359
      %v2370 = vld [vmem:[%s2] sm:$0xff]
      %v2371 = vld [vmem:[%s2 + $0x8] sm:$0xff]
      %v2372 = vld [vmem:[%s2 + $0x10] sm:$0xff]
      %v2373 = vld [vmem:[%s2 + $0x18] sm:$0xff]
      %v2374 = vld [vmem:[%s2 + $0x20] sm:$0xff]
      %v2375 = vld [vmem:[%s2 + $0x28] sm:$0xff]
      %v2376 = vld [vmem:[%s2 + $0x30] sm:$0xff]
      %v2377 = vld [vmem:[%s2 + $0x38] sm:$0xff]
      %2379 = vset.pattern.permute.xlu0 0
      %2380 = vperm.xlu0 %2379, %v2370
      %v2381 = vpop.permute.xlu0 %2380
      %2384 = vset.pattern.permute.xlu0 0
      %2385 = vperm.xlu0 %2384, %v2371
      %v2386 = vpop.permute.xlu0 %2385
      %2389 = vset.pattern.permute.xlu0 0
      %2390 = vperm.xlu0 %2389, %v2372
      %v2391 = vpop.permute.xlu0 %2390
      %2394 = vset.pattern.permute.xlu0 0
      %2395 = vperm.xlu0 %2394, %v2373
      %v2396 = vpop.permute.xlu0 %2395
      %2399 = vset.pattern.permute.xlu0 0
      %2400 = vperm.xlu0 %2399, %v2374
      %v2401 = vpop.permute.xlu0 %2400
      %2404 = vset.pattern.permute.xlu0 0
      %2405 = vperm.xlu0 %2404, %v2375
      %v2406 = vpop.permute.xlu0 %2405
      %2409 = vset.pattern.permute.xlu0 0
      %2410 = vperm.xlu0 %2409, %v2376
      %v2411 = vpop.permute.xlu0 %2410
      %2414 = vset.pattern.permute.xlu0 0
      %2415 = vperm.xlu0 %2414, %v2377
      %v2416 = vpop.permute.xlu0 %2415
      %v2418 = vadd.f32 %v2362, %v2381
      %v2419 = vadd.f32 %v2363, %v2386
      %v2420 = vadd.f32 %v2364, %v2391
      %v2421 = vadd.f32 %v2365, %v2396
      %v2422 = vadd.f32 %v2366, %v2401
      %v2423 = vadd.f32 %v2367, %v2406
      %v2424 = vadd.f32 %v2368, %v2411
      %v2425 = vadd.f32 %v2369, %v2416
      %v2426 = vmax.f32 %v2418, 0.0
      %v2427 = vmax.f32 %v2419, 0.0
      %v2428 = vmax.f32 %v2420, 0.0
      %v2429 = vmax.f32 %v2421, 0.0
      %v2430 = vmax.f32 %v2422, 0.0
      %v2431 = vmax.f32 %v2423, 0.0
      %v2432 = vmax.f32 %v2424, 0.0
      %v2433 = vmax.f32 %v2425, 0.0
      %v2434 = vld [vmem:[%s3] sm:$0xff]
      %v2435 = vld [vmem:[%s3 + $0x8] sm:$0xff]
      %v2436 = vld [vmem:[%s3 + $0x10] sm:$0xff]
      %v2437 = vld [vmem:[%s3 + $0x18] sm:$0xff]
      %v2438 = vld [vmem:[%s3 + $0x20] sm:$0xff]
      %v2439 = vld [vmem:[%s3 + $0x28] sm:$0xff]
      %v2440 = vld [vmem:[%s3 + $0x30] sm:$0xff]
      %v2441 = vld [vmem:[%s3 + $0x38] sm:$0xff]
      %v2442 = vld [vmem:[%s3 + $0x40] sm:$0xff]
      %v2444 = vsel %vm359, %v2434, 0
      %v2447 = vsel %vm359, %v2435, 0
      %v2450 = vsel %vm359, %v2436, 0
      %v2453 = vsel %vm359, %v2437, 0
      %v2456 = vsel %vm359, %v2438, 0
      %v2459 = vsel %vm359, %v2439, 0
      %v2462 = vsel %vm359, %v2440, 0
      %v2465 = vsel %vm359, %v2441, 0
      %v2468 = vsel %vm359, %v2442, 0
      %2470 = vmatprep.subr.mxu0 0.0
      %2471 = vmatpush1.msra.mxu0 %v2426
      %2472 = vmatprep.subr.mxu0 0.0
      %2473 = vmatpush1.msra.mxu0 %v2427
      %2474 = vmatprep.subr.mxu0 0.0
      %2475 = vmatpush1.msra.mxu0 %v2428
      %2476 = vmatprep.subr.mxu0 0.0
      %2477 = vmatpush1.msra.mxu0 %v2429
      %2478 = vmatprep.subr.mxu0 0.0
      %2479 = vmatpush1.msra.mxu0 %v2430
      %2480 = vmatprep.subr.mxu0 0.0
      %2481 = vmatpush1.msra.mxu0 %v2431
      %2482 = vmatprep.subr.mxu0 0.0
      %2483 = vmatpush1.msra.mxu0 %v2432
      %2484 = vmatprep.subr.mxu0 0.0
      %2485 = vmatpush1.msra.mxu0 %v2433
      %2486 = vmatprep.subr.mxu0 0.0
      %2487 = vmatpush1.msra.mxu0 0.0
      %2488 = vmatprep.subr.mxu0 0.0
      %2489 = vmatpush1.msra.mxu0 0.0
      %2490 = vmatprep.subr.mxu0 0.0
      %2491 = vmatpush1.msra.mxu0 0.0
      %2492 = vmatprep.subr.mxu0 0.0
      %2493 = vmatpush1.msra.mxu0 0.0
      %2494 = vmatprep.subr.mxu0 0.0
      %2495 = vmatpush1.msra.mxu0 0.0
      %2496 = vmatprep.subr.mxu0 0.0
      %2497 = vmatpush1.msra.mxu0 0.0
      %2498 = vmatprep.subr.mxu0 0.0
      %2499 = vmatpush1.msra.mxu0 0.0
      %2500 = vmatprep.subr.mxu0 0.0
      %2501 = vmatpush1.msra.mxu0 0.0
      %2502 = vmatprep.subr.mxu0 0.0
      %2503 = vmatpush1.msra.mxu0 0.0
      %2504 = vmatprep.subr.mxu0 0.0
      %2505 = vmatpush1.msra.mxu0 0.0
      %2506 = vmatprep.subr.mxu0 0.0
      %2507 = vmatpush1.msra.mxu0 0.0
      %2508 = vmatprep.subr.mxu0 0.0
      %2509 = vmatpush1.msra.mxu0 0.0
      %2510 = vmatprep.subr.mxu0 0.0
      %2511 = vmatpush1.msra.mxu0 0.0
      %2512 = vmatprep.subr.mxu0 0.0
      %2513 = vmatpush1.msra.mxu0 0.0
      %2514 = vmatprep.subr.mxu0 0.0
      %2515 = vmatpush1.msra.mxu0 0.0
      %2516 = vmatprep.subr.mxu0 0.0
      %2517 = vmatpush1.msra.mxu0 0.0
      %2518 = vmatprep.subr.mxu0 0.0
      %2519 = vmatpush1.msra.mxu0 0.0
      %2520 = vmatprep.subr.mxu0 0.0
      %2521 = vmatpush1.msra.mxu0 0.0
      %2522 = vmatprep.subr.mxu0 0.0
      %2523 = vmatpush1.msra.mxu0 0.0
      %2524 = vmatprep.subr.mxu0 0.0
      %2525 = vmatpush1.msra.mxu0 0.0
      %2526 = vmatprep.subr.mxu0 0.0
      %2527 = vmatpush1.msra.mxu0 0.0
      %2528 = vmatprep.subr.mxu0 0.0
      %2529 = vmatpush1.msra.mxu0 0.0
      %2530 = vmatprep.subr.mxu0 0.0
      %2531 = vmatpush1.msra.mxu0 0.0
      %2532 = vmatprep.subr.mxu0 0.0
      %2533 = vmatpush1.msra.mxu0 0.0
      %2534 = vmatprep.mubr.f32.mxu0 0.0
      %2535 = vmatmul.mubr.f32.gmra.mrb[0].mxu0 %v2444
      %v2536 = vpop.f32.mrb[0].mxu0
      %v2537 = vadd.f32 0.0, %v2536
      %v2538 = vpop.f32.mrb[0].mxu0
      %2539 = vmatprep.mubr.f32.mxu0 0.0
      %2540 = vmatmul.mubr.f32.gmra.mrb[0].mxu0 %v2447
      %v2541 = vpop.f32.mrb[0].mxu0
      %v2542 = vadd.f32 0.0, %v2541
      %v2543 = vpop.f32.mrb[0].mxu0
      %2544 = vmatprep.mubr.f32.mxu0 0.0
      %2545 = vmatmul.mubr.f32.gmra.mrb[0].mxu0 %v2450
      %v2546 = vpop.f32.mrb[0].mxu0
      %v2547 = vadd.f32 0.0, %v2546
      %v2548 = vpop.f32.mrb[0].mxu0
      %2549 = vmatprep.mubr.f32.mxu0 0.0
      %2550 = vmatmul.mubr.f32.gmra.mrb[0].mxu0 %v2453
      %v2551 = vpop.f32.mrb[0].mxu0
      %v2552 = vadd.f32 0.0, %v2551
      %v2553 = vpop.f32.mrb[0].mxu0
      %2554 = vmatprep.mubr.f32.mxu0 0.0
      %2555 = vmatmul.mubr.f32.gmra.mrb[0].mxu0 %v2456
      %v2556 = vpop.f32.mrb[0].mxu0
      %v2557 = vadd.f32 0.0, %v2556
      %v2558 = vpop.f32.mrb[0].mxu0
      %2559 = vmatprep.mubr.f32.mxu0 0.0
      %2560 = vmatmul.mubr.f32.gmra.mrb[0].mxu0 %v2459
      %v2561 = vpop.f32.mrb[0].mxu0
      %v2562 = vadd.f32 0.0, %v2561
      %v2563 = vpop.f32.mrb[0].mxu0
      %2564 = vmatprep.mubr.f32.mxu0 0.0
      %2565 = vmatmul.mubr.f32.gmra.mrb[0].mxu0 %v2462
      %v2566 = vpop.f32.mrb[0].mxu0
      %v2567 = vadd.f32 0.0, %v2566
      %v2568 = vpop.f32.mrb[0].mxu0
      %2569 = vmatprep.mubr.f32.mxu0 0.0
      %2570 = vmatmul.mubr.f32.gmra.mrb[0].mxu0 %v2465
      %v2571 = vpop.f32.mrb[0].mxu0
      %v2572 = vadd.f32 0.0, %v2571
      %v2573 = vpop.f32.mrb[0].mxu0
      %2574 = vmatprep.mubr.f32.mxu0 0.0
      %2575 = vmatmul.mubr.f32.gmra.mrb[0].mxu0 %v2468
      %v2576 = vpop.f32.mrb[0].mxu0
      %v2577 = vadd.f32 0.0, %v2576
      %v2578 = vpop.f32.mrb[0].mxu0
      %2579 = vdwg.mxu0
      %v2580 = vld [vmem:[%s6] sm:$0xff]
      %v2581 = vld [vmem:[%s6 + $0x8] sm:$0xff]
      %v2582 = vld [vmem:[%s6 + $0x10] sm:$0xff]
      %v2583 = vld [vmem:[%s6 + $0x18] sm:$0xff]
      %v2584 = vld [vmem:[%s6 + $0x20] sm:$0xff]
      %v2585 = vld [vmem:[%s6 + $0x28] sm:$0xff]
      %v2586 = vld [vmem:[%s6 + $0x30] sm:$0xff]
      %v2587 = vld [vmem:[%s6 + $0x38] sm:$0xff]
      %v2588 = vunpack.c.l.bf16 %v2580
      %v2589 = vunpack.c.h.bf16 %v2580
      %v2590 = vunpack.c.l.bf16 %v2581
      %v2591 = vunpack.c.h.bf16 %v2581
      %v2592 = vunpack.c.l.bf16 %v2582
      %v2593 = vunpack.c.h.bf16 %v2582
      %v2594 = vunpack.c.l.bf16 %v2583
      %v2595 = vunpack.c.h.bf16 %v2583
      %v2596 = vunpack.c.l.bf16 %v2584
      %v2597 = vunpack.c.h.bf16 %v2584
      %v2598 = vunpack.c.l.bf16 %v2585
      %v2599 = vunpack.c.h.bf16 %v2585
      %v2600 = vunpack.c.l.bf16 %v2586
      %v2601 = vunpack.c.h.bf16 %v2586
      %v2602 = vunpack.c.l.bf16 %v2587
      %v2603 = vunpack.c.h.bf16 %v2587
      %s2604 = scalar_lea.vmem %s6, 64
      %v2605 = vld [vmem:[%s2604] sm:$0xff]
      %v2606 = vld [vmem:[%s2604 + $0x8] sm:$0xff]
      %v2607 = vld [vmem:[%s2604 + $0x10] sm:$0xff]
      %v2608 = vld [vmem:[%s2604 + $0x18] sm:$0xff]
      %v2609 = vld [vmem:[%s2604 + $0x20] sm:$0xff]
      %v2610 = vld [vmem:[%s2604 + $0x28] sm:$0xff]
      %v2611 = vld [vmem:[%s2604 + $0x30] sm:$0xff]
      %v2612 = vld [vmem:[%s2604 + $0x38] sm:$0xff]
      %v2613 = vunpack.c.l.bf16 %v2605
      %v2614 = vunpack.c.h.bf16 %v2605
      %v2615 = vunpack.c.l.bf16 %v2606
      %v2616 = vunpack.c.h.bf16 %v2606
      %v2617 = vunpack.c.l.bf16 %v2607
      %v2618 = vunpack.c.h.bf16 %v2607
      %v2619 = vunpack.c.l.bf16 %v2608
      %v2620 = vunpack.c.h.bf16 %v2608
      %v2621 = vunpack.c.l.bf16 %v2609
      %v2622 = vunpack.c.h.bf16 %v2609
      %v2623 = vunpack.c.l.bf16 %v2610
      %v2624 = vunpack.c.h.bf16 %v2610
      %v2625 = vunpack.c.l.bf16 %v2611
      %v2626 = vunpack.c.h.bf16 %v2611
      %v2627 = vunpack.c.l.bf16 %v2612
      %v2628 = vunpack.c.h.bf16 %v2612
      %v2630 = vsel %vm359, %v2542, 0
      %2632 = vmatprep.subr.mxu0 %v2614
      %2633 = vmatpush1.msra.mxu0 %v2613
      %2634 = vmatprep.subr.mxu0 %v2616
      %2635 = vmatpush1.msra.mxu0 %v2615
      %2636 = vmatprep.subr.mxu0 %v2618
      %2637 = vmatpush1.msra.mxu0 %v2617
      %2638 = vmatprep.subr.mxu0 %v2620
      %2639 = vmatpush1.msra.mxu0 %v2619
      %2640 = vmatprep.subr.mxu0 %v2622
      %2641 = vmatpush1.msra.mxu0 %v2621
      %2642 = vmatprep.subr.mxu0 %v2624
      %2643 = vmatpush1.msra.mxu0 %v2623
      %2644 = vmatprep.subr.mxu0 %v2626
      %2645 = vmatpush1.msra.mxu0 %v2625
      %2646 = vmatprep.subr.mxu0 %v2628
      %2647 = vmatpush1.msra.mxu0 %v2627
      %2648 = vmatprep.subr.mxu0 0.0
      %2649 = vmatpush1.msra.mxu0 0.0
      %2650 = vmatprep.subr.mxu0 0.0
      %2651 = vmatpush1.msra.mxu0 0.0
      %2652 = vmatprep.subr.mxu0 0.0
      %2653 = vmatpush1.msra.mxu0 0.0
      %2654 = vmatprep.subr.mxu0 0.0
      %2655 = vmatpush1.msra.mxu0 0.0
      %2656 = vmatprep.subr.mxu0 0.0
      %2657 = vmatpush1.msra.mxu0 0.0
      %2658 = vmatprep.subr.mxu0 0.0
      %2659 = vmatpush1.msra.mxu0 0.0
      %2660 = vmatprep.subr.mxu0 0.0
      %2661 = vmatpush1.msra.mxu0 0.0
      %2662 = vmatprep.subr.mxu0 0.0
      %2663 = vmatpush1.msra.mxu0 0.0
      %2664 = vmatprep.subr.mxu0 0.0
      %2665 = vmatpush1.msra.mxu0 0.0
      %2666 = vmatprep.subr.mxu0 0.0
      %2667 = vmatpush1.msra.mxu0 0.0
      %2668 = vmatprep.subr.mxu0 0.0
      %2669 = vmatpush1.msra.mxu0 0.0
      %2670 = vmatprep.subr.mxu0 0.0
      %2671 = vmatpush1.msra.mxu0 0.0
      %2672 = vmatprep.subr.mxu0 0.0
      %2673 = vmatpush1.msra.mxu0 0.0
      %2674 = vmatprep.subr.mxu0 0.0
      %2675 = vmatpush1.msra.mxu0 0.0
      %2676 = vmatprep.subr.mxu0 0.0
      %2677 = vmatpush1.msra.mxu0 0.0
      %2678 = vmatprep.subr.mxu0 0.0
      %2679 = vmatpush1.msra.mxu0 0.0
      %2680 = vmatprep.subr.mxu0 0.0
      %2681 = vmatpush1.msra.mxu0 0.0
      %2682 = vmatprep.subr.mxu0 0.0
      %2683 = vmatpush1.msra.mxu0 0.0
      %2684 = vmatprep.subr.mxu0 0.0
      %2685 = vmatpush1.msra.mxu0 0.0
      %2686 = vmatprep.subr.mxu0 0.0
      %2687 = vmatpush1.msra.mxu0 0.0
      %2688 = vmatprep.subr.mxu0 0.0
      %2689 = vmatpush1.msra.mxu0 0.0
      %2690 = vmatprep.subr.mxu0 0.0
      %2691 = vmatpush1.msra.mxu0 0.0
      %2692 = vmatprep.subr.mxu0 0.0
      %2693 = vmatpush1.msra.mxu0 0.0
      %2694 = vmatprep.subr.mxu0 0.0
      %2695 = vmatpush1.msra.mxu0 0.0
      %2696 = vmatprep.mubr.f32.mxu0 0.0
      %2697 = vmatmul.mubr.f32.gmra.mrb[0].mxu0 %v2630
      %v2698 = vpop.f32.mrb[0].mxu0
      %v2699 = vadd.f32 0.0, %v2698
      %v2700 = vpop.f32.mrb[0].mxu0
      %v2701 = vadd.f32 0.0, %v2700
      %2702 = vdwg.mxu0
      %v2704 = vsel %vm359, %v2537, 0
      %2706 = vmatprep.subr.mxu0 %v2589
      %2707 = vmatpush1.msra.mxu0 %v2588
      %2708 = vmatprep.subr.mxu0 %v2591
      %2709 = vmatpush1.msra.mxu0 %v2590
      %2710 = vmatprep.subr.mxu0 %v2593
      %2711 = vmatpush1.msra.mxu0 %v2592
      %2712 = vmatprep.subr.mxu0 %v2595
      %2713 = vmatpush1.msra.mxu0 %v2594
      %2714 = vmatprep.subr.mxu0 %v2597
      %2715 = vmatpush1.msra.mxu0 %v2596
      %2716 = vmatprep.subr.mxu0 %v2599
      %2717 = vmatpush1.msra.mxu0 %v2598
      %2718 = vmatprep.subr.mxu0 %v2601
      %2719 = vmatpush1.msra.mxu0 %v2600
      %2720 = vmatprep.subr.mxu0 %v2603
      %2721 = vmatpush1.msra.mxu0 %v2602
      %2722 = vmatprep.subr.mxu0 0.0
      %2723 = vmatpush1.msra.mxu0 0.0
      %2724 = vmatprep.subr.mxu0 0.0
      %2725 = vmatpush1.msra.mxu0 0.0
      %2726 = vmatprep.subr.mxu0 0.0
      %2727 = vmatpush1.msra.mxu0 0.0
      %2728 = vmatprep.subr.mxu0 0.0
      %2729 = vmatpush1.msra.mxu0 0.0
      %2730 = vmatprep.subr.mxu0 0.0
      %2731 = vmatpush1.msra.mxu0 0.0
      %2732 = vmatprep.subr.mxu0 0.0
      %2733 = vmatpush1.msra.mxu0 0.0
      %2734 = vmatprep.subr.mxu0 0.0
      %2735 = vmatpush1.msra.mxu0 0.0
      %2736 = vmatprep.subr.mxu0 0.0
      %2737 = vmatpush1.msra.mxu0 0.0
      %2738 = vmatprep.subr.mxu0 0.0
      %2739 = vmatpush1.msra.mxu0 0.0
      %2740 = vmatprep.subr.mxu0 0.0
      %2741 = vmatpush1.msra.mxu0 0.0
      %2742 = vmatprep.subr.mxu0 0.0
      %2743 = vmatpush1.msra.mxu0 0.0
      %2744 = vmatprep.subr.mxu0 0.0
      %2745 = vmatpush1.msra.mxu0 0.0
      %2746 = vmatprep.subr.mxu0 0.0
      %2747 = vmatpush1.msra.mxu0 0.0
      %2748 = vmatprep.subr.mxu0 0.0
      %2749 = vmatpush1.msra.mxu0 0.0
      %2750 = vmatprep.subr.mxu0 0.0
      %2751 = vmatpush1.msra.mxu0 0.0
      %2752 = vmatprep.subr.mxu0 0.0
      %2753 = vmatpush1.msra.mxu0 0.0
      %2754 = vmatprep.subr.mxu0 0.0
      %2755 = vmatpush1.msra.mxu0 0.0
      %2756 = vmatprep.subr.mxu0 0.0
      %2757 = vmatpush1.msra.mxu0 0.0
      %2758 = vmatprep.subr.mxu0 0.0
      %2759 = vmatpush1.msra.mxu0 0.0
      %2760 = vmatprep.subr.mxu0 0.0
      %2761 = vmatpush1.msra.mxu0 0.0
      %2762 = vmatprep.subr.mxu0 0.0
      %2763 = vmatpush1.msra.mxu0 0.0
      %2764 = vmatprep.subr.mxu0 0.0
      %2765 = vmatpush1.msra.mxu0 0.0
      %2766 = vmatprep.subr.mxu0 0.0
      %2767 = vmatpush1.msra.mxu0 0.0
      %2768 = vmatprep.subr.mxu0 0.0
      %2769 = vmatpush1.msra.mxu0 0.0
      %2770 = vmatprep.mubr.f32.mxu0 0.0
      %2771 = vmatmul.mubr.f32.gmra.mrb[0].mxu0 %v2704
      %v2772 = vpop.f32.mrb[0].mxu0
      %v2773 = vadd.f32 %v2699, %v2772
      %v2774 = vpop.f32.mrb[0].mxu0
      %v2775 = vadd.f32 %v2701, %v2774
      %2776 = vdwg.mxu0
      %s2777 = scalar_lea.vmem %s6, 128
      %v2778 = vld [vmem:[%s2777] sm:$0xff]
      %v2779 = vld [vmem:[%s2777 + $0x8] sm:$0xff]
      %v2780 = vld [vmem:[%s2777 + $0x10] sm:$0xff]
      %v2781 = vld [vmem:[%s2777 + $0x18] sm:$0xff]
      %v2782 = vld [vmem:[%s2777 + $0x20] sm:$0xff]
      %v2783 = vld [vmem:[%s2777 + $0x28] sm:$0xff]
      %v2784 = vld [vmem:[%s2777 + $0x30] sm:$0xff]
      %v2785 = vld [vmem:[%s2777 + $0x38] sm:$0xff]
      %v2786 = vunpack.c.l.bf16 %v2778
      %v2787 = vunpack.c.h.bf16 %v2778
      %v2788 = vunpack.c.l.bf16 %v2779
      %v2789 = vunpack.c.h.bf16 %v2779
      %v2790 = vunpack.c.l.bf16 %v2780
      %v2791 = vunpack.c.h.bf16 %v2780
      %v2792 = vunpack.c.l.bf16 %v2781
      %v2793 = vunpack.c.h.bf16 %v2781
      %v2794 = vunpack.c.l.bf16 %v2782
      %v2795 = vunpack.c.h.bf16 %v2782
      %v2796 = vunpack.c.l.bf16 %v2783
      %v2797 = vunpack.c.h.bf16 %v2783
      %v2798 = vunpack.c.l.bf16 %v2784
      %v2799 = vunpack.c.h.bf16 %v2784
      %v2800 = vunpack.c.l.bf16 %v2785
      %v2801 = vunpack.c.h.bf16 %v2785
      %v2803 = vsel %vm359, %v2547, 0
      %2805 = vmatprep.subr.mxu0 %v2787
      %2806 = vmatpush1.msra.mxu0 %v2786
      %2807 = vmatprep.subr.mxu0 %v2789
      %2808 = vmatpush1.msra.mxu0 %v2788
      %2809 = vmatprep.subr.mxu0 %v2791
      %2810 = vmatpush1.msra.mxu0 %v2790
      %2811 = vmatprep.subr.mxu0 %v2793
      %2812 = vmatpush1.msra.mxu0 %v2792
      %2813 = vmatprep.subr.mxu0 %v2795
      %2814 = vmatpush1.msra.mxu0 %v2794
      %2815 = vmatprep.subr.mxu0 %v2797
      %2816 = vmatpush1.msra.mxu0 %v2796
      %2817 = vmatprep.subr.mxu0 %v2799
      %2818 = vmatpush1.msra.mxu0 %v2798
      %2819 = vmatprep.subr.mxu0 %v2801
      %2820 = vmatpush1.msra.mxu0 %v2800
      %2821 = vmatprep.subr.mxu0 0.0
      %2822 = vmatpush1.msra.mxu0 0.0
      %2823 = vmatprep.subr.mxu0 0.0
      %2824 = vmatpush1.msra.mxu0 0.0
      %2825 = vmatprep.subr.mxu0 0.0
      %2826 = vmatpush1.msra.mxu0 0.0
      %2827 = vmatprep.subr.mxu0 0.0
      %2828 = vmatpush1.msra.mxu0 0.0
      %2829 = vmatprep.subr.mxu0 0.0
      %2830 = vmatpush1.msra.mxu0 0.0
      %2831 = vmatprep.subr.mxu0 0.0
      %2832 = vmatpush1.msra.mxu0 0.0
      %2833 = vmatprep.subr.mxu0 0.0
      %2834 = vmatpush1.msra.mxu0 0.0
      %2835 = vmatprep.subr.mxu0 0.0
      %2836 = vmatpush1.msra.mxu0 0.0
      %2837 = vmatprep.subr.mxu0 0.0
      %2838 = vmatpush1.msra.mxu0 0.0
      %2839 = vmatprep.subr.mxu0 0.0
      %2840 = vmatpush1.msra.mxu0 0.0
      %2841 = vmatprep.subr.mxu0 0.0
      %2842 = vmatpush1.msra.mxu0 0.0
      %2843 = vmatprep.subr.mxu0 0.0
      %2844 = vmatpush1.msra.mxu0 0.0
      %2845 = vmatprep.subr.mxu0 0.0
      %2846 = vmatpush1.msra.mxu0 0.0
      %2847 = vmatprep.subr.mxu0 0.0
      %2848 = vmatpush1.msra.mxu0 0.0
      %2849 = vmatprep.subr.mxu0 0.0
      %2850 = vmatpush1.msra.mxu0 0.0
      %2851 = vmatprep.subr.mxu0 0.0
      %2852 = vmatpush1.msra.mxu0 0.0
      %2853 = vmatprep.subr.mxu0 0.0
      %2854 = vmatpush1.msra.mxu0 0.0
      %2855 = vmatprep.subr.mxu0 0.0
      %2856 = vmatpush1.msra.mxu0 0.0
      %2857 = vmatprep.subr.mxu0 0.0
      %2858 = vmatpush1.msra.mxu0 0.0
      %2859 = vmatprep.subr.mxu0 0.0
      %2860 = vmatpush1.msra.mxu0 0.0
      %2861 = vmatprep.subr.mxu0 0.0
      %2862 = vmatpush1.msra.mxu0 0.0
      %2863 = vmatprep.subr.mxu0 0.0
      %2864 = vmatpush1.msra.mxu0 0.0
      %2865 = vmatprep.subr.mxu0 0.0
      %2866 = vmatpush1.msra.mxu0 0.0
      %2867 = vmatprep.subr.mxu0 0.0
      %2868 = vmatpush1.msra.mxu0 0.0
      %2869 = vmatprep.mubr.f32.mxu0 0.0
      %2870 = vmatmul.mubr.f32.gmra.mrb[0].mxu0 %v2803
      %v2871 = vpop.f32.mrb[0].mxu0
      %v2872 = vadd.f32 0.0, %v2871
      %v2873 = vpop.f32.mrb[0].mxu0
      %v2874 = vadd.f32 0.0, %v2873
      %2875 = vdwg.mxu0
      %v2876 = vadd.f32 %v2773, %v2872
      %v2877 = vadd.f32 %v2775, %v2874
      %s2878 = scalar_lea.vmem %s6, 192
      %v2879 = vld [vmem:[%s2878] sm:$0xff]
      %v2880 = vld [vmem:[%s2878 + $0x8] sm:$0xff]
      %v2881 = vld [vmem:[%s2878 + $0x10] sm:$0xff]
      %v2882 = vld [vmem:[%s2878 + $0x18] sm:$0xff]
      %v2883 = vld [vmem:[%s2878 + $0x20] sm:$0xff]
      %v2884 = vld [vmem:[%s2878 + $0x28] sm:$0xff]
      %v2885 = vld [vmem:[%s2878 + $0x30] sm:$0xff]
      %v2886 = vld [vmem:[%s2878 + $0x38] sm:$0xff]
      %v2887 = vunpack.c.l.bf16 %v2879
      %v2888 = vunpack.c.h.bf16 %v2879
      %v2889 = vunpack.c.l.bf16 %v2880
      %v2890 = vunpack.c.h.bf16 %v2880
      %v2891 = vunpack.c.l.bf16 %v2881
      %v2892 = vunpack.c.h.bf16 %v2881
      %v2893 = vunpack.c.l.bf16 %v2882
      %v2894 = vunpack.c.h.bf16 %v2882
      %v2895 = vunpack.c.l.bf16 %v2883
      %v2896 = vunpack.c.h.bf16 %v2883
      %v2897 = vunpack.c.l.bf16 %v2884
      %v2898 = vunpack.c.h.bf16 %v2884
      %v2899 = vunpack.c.l.bf16 %v2885
      %v2900 = vunpack.c.h.bf16 %v2885
      %v2901 = vunpack.c.l.bf16 %v2886
      %v2902 = vunpack.c.h.bf16 %v2886
      %v2904 = vsel %vm359, %v2552, 0
      %2906 = vmatprep.subr.mxu0 %v2888
      %2907 = vmatpush1.msra.mxu0 %v2887
      %2908 = vmatprep.subr.mxu0 %v2890
      %2909 = vmatpush1.msra.mxu0 %v2889
      %2910 = vmatprep.subr.mxu0 %v2892
      %2911 = vmatpush1.msra.mxu0 %v2891
      %2912 = vmatprep.subr.mxu0 %v2894
      %2913 = vmatpush1.msra.mxu0 %v2893
      %2914 = vmatprep.subr.mxu0 %v2896
      %2915 = vmatpush1.msra.mxu0 %v2895
      %2916 = vmatprep.subr.mxu0 %v2898
      %2917 = vmatpush1.msra.mxu0 %v2897
      %2918 = vmatprep.subr.mxu0 %v2900
      %2919 = vmatpush1.msra.mxu0 %v2899
      %2920 = vmatprep.subr.mxu0 %v2902
      %2921 = vmatpush1.msra.mxu0 %v2901
      %2922 = vmatprep.subr.mxu0 0.0
      %2923 = vmatpush1.msra.mxu0 0.0
      %2924 = vmatprep.subr.mxu0 0.0
      %2925 = vmatpush1.msra.mxu0 0.0
      %2926 = vmatprep.subr.mxu0 0.0
      %2927 = vmatpush1.msra.mxu0 0.0
      %2928 = vmatprep.subr.mxu0 0.0
      %2929 = vmatpush1.msra.mxu0 0.0
      %2930 = vmatprep.subr.mxu0 0.0
      %2931 = vmatpush1.msra.mxu0 0.0
      %2932 = vmatprep.subr.mxu0 0.0
      %2933 = vmatpush1.msra.mxu0 0.0
      %2934 = vmatprep.subr.mxu0 0.0
      %2935 = vmatpush1.msra.mxu0 0.0
      %2936 = vmatprep.subr.mxu0 0.0
      %2937 = vmatpush1.msra.mxu0 0.0
      %2938 = vmatprep.subr.mxu0 0.0
      %2939 = vmatpush1.msra.mxu0 0.0
      %2940 = vmatprep.subr.mxu0 0.0
      %2941 = vmatpush1.msra.mxu0 0.0
      %2942 = vmatprep.subr.mxu0 0.0
      %2943 = vmatpush1.msra.mxu0 0.0
      %2944 = vmatprep.subr.mxu0 0.0
      %2945 = vmatpush1.msra.mxu0 0.0
      %2946 = vmatprep.subr.mxu0 0.0
      %2947 = vmatpush1.msra.mxu0 0.0
      %2948 = vmatprep.subr.mxu0 0.0
      %2949 = vmatpush1.msra.mxu0 0.0
      %2950 = vmatprep.subr.mxu0 0.0
      %2951 = vmatpush1.msra.mxu0 0.0
      %2952 = vmatprep.subr.mxu0 0.0
      %2953 = vmatpush1.msra.mxu0 0.0
      %2954 = vmatprep.subr.mxu0 0.0
      %2955 = vmatpush1.msra.mxu0 0.0
      %2956 = vmatprep.subr.mxu0 0.0
      %2957 = vmatpush1.msra.mxu0 0.0
      %2958 = vmatprep.subr.mxu0 0.0
      %2959 = vmatpush1.msra.mxu0 0.0
      %2960 = vmatprep.subr.mxu0 0.0
      %2961 = vmatpush1.msra.mxu0 0.0
      %2962 = vmatprep.subr.mxu0 0.0
      %2963 = vmatpush1.msra.mxu0 0.0
      %2964 = vmatprep.subr.mxu0 0.0
      %2965 = vmatpush1.msra.mxu0 0.0
      %2966 = vmatprep.subr.mxu0 0.0
      %2967 = vmatpush1.msra.mxu0 0.0
      %2968 = vmatprep.subr.mxu0 0.0
      %2969 = vmatpush1.msra.mxu0 0.0
      %2970 = vmatprep.mubr.f32.mxu0 0.0
      %2971 = vmatmul.mubr.f32.gmra.mrb[0].mxu0 %v2904
      %v2972 = vpop.f32.mrb[0].mxu0
      %v2973 = vadd.f32 0.0, %v2972
      %v2974 = vpop.f32.mrb[0].mxu0
      %v2975 = vadd.f32 0.0, %v2974
      %2976 = vdwg.mxu0
      %v2977 = vadd.f32 %v2876, %v2973
      %v2978 = vadd.f32 %v2877, %v2975
      %s2979 = scalar_lea.vmem %s6, 256
      %v2980 = vld [vmem:[%s2979] sm:$0xff]
      %v2981 = vld [vmem:[%s2979 + $0x8] sm:$0xff]
      %v2982 = vld [vmem:[%s2979 + $0x10] sm:$0xff]
      %v2983 = vld [vmem:[%s2979 + $0x18] sm:$0xff]
      %v2984 = vld [vmem:[%s2979 + $0x20] sm:$0xff]
      %v2985 = vld [vmem:[%s2979 + $0x28] sm:$0xff]
      %v2986 = vld [vmem:[%s2979 + $0x30] sm:$0xff]
      %v2987 = vld [vmem:[%s2979 + $0x38] sm:$0xff]
      %v2988 = vunpack.c.l.bf16 %v2980
      %v2989 = vunpack.c.h.bf16 %v2980
      %v2990 = vunpack.c.l.bf16 %v2981
      %v2991 = vunpack.c.h.bf16 %v2981
      %v2992 = vunpack.c.l.bf16 %v2982
      %v2993 = vunpack.c.h.bf16 %v2982
      %v2994 = vunpack.c.l.bf16 %v2983
      %v2995 = vunpack.c.h.bf16 %v2983
      %v2996 = vunpack.c.l.bf16 %v2984
      %v2997 = vunpack.c.h.bf16 %v2984
      %v2998 = vunpack.c.l.bf16 %v2985
      %v2999 = vunpack.c.h.bf16 %v2985
      %v3000 = vunpack.c.l.bf16 %v2986
      %v3001 = vunpack.c.h.bf16 %v2986
      %v3002 = vunpack.c.l.bf16 %v2987
      %v3003 = vunpack.c.h.bf16 %v2987
      %v3005 = vsel %vm359, %v2557, 0
      %3007 = vmatprep.subr.mxu0 %v2989
      %3008 = vmatpush1.msra.mxu0 %v2988
      %3009 = vmatprep.subr.mxu0 %v2991
      %3010 = vmatpush1.msra.mxu0 %v2990
      %3011 = vmatprep.subr.mxu0 %v2993
      %3012 = vmatpush1.msra.mxu0 %v2992
      %3013 = vmatprep.subr.mxu0 %v2995
      %3014 = vmatpush1.msra.mxu0 %v2994
      %3015 = vmatprep.subr.mxu0 %v2997
      %3016 = vmatpush1.msra.mxu0 %v2996
      %3017 = vmatprep.subr.mxu0 %v2999
      %3018 = vmatpush1.msra.mxu0 %v2998
      %3019 = vmatprep.subr.mxu0 %v3001
      %3020 = vmatpush1.msra.mxu0 %v3000
      %3021 = vmatprep.subr.mxu0 %v3003
      %3022 = vmatpush1.msra.mxu0 %v3002
      %3023 = vmatprep.subr.mxu0 0.0
      %3024 = vmatpush1.msra.mxu0 0.0
      %3025 = vmatprep.subr.mxu0 0.0
      %3026 = vmatpush1.msra.mxu0 0.0
      %3027 = vmatprep.subr.mxu0 0.0
      %3028 = vmatpush1.msra.mxu0 0.0
      %3029 = vmatprep.subr.mxu0 0.0
      %3030 = vmatpush1.msra.mxu0 0.0
      %3031 = vmatprep.subr.mxu0 0.0
      %3032 = vmatpush1.msra.mxu0 0.0
      %3033 = vmatprep.subr.mxu0 0.0
      %3034 = vmatpush1.msra.mxu0 0.0
      %3035 = vmatprep.subr.mxu0 0.0
      %3036 = vmatpush1.msra.mxu0 0.0
      %3037 = vmatprep.subr.mxu0 0.0
      %3038 = vmatpush1.msra.mxu0 0.0
      %3039 = vmatprep.subr.mxu0 0.0
      %3040 = vmatpush1.msra.mxu0 0.0
      %3041 = vmatprep.subr.mxu0 0.0
      %3042 = vmatpush1.msra.mxu0 0.0
      %3043 = vmatprep.subr.mxu0 0.0
      %3044 = vmatpush1.msra.mxu0 0.0
      %3045 = vmatprep.subr.mxu0 0.0
      %3046 = vmatpush1.msra.mxu0 0.0
      %3047 = vmatprep.subr.mxu0 0.0
      %3048 = vmatpush1.msra.mxu0 0.0
      %3049 = vmatprep.subr.mxu0 0.0
      %3050 = vmatpush1.msra.mxu0 0.0
      %3051 = vmatprep.subr.mxu0 0.0
      %3052 = vmatpush1.msra.mxu0 0.0
      %3053 = vmatprep.subr.mxu0 0.0
      %3054 = vmatpush1.msra.mxu0 0.0
      %3055 = vmatprep.subr.mxu0 0.0
      %3056 = vmatpush1.msra.mxu0 0.0
      %3057 = vmatprep.subr.mxu0 0.0
      %3058 = vmatpush1.msra.mxu0 0.0
      %3059 = vmatprep.subr.mxu0 0.0
      %3060 = vmatpush1.msra.mxu0 0.0
      %3061 = vmatprep.subr.mxu0 0.0
      %3062 = vmatpush1.msra.mxu0 0.0
      %3063 = vmatprep.subr.mxu0 0.0
      %3064 = vmatpush1.msra.mxu0 0.0
      %3065 = vmatprep.subr.mxu0 0.0
      %3066 = vmatpush1.msra.mxu0 0.0
      %3067 = vmatprep.subr.mxu0 0.0
      %3068 = vmatpush1.msra.mxu0 0.0
      %3069 = vmatprep.subr.mxu0 0.0
      %3070 = vmatpush1.msra.mxu0 0.0
      %3071 = vmatprep.mubr.f32.mxu0 0.0
      %3072 = vmatmul.mubr.f32.gmra.mrb[0].mxu0 %v3005
      %v3073 = vpop.f32.mrb[0].mxu0
      %v3074 = vadd.f32 0.0, %v3073
      %v3075 = vpop.f32.mrb[0].mxu0
      %v3076 = vadd.f32 0.0, %v3075
      %3077 = vdwg.mxu0
      %v3078 = vadd.f32 %v2977, %v3074
      %v3079 = vadd.f32 %v2978, %v3076
      %s3080 = scalar_lea.vmem %s6, 320
      %v3081 = vld [vmem:[%s3080] sm:$0xff]
      %v3082 = vld [vmem:[%s3080 + $0x8] sm:$0xff]
      %v3083 = vld [vmem:[%s3080 + $0x10] sm:$0xff]
      %v3084 = vld [vmem:[%s3080 + $0x18] sm:$0xff]
      %v3085 = vld [vmem:[%s3080 + $0x20] sm:$0xff]
      %v3086 = vld [vmem:[%s3080 + $0x28] sm:$0xff]
      %v3087 = vld [vmem:[%s3080 + $0x30] sm:$0xff]
      %v3088 = vld [vmem:[%s3080 + $0x38] sm:$0xff]
      %v3089 = vunpack.c.l.bf16 %v3081
      %v3090 = vunpack.c.h.bf16 %v3081
      %v3091 = vunpack.c.l.bf16 %v3082
      %v3092 = vunpack.c.h.bf16 %v3082
      %v3093 = vunpack.c.l.bf16 %v3083
      %v3094 = vunpack.c.h.bf16 %v3083
      %v3095 = vunpack.c.l.bf16 %v3084
      %v3096 = vunpack.c.h.bf16 %v3084
      %v3097 = vunpack.c.l.bf16 %v3085
      %v3098 = vunpack.c.h.bf16 %v3085
      %v3099 = vunpack.c.l.bf16 %v3086
      %v3100 = vunpack.c.h.bf16 %v3086
      %v3101 = vunpack.c.l.bf16 %v3087
      %v3102 = vunpack.c.h.bf16 %v3087
      %v3103 = vunpack.c.l.bf16 %v3088
      %v3104 = vunpack.c.h.bf16 %v3088
      %v3106 = vsel %vm359, %v2562, 0
      %3108 = vmatprep.subr.mxu0 %v3090
      %3109 = vmatpush1.msra.mxu0 %v3089
      %3110 = vmatprep.subr.mxu0 %v3092
      %3111 = vmatpush1.msra.mxu0 %v3091
      %3112 = vmatprep.subr.mxu0 %v3094
      %3113 = vmatpush1.msra.mxu0 %v3093
      %3114 = vmatprep.subr.mxu0 %v3096
      %3115 = vmatpush1.msra.mxu0 %v3095
      %3116 = vmatprep.subr.mxu0 %v3098
      %3117 = vmatpush1.msra.mxu0 %v3097
      %3118 = vmatprep.subr.mxu0 %v3100
      %3119 = vmatpush1.msra.mxu0 %v3099
      %3120 = vmatprep.subr.mxu0 %v3102
      %3121 = vmatpush1.msra.mxu0 %v3101
      %3122 = vmatprep.subr.mxu0 %v3104
      %3123 = vmatpush1.msra.mxu0 %v3103
      %3124 = vmatprep.subr.mxu0 0.0
      %3125 = vmatpush1.msra.mxu0 0.0
      %3126 = vmatprep.subr.mxu0 0.0
      %3127 = vmatpush1.msra.mxu0 0.0
      %3128 = vmatprep.subr.mxu0 0.0
      %3129 = vmatpush1.msra.mxu0 0.0
      %3130 = vmatprep.subr.mxu0 0.0
      %3131 = vmatpush1.msra.mxu0 0.0
      %3132 = vmatprep.subr.mxu0 0.0
      %3133 = vmatpush1.msra.mxu0 0.0
      %3134 = vmatprep.subr.mxu0 0.0
      %3135 = vmatpush1.msra.mxu0 0.0
      %3136 = vmatprep.subr.mxu0 0.0
      %3137 = vmatpush1.msra.mxu0 0.0
      %3138 = vmatprep.subr.mxu0 0.0
      %3139 = vmatpush1.msra.mxu0 0.0
      %3140 = vmatprep.subr.mxu0 0.0
      %3141 = vmatpush1.msra.mxu0 0.0
      %3142 = vmatprep.subr.mxu0 0.0
      %3143 = vmatpush1.msra.mxu0 0.0
      %3144 = vmatprep.subr.mxu0 0.0
      %3145 = vmatpush1.msra.mxu0 0.0
      %3146 = vmatprep.subr.mxu0 0.0
      %3147 = vmatpush1.msra.mxu0 0.0
      %3148 = vmatprep.subr.mxu0 0.0
      %3149 = vmatpush1.msra.mxu0 0.0
      %3150 = vmatprep.subr.mxu0 0.0
      %3151 = vmatpush1.msra.mxu0 0.0
      %3152 = vmatprep.subr.mxu0 0.0
      %3153 = vmatpush1.msra.mxu0 0.0
      %3154 = vmatprep.subr.mxu0 0.0
      %3155 = vmatpush1.msra.mxu0 0.0
      %3156 = vmatprep.subr.mxu0 0.0
      %3157 = vmatpush1.msra.mxu0 0.0
      %3158 = vmatprep.subr.mxu0 0.0
      %3159 = vmatpush1.msra.mxu0 0.0
      %3160 = vmatprep.subr.mxu0 0.0
      %3161 = vmatpush1.msra.mxu0 0.0
      %3162 = vmatprep.subr.mxu0 0.0
      %3163 = vmatpush1.msra.mxu0 0.0
      %3164 = vmatprep.subr.mxu0 0.0
      %3165 = vmatpush1.msra.mxu0 0.0
      %3166 = vmatprep.subr.mxu0 0.0
      %3167 = vmatpush1.msra.mxu0 0.0
      %3168 = vmatprep.subr.mxu0 0.0
      %3169 = vmatpush1.msra.mxu0 0.0
      %3170 = vmatprep.subr.mxu0 0.0
      %3171 = vmatpush1.msra.mxu0 0.0
      %3172 = vmatprep.mubr.f32.mxu0 0.0
      %3173 = vmatmul.mubr.f32.gmra.mrb[0].mxu0 %v3106
      %v3174 = vpop.f32.mrb[0].mxu0
      %v3175 = vadd.f32 0.0, %v3174
      %v3176 = vpop.f32.mrb[0].mxu0
      %v3177 = vadd.f32 0.0, %v3176
      %3178 = vdwg.mxu0
      %v3179 = vadd.f32 %v3078, %v3175
      %v3180 = vadd.f32 %v3079, %v3177
      %s3181 = scalar_lea.vmem %s6, 384
      %v3182 = vld [vmem:[%s3181] sm:$0xff]
      %v3183 = vld [vmem:[%s3181 + $0x8] sm:$0xff]
      %v3184 = vld [vmem:[%s3181 + $0x10] sm:$0xff]
      %v3185 = vld [vmem:[%s3181 + $0x18] sm:$0xff]
      %v3186 = vld [vmem:[%s3181 + $0x20] sm:$0xff]
      %v3187 = vld [vmem:[%s3181 + $0x28] sm:$0xff]
      %v3188 = vld [vmem:[%s3181 + $0x30] sm:$0xff]
      %v3189 = vld [vmem:[%s3181 + $0x38] sm:$0xff]
      %v3190 = vunpack.c.l.bf16 %v3182
      %v3191 = vunpack.c.h.bf16 %v3182
      %v3192 = vunpack.c.l.bf16 %v3183
      %v3193 = vunpack.c.h.bf16 %v3183
      %v3194 = vunpack.c.l.bf16 %v3184
      %v3195 = vunpack.c.h.bf16 %v3184
      %v3196 = vunpack.c.l.bf16 %v3185
      %v3197 = vunpack.c.h.bf16 %v3185
      %v3198 = vunpack.c.l.bf16 %v3186
      %v3199 = vunpack.c.h.bf16 %v3186
      %v3200 = vunpack.c.l.bf16 %v3187
      %v3201 = vunpack.c.h.bf16 %v3187
      %v3202 = vunpack.c.l.bf16 %v3188
      %v3203 = vunpack.c.h.bf16 %v3188
      %v3204 = vunpack.c.l.bf16 %v3189
      %v3205 = vunpack.c.h.bf16 %v3189
      %v3207 = vsel %vm359, %v2567, 0
      %3209 = vmatprep.subr.mxu0 %v3191
      %3210 = vmatpush1.msra.mxu0 %v3190
      %3211 = vmatprep.subr.mxu0 %v3193
      %3212 = vmatpush1.msra.mxu0 %v3192
      %3213 = vmatprep.subr.mxu0 %v3195
      %3214 = vmatpush1.msra.mxu0 %v3194
      %3215 = vmatprep.subr.mxu0 %v3197
      %3216 = vmatpush1.msra.mxu0 %v3196
      %3217 = vmatprep.subr.mxu0 %v3199
      %3218 = vmatpush1.msra.mxu0 %v3198
      %3219 = vmatprep.subr.mxu0 %v3201
      %3220 = vmatpush1.msra.mxu0 %v3200
      %3221 = vmatprep.subr.mxu0 %v3203
      %3222 = vmatpush1.msra.mxu0 %v3202
      %3223 = vmatprep.subr.mxu0 %v3205
      %3224 = vmatpush1.msra.mxu0 %v3204
      %3225 = vmatprep.subr.mxu0 0.0
      %3226 = vmatpush1.msra.mxu0 0.0
      %3227 = vmatprep.subr.mxu0 0.0
      %3228 = vmatpush1.msra.mxu0 0.0
      %3229 = vmatprep.subr.mxu0 0.0
      %3230 = vmatpush1.msra.mxu0 0.0
      %3231 = vmatprep.subr.mxu0 0.0
      %3232 = vmatpush1.msra.mxu0 0.0
      %3233 = vmatprep.subr.mxu0 0.0
      %3234 = vmatpush1.msra.mxu0 0.0
      %3235 = vmatprep.subr.mxu0 0.0
      %3236 = vmatpush1.msra.mxu0 0.0
      %3237 = vmatprep.subr.mxu0 0.0
      %3238 = vmatpush1.msra.mxu0 0.0
      %3239 = vmatprep.subr.mxu0 0.0
      %3240 = vmatpush1.msra.mxu0 0.0
      %3241 = vmatprep.subr.mxu0 0.0
      %3242 = vmatpush1.msra.mxu0 0.0
      %3243 = vmatprep.subr.mxu0 0.0
      %3244 = vmatpush1.msra.mxu0 0.0
      %3245 = vmatprep.subr.mxu0 0.0
      %3246 = vmatpush1.msra.mxu0 0.0
      %3247 = vmatprep.subr.mxu0 0.0
      %3248 = vmatpush1.msra.mxu0 0.0
      %3249 = vmatprep.subr.mxu0 0.0
      %3250 = vmatpush1.msra.mxu0 0.0
      %3251 = vmatprep.subr.mxu0 0.0
      %3252 = vmatpush1.msra.mxu0 0.0
      %3253 = vmatprep.subr.mxu0 0.0
      %3254 = vmatpush1.msra.mxu0 0.0
      %3255 = vmatprep.subr.mxu0 0.0
      %3256 = vmatpush1.msra.mxu0 0.0
      %3257 = vmatprep.subr.mxu0 0.0
      %3258 = vmatpush1.msra.mxu0 0.0
      %3259 = vmatprep.subr.mxu0 0.0
      %3260 = vmatpush1.msra.mxu0 0.0
      %3261 = vmatprep.subr.mxu0 0.0
      %3262 = vmatpush1.msra.mxu0 0.0
      %3263 = vmatprep.subr.mxu0 0.0
      %3264 = vmatpush1.msra.mxu0 0.0
      %3265 = vmatprep.subr.mxu0 0.0
      %3266 = vmatpush1.msra.mxu0 0.0
      %3267 = vmatprep.subr.mxu0 0.0
      %3268 = vmatpush1.msra.mxu0 0.0
      %3269 = vmatprep.subr.mxu0 0.0
      %3270 = vmatpush1.msra.mxu0 0.0
      %3271 = vmatprep.subr.mxu0 0.0
      %3272 = vmatpush1.msra.mxu0 0.0
      %3273 = vmatprep.mubr.f32.mxu0 0.0
      %3274 = vmatmul.mubr.f32.gmra.mrb[0].mxu0 %v3207
      %v3275 = vpop.f32.mrb[0].mxu0
      %v3276 = vadd.f32 0.0, %v3275
      %v3277 = vpop.f32.mrb[0].mxu0
      %v3278 = vadd.f32 0.0, %v3277
      %3279 = vdwg.mxu0
      %v3280 = vadd.f32 %v3179, %v3276
      %v3281 = vadd.f32 %v3180, %v3278
      %s3282 = scalar_lea.vmem %s6, 448
      %v3283 = vld [vmem:[%s3282] sm:$0xff]
      %v3284 = vld [vmem:[%s3282 + $0x8] sm:$0xff]
      %v3285 = vld [vmem:[%s3282 + $0x10] sm:$0xff]
      %v3286 = vld [vmem:[%s3282 + $0x18] sm:$0xff]
      %v3287 = vld [vmem:[%s3282 + $0x20] sm:$0xff]
      %v3288 = vld [vmem:[%s3282 + $0x28] sm:$0xff]
      %v3289 = vld [vmem:[%s3282 + $0x30] sm:$0xff]
      %v3290 = vld [vmem:[%s3282 + $0x38] sm:$0xff]
      %v3291 = vunpack.c.l.bf16 %v3283
      %v3292 = vunpack.c.h.bf16 %v3283
      %v3293 = vunpack.c.l.bf16 %v3284
      %v3294 = vunpack.c.h.bf16 %v3284
      %v3295 = vunpack.c.l.bf16 %v3285
      %v3296 = vunpack.c.h.bf16 %v3285
      %v3297 = vunpack.c.l.bf16 %v3286
      %v3298 = vunpack.c.h.bf16 %v3286
      %v3299 = vunpack.c.l.bf16 %v3287
      %v3300 = vunpack.c.h.bf16 %v3287
      %v3301 = vunpack.c.l.bf16 %v3288
      %v3302 = vunpack.c.h.bf16 %v3288
      %v3303 = vunpack.c.l.bf16 %v3289
      %v3304 = vunpack.c.h.bf16 %v3289
      %v3305 = vunpack.c.l.bf16 %v3290
      %v3306 = vunpack.c.h.bf16 %v3290
      %v3308 = vsel %vm359, %v2572, 0
      %3310 = vmatprep.subr.mxu0 %v3292
      %3311 = vmatpush1.msra.mxu0 %v3291
      %3312 = vmatprep.subr.mxu0 %v3294
      %3313 = vmatpush1.msra.mxu0 %v3293
      %3314 = vmatprep.subr.mxu0 %v3296
      %3315 = vmatpush1.msra.mxu0 %v3295
      %3316 = vmatprep.subr.mxu0 %v3298
      %3317 = vmatpush1.msra.mxu0 %v3297
      %3318 = vmatprep.subr.mxu0 %v3300
      %3319 = vmatpush1.msra.mxu0 %v3299
      %3320 = vmatprep.subr.mxu0 %v3302
      %3321 = vmatpush1.msra.mxu0 %v3301
      %3322 = vmatprep.subr.mxu0 %v3304
      %3323 = vmatpush1.msra.mxu0 %v3303
      %3324 = vmatprep.subr.mxu0 %v3306
      %3325 = vmatpush1.msra.mxu0 %v3305
      %3326 = vmatprep.subr.mxu0 0.0
      %3327 = vmatpush1.msra.mxu0 0.0
      %3328 = vmatprep.subr.mxu0 0.0
      %3329 = vmatpush1.msra.mxu0 0.0
      %3330 = vmatprep.subr.mxu0 0.0
      %3331 = vmatpush1.msra.mxu0 0.0
      %3332 = vmatprep.subr.mxu0 0.0
      %3333 = vmatpush1.msra.mxu0 0.0
      %3334 = vmatprep.subr.mxu0 0.0
      %3335 = vmatpush1.msra.mxu0 0.0
      %3336 = vmatprep.subr.mxu0 0.0
      %3337 = vmatpush1.msra.mxu0 0.0
      %3338 = vmatprep.subr.mxu0 0.0
      %3339 = vmatpush1.msra.mxu0 0.0
      %3340 = vmatprep.subr.mxu0 0.0
      %3341 = vmatpush1.msra.mxu0 0.0
      %3342 = vmatprep.subr.mxu0 0.0
      %3343 = vmatpush1.msra.mxu0 0.0
      %3344 = vmatprep.subr.mxu0 0.0
      %3345 = vmatpush1.msra.mxu0 0.0
      %3346 = vmatprep.subr.mxu0 0.0
      %3347 = vmatpush1.msra.mxu0 0.0
      %3348 = vmatprep.subr.mxu0 0.0
      %3349 = vmatpush1.msra.mxu0 0.0
      %3350 = vmatprep.subr.mxu0 0.0
      %3351 = vmatpush1.msra.mxu0 0.0
      %3352 = vmatprep.subr.mxu0 0.0
      %3353 = vmatpush1.msra.mxu0 0.0
      %3354 = vmatprep.subr.mxu0 0.0
      %3355 = vmatpush1.msra.mxu0 0.0
      %3356 = vmatprep.subr.mxu0 0.0
      %3357 = vmatpush1.msra.mxu0 0.0
      %3358 = vmatprep.subr.mxu0 0.0
      %3359 = vmatpush1.msra.mxu0 0.0
      %3360 = vmatprep.subr.mxu0 0.0
      %3361 = vmatpush1.msra.mxu0 0.0
      %3362 = vmatprep.subr.mxu0 0.0
      %3363 = vmatpush1.msra.mxu0 0.0
      %3364 = vmatprep.subr.mxu0 0.0
      %3365 = vmatpush1.msra.mxu0 0.0
      %3366 = vmatprep.subr.mxu0 0.0
      %3367 = vmatpush1.msra.mxu0 0.0
      %3368 = vmatprep.subr.mxu0 0.0
      %3369 = vmatpush1.msra.mxu0 0.0
      %3370 = vmatprep.subr.mxu0 0.0
      %3371 = vmatpush1.msra.mxu0 0.0
      %3372 = vmatprep.subr.mxu0 0.0
      %3373 = vmatpush1.msra.mxu0 0.0
      %3374 = vmatprep.mubr.f32.mxu0 0.0
      %3375 = vmatmul.mubr.f32.gmra.mrb[0].mxu0 %v3308
      %v3376 = vpop.f32.mrb[0].mxu0
      %v3377 = vadd.f32 0.0, %v3376
      %v3378 = vpop.f32.mrb[0].mxu0
      %v3379 = vadd.f32 0.0, %v3378
      %3380 = vdwg.mxu0
      %v3381 = vadd.f32 %v3280, %v3377
      %v3382 = vadd.f32 %v3281, %v3379
      %s3383 = scalar_lea.vmem %s6, 512
      %v3384 = vld [vmem:[%s3383] sm:$0xff]
      %v3385 = vld [vmem:[%s3383 + $0x8] sm:$0xff]
      %v3386 = vld [vmem:[%s3383 + $0x10] sm:$0xff]
      %v3387 = vld [vmem:[%s3383 + $0x18] sm:$0xff]
      %v3388 = vld [vmem:[%s3383 + $0x20] sm:$0xff]
      %v3389 = vld [vmem:[%s3383 + $0x28] sm:$0xff]
      %v3390 = vld [vmem:[%s3383 + $0x30] sm:$0xff]
      %v3391 = vld [vmem:[%s3383 + $0x38] sm:$0xff]
      %v3392 = vunpack.c.l.bf16 %v3384
      %v3393 = vunpack.c.h.bf16 %v3384
      %v3394 = vunpack.c.l.bf16 %v3385
      %v3395 = vunpack.c.h.bf16 %v3385
      %v3396 = vunpack.c.l.bf16 %v3386
      %v3397 = vunpack.c.h.bf16 %v3386
      %v3398 = vunpack.c.l.bf16 %v3387
      %v3399 = vunpack.c.h.bf16 %v3387
      %v3400 = vunpack.c.l.bf16 %v3388
      %v3401 = vunpack.c.h.bf16 %v3388
      %v3402 = vunpack.c.l.bf16 %v3389
      %v3403 = vunpack.c.h.bf16 %v3389
      %v3404 = vunpack.c.l.bf16 %v3390
      %v3405 = vunpack.c.h.bf16 %v3390
      %v3406 = vunpack.c.l.bf16 %v3391
      %v3407 = vunpack.c.h.bf16 %v3391
      %v3409 = vsel %vm359, %v2577, 0
      %3411 = vmatprep.subr.mxu0 %v3393
      %3412 = vmatpush1.msra.mxu0 %v3392
      %3413 = vmatprep.subr.mxu0 %v3395
      %3414 = vmatpush1.msra.mxu0 %v3394
      %3415 = vmatprep.subr.mxu0 %v3397
      %3416 = vmatpush1.msra.mxu0 %v3396
      %3417 = vmatprep.subr.mxu0 %v3399
      %3418 = vmatpush1.msra.mxu0 %v3398
      %3419 = vmatprep.subr.mxu0 %v3401
      %3420 = vmatpush1.msra.mxu0 %v3400
      %3421 = vmatprep.subr.mxu0 %v3403
      %3422 = vmatpush1.msra.mxu0 %v3402
      %3423 = vmatprep.subr.mxu0 %v3405
      %3424 = vmatpush1.msra.mxu0 %v3404
      %3425 = vmatprep.subr.mxu0 %v3407
      %3426 = vmatpush1.msra.mxu0 %v3406
      %3427 = vmatprep.subr.mxu0 0.0
      %3428 = vmatpush1.msra.mxu0 0.0
      %3429 = vmatprep.subr.mxu0 0.0
      %3430 = vmatpush1.msra.mxu0 0.0
      %3431 = vmatprep.subr.mxu0 0.0
      %3432 = vmatpush1.msra.mxu0 0.0
      %3433 = vmatprep.subr.mxu0 0.0
      %3434 = vmatpush1.msra.mxu0 0.0
      %3435 = vmatprep.subr.mxu0 0.0
      %3436 = vmatpush1.msra.mxu0 0.0
      %3437 = vmatprep.subr.mxu0 0.0
      %3438 = vmatpush1.msra.mxu0 0.0
      %3439 = vmatprep.subr.mxu0 0.0
      %3440 = vmatpush1.msra.mxu0 0.0
      %3441 = vmatprep.subr.mxu0 0.0
      %3442 = vmatpush1.msra.mxu0 0.0
      %3443 = vmatprep.subr.mxu0 0.0
      %3444 = vmatpush1.msra.mxu0 0.0
      %3445 = vmatprep.subr.mxu0 0.0
      %3446 = vmatpush1.msra.mxu0 0.0
      %3447 = vmatprep.subr.mxu0 0.0
      %3448 = vmatpush1.msra.mxu0 0.0
      %3449 = vmatprep.subr.mxu0 0.0
      %3450 = vmatpush1.msra.mxu0 0.0
      %3451 = vmatprep.subr.mxu0 0.0
      %3452 = vmatpush1.msra.mxu0 0.0
      %3453 = vmatprep.subr.mxu0 0.0
      %3454 = vmatpush1.msra.mxu0 0.0
      %3455 = vmatprep.subr.mxu0 0.0
      %3456 = vmatpush1.msra.mxu0 0.0
      %3457 = vmatprep.subr.mxu0 0.0
      %3458 = vmatpush1.msra.mxu0 0.0
      %3459 = vmatprep.subr.mxu0 0.0
      %3460 = vmatpush1.msra.mxu0 0.0
      %3461 = vmatprep.subr.mxu0 0.0
      %3462 = vmatpush1.msra.mxu0 0.0
      %3463 = vmatprep.subr.mxu0 0.0
      %3464 = vmatpush1.msra.mxu0 0.0
      %3465 = vmatprep.subr.mxu0 0.0
      %3466 = vmatpush1.msra.mxu0 0.0
      %3467 = vmatprep.subr.mxu0 0.0
      %3468 = vmatpush1.msra.mxu0 0.0
      %3469 = vmatprep.subr.mxu0 0.0
      %3470 = vmatpush1.msra.mxu0 0.0
      %3471 = vmatprep.subr.mxu0 0.0
      %3472 = vmatpush1.msra.mxu0 0.0
      %3473 = vmatprep.subr.mxu0 0.0
      %3474 = vmatpush1.msra.mxu0 0.0
      %3475 = vmatprep.mubr.f32.mxu0 0.0
      %3476 = vmatmul.mubr.f32.gmra.mrb[0].mxu0 %v3409
      %v3477 = vpop.f32.mrb[0].mxu0
      %v3478 = vadd.f32 0.0, %v3477
      %v3479 = vpop.f32.mrb[0].mxu0
      %v3480 = vadd.f32 0.0, %v3479
      %3481 = vdwg.mxu0
      %v3482 = vadd.f32 %v3381, %v3478
      %v3483 = vadd.f32 %v3382, %v3480
      %v3484 = vld [vmem:[%s4] sm:$0xff]
      %3486 = vset.pattern.permute.xlu0 0
      %3487 = vperm.xlu0 %3486, %v3484
      %v3488 = vpop.permute.xlu0 %3487
      %v3490 = vadd.f32 %v3482, %v3488
      %v3491 = vadd.f32 %v3483, %v3488
      %v3492 = vand.u32 2147483647, %v3490
      %v3493 = vand.u32 2147483647, %v3491
      %v3494 = vsub.f32 0.0, %v3492
      %v3495 = vsub.f32 0.0, %v3493
      %v3496 = vmul.f32 %v3494, 1.442695
      %v3497 = vpow.pop %v3496
      %v3498 = vmul.f32 %v3495, 1.442695
      %v3499 = vpow.pop %v3498
      %v3500 = vadd.f32 %v3497, 1.0
      %v3501 = vadd.f32 %v3499, 1.0
      %v3502 = vrcp.pop %v3500
      %v3503 = vrcp.pop %v3501
      %vm3504 = vcmp.ge.f32.partialorder %v3490, 0.0
      %vm3505 = vcmp.ge.f32.partialorder %v3491, 0.0
      %v3506 = vmul.f32 %v3497, %v3502
      %v3507 = vmul.f32 %v3499, %v3503
      %v3508 = vsel %vm3504, %v3502, %v3506
      %v3509 = vsel %vm3505, %v3503, %v3507
      %3510 = vst [vmem:[%s278] sm:$0xff] %v3508
      %3511 = vst [vmem:[%s278 + $0x8] sm:$0xff] %v3509
      %p3512 = scmp.lt.s32.totalorder %s18, 1
      %s3513 = scalar_select %p3512, %s18, 1
      %s3514 = smul.addr %s3513, 2
      %s3515 = smul.addr %s3514, 8
      %s3516 = scalar_lea.vmem %s7, %s3515
      // Predicated region
      $region49: #{ref_head_forward.1} parent=47 // pred_check
        %p3517 = pneg %p188
      $region50: #{ref_head_forward.1} parent=47 // pred_check_branch
        %3519 = sbr.rel (%p3517) target = $region52
      $region51: #{ref_head_forward.1} parent=47 // pred_region
        _
      $region52: #{ref_head_forward.1} parent=47 // pred_fallthru
        _
    $region48: #{ref_head_forward.1} parent=5 // pred_fallthru
      _
    %p3520 = scmp.le.s32.totalorder 2, %s13
    // Predicated region
    $region53: #{ref_head_forward.1} parent=5 // pred_check
      %p3521 = pneg %p3520
    $region54: #{ref_head_forward.1} parent=5 // pred_check_branch
      %3523 = sbr.rel (%p3521) target = $region56
    $region55: #{ref_head_forward.1} parent=5 // pred_region
      %s3524 = ssub.s32 %s13, 2
      // Predicated region
      $region57: #{ref_head_forward.1} parent=55 // pred_check
        %p3525 = pneg %p194
      $region58: #{ref_head_forward.1} parent=55 // pred_check_branch
        %3527 = sbr.rel (%p3525) target = $region60
      $region59: #{ref_head_forward.1} parent=55 // pred_region
        %p3528 = scmp.lt.s32.totalorder %s19, 1
        %s3529 = scalar_select %p3528, %s19, 1
        %s3530 = smul.addr %s3529, 2
        %s3531 = smul.addr %s3530, 8
        %s3532 = scalar_lea.vmem %s7, %s3531
      $region60: #{ref_head_forward.1} parent=55 // pred_fallthru
        _
    $region56: #{ref_head_forward.1} parent=5 // pred_fallthru
      _
  $region6: #{ref_head_forward.1} parent=0 // loop_footer
    %s17 = sadd.s32 1, %s13
  $region7: #{ref_head_forward.1} parent=0 // loop_footer_branch
    %12 = sbr.rel target = $region3
  $region8: #{ref_head_forward.1} parent=0 // loop_exit
    _

</llo_original>
